<compile_context>
chip_gen: v7x
topology: tpu7x:2x2x1
jax: 0.10.0
libtpu: 0.0.40
codegen_flags: <defaults>
</compile_context>

<pallas_src>
import functools

import jax
import jax.numpy as jnp
from jax import lax
from jax.experimental import pallas as pl
from jax.experimental.pallas import tpu as pltpu


LANE = 128  # lane width; channel dim is padded to a multiple of this


def _round_up(n, m):
    return (n + m - 1) // m * m


def resnet1d_kernel(x_ref, w1_ref, w2_ref, o_ref, *, seq_len):
    """One grid step: a (Bt*L, C) channels-last slab.

    x_ref : (M, C)    f32  activations, M = Bt * seq_len (batch folded into rows)
    w1_ref: (K, C, C) bf16 first conv,  w1_ref[k] maps C_in -> C_out
    w2_ref: (K, C, C) bf16 second conv
    o_ref : (M, C)    f32
    """
    M, C = x_ref.shape
    K = w1_ref.shape[0]
    pad = (K - 1) // 2

    x = x_ref[...]                                          # (M, C) f32

    # Row index within each batch element (M is a multiple of seq_len, so the modulo
    # is exact even though the slab spans several batch elements).
    row = lax.broadcasted_iota(jnp.int32, (M, 1), 0) % seq_len

    # Per-tap validity masks: tap k reads input row m + (k - pad); it is valid only if
    # that row lies inside the same batch element (this implements the zero padding).
    masks = []
    for k in range(K):
        s = k - pad
        if s == 0:
            masks.append(None)
        else:
            masks.append(jnp.logical_and(row + s >= 0, row + s < seq_len))

    def conv(inp, w_ref):
        acc = jnp.zeros((M, C), jnp.float32)
        for k in range(K):                                  # static unroll over taps
            s = k - pad                                     # out[m] += inp[m + s] @ w[k]
            if s == 0:
                tap = inp
            else:
                shifted = pltpu.roll(inp, (-s) % M, 0)      # shifted[m] = inp[(m + s) % M]
                tap = jnp.where(masks[k], shifted, 0.0)     # kill out-of-element rows
            acc = acc + jnp.dot(tap.astype(jnp.bfloat16), w_ref[k],
                                preferred_element_type=jnp.float32)
        return acc

    h = jnp.maximum(conv(x, w1_ref), 0.0)                   # conv1 + ReLU (f32 accumulate)
    y = conv(h, w2_ref)                                     # conv2
    o_ref[...] = (x + y).astype(o_ref.dtype)                # residual add in f32


def prepare_weights(w1_torch, w2_torch):
    """PyTorch (C_out, C_in, K) weights -> (K, C_in_p, C_out_p) bf16, lane-dense.

    Call once at model-load time (hoisted out of the per-call path)."""
    C = w1_torch.shape[0]
    Cp = _round_up(C, LANE)

    def prep(w):
        w = jnp.transpose(w, (2, 1, 0))                     # (K, C_in, C_out)
        w = jnp.pad(w, ((0, 0), (0, Cp - C), (0, Cp - C)))  # lane-dense channels
        return w.astype(jnp.bfloat16)

    return prep(w1_torch), prep(w2_torch)


def resnet1d_block_cl(x_cl, w1k, w2k, *, batch_tile=8):
    """Channels-last entry point: x_cl (B, L, C) f32 -> (B, L, C) f32.

    In a full model, keep activations channels-last across blocks and call this
    directly so the NCL<->NLC transposes are never paid per block."""
    B, L, C = x_cl.shape
    K, Cp, _ = w1k.shape

    # Lane-dense channels (e.g. nc=1025 -> 1152); zero-padded channels are inert.
    if Cp != C:
        x_cl = jnp.pad(x_cl, ((0, 0), (0, 0), (0, Cp - C)))
    # Pad batch to a multiple of the batch tile; padded rows are dropped below.
    Bp = _round_up(B, batch_tile)
    if Bp != B:
        x_cl = jnp.pad(x_cl, ((0, Bp - B), (0, 0), (0, 0)))

    mt = batch_tile * L                                     # matmul M rows per grid step
    x2 = x_cl.reshape(Bp * L, Cp)

    out2 = pl.pallas_call(
        functools.partial(resnet1d_kernel, seq_len=L),
        out_shape=jax.ShapeDtypeStruct((Bp * L, Cp), x_cl.dtype),
        grid_spec=pltpu.PrefetchScalarGridSpec(
            num_scalar_prefetch=0,
            grid=(Bp // batch_tile,),
            in_specs=[
                pl.BlockSpec((mt, Cp), lambda i: (i, 0)),
                # Weights are grid-invariant (constant index map -> fetched once).
                # TODO(synk): for production nc=1025, add a C_out grid axis
                # (weight blocks (K, Cp, tco)) and pipeline_mode=pl.Buffered(1) so
                # both weights fit v7x's 64 MiB VMEM.
                pl.BlockSpec((K, Cp, Cp), lambda i: (0, 0, 0)),
                pl.BlockSpec((K, Cp, Cp), lambda i: (0, 0, 0)),
            ],
            out_specs=pl.BlockSpec((mt, Cp), lambda i: (i, 0)),
        ),
        compiler_params=pltpu.CompilerParams(
            # Batch tiles are independent -> shard across v7x's two TensorCores.
            dimension_semantics=("parallel",),
            # >= default scoped limit on v5e/v6e/v7x; raise further for real nc=1025.
            vmem_limit_bytes=32 * 1024 * 1024,
        ),
    )(x2, w1k, w2k)

    out = out2.reshape(Bp, L, Cp)
    return out[:B, :, :C]


def resnet1d_forward(x_ncl, w1_torch, w2_torch, *, batch_tile=8):
    """PyTorch-layout convenience wrapper: x (B, C, L), weights (C_out, C_in, K)."""
    w1k, w2k = prepare_weights(w1_torch, w2_torch)          # hoist to load-time in real use
    x_cl = jnp.transpose(x_ncl, (0, 2, 1))                  # NCL -> NLC
    out_cl = resnet1d_block_cl(x_cl, w1k, w2k, batch_tile=batch_tile)
    return jnp.transpose(out_cl, (0, 2, 1))                 # back to NCL


def resnet1d_reference(x_ncl, w1, w2, pad):
    """Pure-JAX f32 reference matching the PyTorch forward."""
    dn = ("NCH", "OIH", "NCH")
    h = lax.conv_general_dilated(x_ncl, w1, window_strides=(1,),
                                 padding=[(pad, pad)], dimension_numbers=dn)
    h = jnp.maximum(h, 0.0)
    y = lax.conv_general_dilated(h, w2, window_strides=(1,),
                                 padding=[(pad, pad)], dimension_numbers=dn)
    return x_ncl + y


if __name__ == "__main__":
    K, PAD = 5, 2
    key = jax.random.PRNGKey(0)

    def run_case(B, C, L, batch_tile):
        kx, k1, k2 = jax.random.split(jax.random.fold_in(key, B * 1000 + C), 3)
        x = jax.random.normal(kx, (B, C, L), dtype=jnp.float32)
        # PyTorch Conv1d weight layout: (C_out, C_in, K)
        scale = 1.0 / jnp.sqrt(C * K)
        w1 = jax.random.normal(k1, (C, C, K), dtype=jnp.float32) * scale
        w2 = jax.random.normal(k2, (C, C, K), dtype=jnp.float32) * scale

        out = jax.block_until_ready(
            resnet1d_forward(x, w1, w2, batch_tile=batch_tile))
        ref = resnet1d_reference(x, w1, w2, PAD)
        assert out.shape == (B, C, L)
        # bf16 MXU operands with f32 accumulation -> loose tolerance vs f32 reference.
        err = jnp.max(jnp.abs(out - ref))
        assert jnp.allclose(out, ref, atol=5e-2, rtol=5e-2), (
            f"mismatch vs reference, max abs err = {err:.4f}")

    # Main config: batch folded into the MXU M dim (Bt*L = 128 rows per grid step).
    # (module default nc=1025 scaled down to 128 channels for the test)
    run_case(B=16, C=128, L=16, batch_tile=8)
    # Ragged config: exercises channel padding (120 -> 128, cf. nc=1025 -> 1152)
    # and batch padding (2 -> 8).
    run_case(B=2, C=120, L=16, batch_tile=8)

    print("KERNEL_OK")
</pallas_src>

<mosaic_0001>
module attributes {stable_mosaic.version = 11 : i64} {
  func.func @resnet1d_kernel(%arg0: i32, %arg1: memref<128x128xf32, #tpu.memory_space<vmem>>, %arg2: memref<5x128x128xbf16, #tpu.memory_space<vmem>>, %arg3: memref<5x128x128xbf16, #tpu.memory_space<vmem>>, %arg4: memref<128x128xf32, #tpu.memory_space<vmem>>) attributes {dimension_semantics = [#tpu.dimension_semantics<parallel>], iteration_bounds = array<i64: 2>, scalar_prefetch = 0 : i64, scratch_operands = 0 : i64, tpu.core_type = #tpu.core_type<tc>, window_params = [{transform_indices = @transform_0, window_bounds = array<i64: 128, 128>}, {pipeline_mode = #tpu.pipeline_mode<synchronous>, transform_indices = @transform_1, window_bounds = array<i64: 5, 128, 128>}, {pipeline_mode = #tpu.pipeline_mode<synchronous>, transform_indices = @transform_2, window_bounds = array<i64: 5, 128, 128>}, {transform_indices = @transform_3, window_bounds = array<i64: 128, 128>}]} {
    %c0 = arith.constant 0 : index
    %c0_0 = arith.constant 0 : index
    %0 = vector.load %arg1[%c0, %c0_0] : memref<128x128xf32, #tpu.memory_space<vmem>>, vector<128x128xf32>
    %1 = tpu.iota {dimensions = array<i32: 0>} : vector<128x1xi32>
    %c16_i32 = arith.constant 16 : i32
    %c0_i32 = arith.constant 0 : i32
    %2 = arith.cmpi eq, %c16_i32, %c0_i32 : i32
    %c1_i32 = arith.constant 1 : i32
    %3 = arith.select %2, %c1_i32, %c16_i32 : i32
    %4 = vector.broadcast %3 : i32 to vector<128x1xi32>
    %5 = arith.remsi %1, %4 : vector<128x1xi32>
    %c0_i32_1 = arith.constant 0 : i32
    %6 = vector.broadcast %c0_i32_1 : i32 to vector<128x1xi32>
    %7 = arith.cmpi ne, %5, %6 : vector<128x1xi32>
    %c0_i32_2 = arith.constant 0 : i32
    %8 = vector.broadcast %c0_i32_2 : i32 to vector<128x1xi32>
    %9 = arith.cmpi slt, %5, %8 : vector<128x1xi32>
    %c0_i32_3 = arith.constant 0 : i32
    %10 = arith.cmpi slt, %3, %c0_i32_3 : i32
    %11 = vector.broadcast %10 : i1 to vector<128x1xi1>
    %12 = vector.broadcast %11 : vector<128x1xi1> to vector<128x1xi1>
    %13 = arith.xori %9, %12 : vector<128x1xi1>
    %14 = arith.andi %13, %7 : vector<128x1xi1>
    %15 = vector.broadcast %3 : i32 to vector<128x1xi32>
    %16 = arith.addi %5, %15 : vector<128x1xi32>
    %17 = arith.select %14, %16, %5 : vector<128x1xi1>, vector<128x1xi32>
    %c-2_i32 = arith.constant -2 : i32
    %18 = vector.broadcast %c-2_i32 : i32 to vector<128x1xi32>
    %19 = arith.addi %17, %18 : vector<128x1xi32>
    %c0_i32_4 = arith.constant 0 : i32
    %20 = vector.broadcast %c0_i32_4 : i32 to vector<128x1xi32>
    %21 = arith.cmpi sge, %19, %20 : vector<128x1xi32>
    %c-2_i32_5 = arith.constant -2 : i32
    %22 = vector.broadcast %c-2_i32_5 : i32 to vector<128x1xi32>
    %23 = arith.addi %17, %22 : vector<128x1xi32>
    %c16_i32_6 = arith.constant 16 : i32
    %24 = vector.broadcast %c16_i32_6 : i32 to vector<128x1xi32>
    %25 = arith.cmpi slt, %23, %24 : vector<128x1xi32>
    %26 = arith.andi %21, %25 : vector<128x1xi1>
    %c-1_i32 = arith.constant -1 : i32
    %27 = vector.broadcast %c-1_i32 : i32 to vector<128x1xi32>
    %28 = arith.addi %17, %27 : vector<128x1xi32>
    %c0_i32_7 = arith.constant 0 : i32
    %29 = vector.broadcast %c0_i32_7 : i32 to vector<128x1xi32>
    %30 = arith.cmpi sge, %28, %29 : vector<128x1xi32>
    %c-1_i32_8 = arith.constant -1 : i32
    %31 = vector.broadcast %c-1_i32_8 : i32 to vector<128x1xi32>
    %32 = arith.addi %17, %31 : vector<128x1xi32>
    %c16_i32_9 = arith.constant 16 : i32
    %33 = vector.broadcast %c16_i32_9 : i32 to vector<128x1xi32>
    %34 = arith.cmpi slt, %32, %33 : vector<128x1xi32>
    %35 = arith.andi %30, %34 : vector<128x1xi1>
    %c1_i32_10 = arith.constant 1 : i32
    %36 = vector.broadcast %c1_i32_10 : i32 to vector<128x1xi32>
    %37 = arith.addi %17, %36 : vector<128x1xi32>
    %c0_i32_11 = arith.constant 0 : i32
    %38 = vector.broadcast %c0_i32_11 : i32 to vector<128x1xi32>
    %39 = arith.cmpi sge, %37, %38 : vector<128x1xi32>
    %c1_i32_12 = arith.constant 1 : i32
    %40 = vector.broadcast %c1_i32_12 : i32 to vector<128x1xi32>
    %41 = arith.addi %17, %40 : vector<128x1xi32>
    %c16_i32_13 = arith.constant 16 : i32
    %42 = vector.broadcast %c16_i32_13 : i32 to vector<128x1xi32>
    %43 = arith.cmpi slt, %41, %42 : vector<128x1xi32>
    %44 = arith.andi %39, %43 : vector<128x1xi1>
    %c2_i32 = arith.constant 2 : i32
    %45 = vector.broadcast %c2_i32 : i32 to vector<128x1xi32>
    %46 = arith.addi %17, %45 : vector<128x1xi32>
    %c0_i32_14 = arith.constant 0 : i32
    %47 = vector.broadcast %c0_i32_14 : i32 to vector<128x1xi32>
    %48 = arith.cmpi sge, %46, %47 : vector<128x1xi32>
    %c2_i32_15 = arith.constant 2 : i32
    %49 = vector.broadcast %c2_i32_15 : i32 to vector<128x1xi32>
    %50 = arith.addi %17, %49 : vector<128x1xi32>
    %c16_i32_16 = arith.constant 16 : i32
    %51 = vector.broadcast %c16_i32_16 : i32 to vector<128x1xi32>
    %52 = arith.cmpi slt, %50, %51 : vector<128x1xi32>
    %53 = arith.andi %48, %52 : vector<128x1xi1>
    %cst = arith.constant 0.000000e+00 : f32
    %54 = vector.broadcast %cst : f32 to vector<128x128xf32>
    %c2_i32_17 = arith.constant 2 : i32
    %55 = tpu.dynamic_rotate %0 by %c2_i32_17 dim 0 : vector<128x128xf32>, i32 -> vector<128x128xf32>
    %cst_18 = arith.constant 0.000000e+00 : f32
    %56 = vector.shape_cast %26 : vector<128x1xi1> to vector<128x1xi1>
    %57 = vector.broadcast %56 : vector<128x1xi1> to vector<128x128xi1>
    %58 = vector.broadcast %cst_18 : f32 to vector<128x128xf32>
    %59 = arith.select %57, %55, %58 : vector<128x128xi1>, vector<128x128xf32>
    %60 = arith.truncf %59 : vector<128x128xf32> to vector<128x128xbf16>
    %c0_19 = arith.constant 0 : index
    %c0_20 = arith.constant 0 : index
    %c0_21 = arith.constant 0 : index
    %61 = vector.load %arg2[%c0_19, %c0_20, %c0_21] : memref<5x128x128xbf16, #tpu.memory_space<vmem>>, vector<1x128x128xbf16>
    %62 = vector.shape_cast %61 : vector<1x128x128xbf16> to vector<128x128xbf16>
    %cst_22 = arith.constant dense<0.000000e+00> : vector<128x128xf32>
    %63 = tpu.matmul %60, %62, %cst_22 {dimension_numbers = #tpu.dot_dimension_numbers<[1], [0], [0], [1], [0, 0, 1, 1], [], []>} : vector<128x128xbf16>, vector<128x128xbf16>, vector<128x128xf32> -> vector<128x128xf32>
    %64 = arith.addf %54, %63 : vector<128x128xf32>
    %c1_i32_23 = arith.constant 1 : i32
    %65 = tpu.dynamic_rotate %0 by %c1_i32_23 dim 0 : vector<128x128xf32>, i32 -> vector<128x128xf32>
    %cst_24 = arith.constant 0.000000e+00 : f32
    %66 = vector.shape_cast %35 : vector<128x1xi1> to vector<128x1xi1>
    %67 = vector.broadcast %66 : vector<128x1xi1> to vector<128x128xi1>
    %68 = vector.broadcast %cst_24 : f32 to vector<128x128xf32>
    %69 = arith.select %67, %65, %68 : vector<128x128xi1>, vector<128x128xf32>
    %70 = arith.truncf %69 : vector<128x128xf32> to vector<128x128xbf16>
    %c1 = arith.constant 1 : index
    %c0_25 = arith.constant 0 : index
    %c0_26 = arith.constant 0 : index
    %71 = vector.load %arg2[%c1, %c0_25, %c0_26] : memref<5x128x128xbf16, #tpu.memory_space<vmem>>, vector<1x128x128xbf16>
    %72 = vector.shape_cast %71 : vector<1x128x128xbf16> to vector<128x128xbf16>
    %cst_27 = arith.constant dense<0.000000e+00> : vector<128x128xf32>
    %73 = tpu.matmul %70, %72, %cst_27 {dimension_numbers = #tpu.dot_dimension_numbers<[1], [0], [0], [1], [0, 0, 1, 1], [], []>} : vector<128x128xbf16>, vector<128x128xbf16>, vector<128x128xf32> -> vector<128x128xf32>
    %74 = arith.addf %64, %73 : vector<128x128xf32>
    %75 = arith.truncf %0 : vector<128x128xf32> to vector<128x128xbf16>
    %c2 = arith.constant 2 : index
    %c0_28 = arith.constant 0 : index
    %c0_29 = arith.constant 0 : index
    %76 = vector.load %arg2[%c2, %c0_28, %c0_29] : memref<5x128x128xbf16, #tpu.memory_space<vmem>>, vector<1x128x128xbf16>
    %77 = vector.shape_cast %76 : vector<1x128x128xbf16> to vector<128x128xbf16>
    %cst_30 = arith.constant dense<0.000000e+00> : vector<128x128xf32>
    %78 = tpu.matmul %75, %77, %cst_30 {dimension_numbers = #tpu.dot_dimension_numbers<[1], [0], [0], [1], [0, 0, 1, 1], [], []>} : vector<128x128xbf16>, vector<128x128xbf16>, vector<128x128xf32> -> vector<128x128xf32>
    %79 = arith.addf %74, %78 : vector<128x128xf32>
    %c127_i32 = arith.constant 127 : i32
    %80 = tpu.dynamic_rotate %0 by %c127_i32 dim 0 : vector<128x128xf32>, i32 -> vector<128x128xf32>
    %cst_31 = arith.constant 0.000000e+00 : f32
    %81 = vector.shape_cast %44 : vector<128x1xi1> to vector<128x1xi1>
    %82 = vector.broadcast %81 : vector<128x1xi1> to vector<128x128xi1>
    %83 = vector.broadcast %cst_31 : f32 to vector<128x128xf32>
    %84 = arith.select %82, %80, %83 : vector<128x128xi1>, vector<128x128xf32>
    %85 = arith.truncf %84 : vector<128x128xf32> to vector<128x128xbf16>
    %c3 = arith.constant 3 : index
    %c0_32 = arith.constant 0 : index
    %c0_33 = arith.constant 0 : index
    %86 = vector.load %arg2[%c3, %c0_32, %c0_33] : memref<5x128x128xbf16, #tpu.memory_space<vmem>>, vector<1x128x128xbf16>
    %87 = vector.shape_cast %86 : vector<1x128x128xbf16> to vector<128x128xbf16>
    %cst_34 = arith.constant dense<0.000000e+00> : vector<128x128xf32>
    %88 = tpu.matmul %85, %87, %cst_34 {dimension_numbers = #tpu.dot_dimension_numbers<[1], [0], [0], [1], [0, 0, 1, 1], [], []>} : vector<128x128xbf16>, vector<128x128xbf16>, vector<128x128xf32> -> vector<128x128xf32>
    %89 = arith.addf %79, %88 : vector<128x128xf32>
    %c126_i32 = arith.constant 126 : i32
    %90 = tpu.dynamic_rotate %0 by %c126_i32 dim 0 : vector<128x128xf32>, i32 -> vector<128x128xf32>
    %cst_35 = arith.constant 0.000000e+00 : f32
    %91 = vector.shape_cast %53 : vector<128x1xi1> to vector<128x1xi1>
    %92 = vector.broadcast %91 : vector<128x1xi1> to vector<128x128xi1>
    %93 = vector.broadcast %cst_35 : f32 to vector<128x128xf32>
    %94 = arith.select %92, %90, %93 : vector<128x128xi1>, vector<128x128xf32>
    %95 = arith.truncf %94 : vector<128x128xf32> to vector<128x128xbf16>
    %c4 = arith.constant 4 : index
    %c0_36 = arith.constant 0 : index
    %c0_37 = arith.constant 0 : index
    %96 = vector.load %arg2[%c4, %c0_36, %c0_37] : memref<5x128x128xbf16, #tpu.memory_space<vmem>>, vector<1x128x128xbf16>
    %97 = vector.shape_cast %96 : vector<1x128x128xbf16> to vector<128x128xbf16>
    %cst_38 = arith.constant dense<0.000000e+00> : vector<128x128xf32>
    %98 = tpu.matmul %95, %97, %cst_38 {dimension_numbers = #tpu.dot_dimension_numbers<[1], [0], [0], [1], [0, 0, 1, 1], [], []>} : vector<128x128xbf16>, vector<128x128xbf16>, vector<128x128xf32> -> vector<128x128xf32>
    %99 = arith.addf %89, %98 : vector<128x128xf32>
    %cst_39 = arith.constant 0.000000e+00 : f32
    %100 = vector.broadcast %cst_39 : f32 to vector<128x128xf32>
    %101 = arith.maximumf %99, %100 : vector<128x128xf32>
    %cst_40 = arith.constant 0.000000e+00 : f32
    %102 = vector.broadcast %cst_40 : f32 to vector<128x128xf32>
    %c2_i32_41 = arith.constant 2 : i32
    %103 = tpu.dynamic_rotate %101 by %c2_i32_41 dim 0 : vector<128x128xf32>, i32 -> vector<128x128xf32>
    %cst_42 = arith.constant 0.000000e+00 : f32
    %104 = vector.shape_cast %26 : vector<128x1xi1> to vector<128x1xi1>
    %105 = vector.broadcast %104 : vector<128x1xi1> to vector<128x128xi1>
    %106 = vector.broadcast %cst_42 : f32 to vector<128x128xf32>
    %107 = arith.select %105, %103, %106 : vector<128x128xi1>, vector<128x128xf32>
    %108 = arith.truncf %107 : vector<128x128xf32> to vector<128x128xbf16>
    %c0_43 = arith.constant 0 : index
    %c0_44 = arith.constant 0 : index
    %c0_45 = arith.constant 0 : index
    %109 = vector.load %arg3[%c0_43, %c0_44, %c0_45] : memref<5x128x128xbf16, #tpu.memory_space<vmem>>, vector<1x128x128xbf16>
    %110 = vector.shape_cast %109 : vector<1x128x128xbf16> to vector<128x128xbf16>
    %cst_46 = arith.constant dense<0.000000e+00> : vector<128x128xf32>
    %111 = tpu.matmul %108, %110, %cst_46 {dimension_numbers = #tpu.dot_dimension_numbers<[1], [0], [0], [1], [0, 0, 1, 1], [], []>} : vector<128x128xbf16>, vector<128x128xbf16>, vector<128x128xf32> -> vector<128x128xf32>
    %112 = arith.addf %102, %111 : vector<128x128xf32>
    %c1_i32_47 = arith.constant 1 : i32
    %113 = tpu.dynamic_rotate %101 by %c1_i32_47 dim 0 : vector<128x128xf32>, i32 -> vector<128x128xf32>
    %cst_48 = arith.constant 0.000000e+00 : f32
    %114 = vector.shape_cast %35 : vector<128x1xi1> to vector<128x1xi1>
    %115 = vector.broadcast %114 : vector<128x1xi1> to vector<128x128xi1>
    %116 = vector.broadcast %cst_48 : f32 to vector<128x128xf32>
    %117 = arith.select %115, %113, %116 : vector<128x128xi1>, vector<128x128xf32>
    %118 = arith.truncf %117 : vector<128x128xf32> to vector<128x128xbf16>
    %c1_49 = arith.constant 1 : index
    %c0_50 = arith.constant 0 : index
    %c0_51 = arith.constant 0 : index
    %119 = vector.load %arg3[%c1_49, %c0_50, %c0_51] : memref<5x128x128xbf16, #tpu.memory_space<vmem>>, vector<1x128x128xbf16>
    %120 = vector.shape_cast %119 : vector<1x128x128xbf16> to vector<128x128xbf16>
    %cst_52 = arith.constant dense<0.000000e+00> : vector<128x128xf32>
    %121 = tpu.matmul %118, %120, %cst_52 {dimension_numbers = #tpu.dot_dimension_numbers<[1], [0], [0], [1], [0, 0, 1, 1], [], []>} : vector<128x128xbf16>, vector<128x128xbf16>, vector<128x128xf32> -> vector<128x128xf32>
    %122 = arith.addf %112, %121 : vector<128x128xf32>
    %123 = arith.truncf %101 : vector<128x128xf32> to vector<128x128xbf16>
    %c2_53 = arith.constant 2 : index
    %c0_54 = arith.constant 0 : index
    %c0_55 = arith.constant 0 : index
    %124 = vector.load %arg3[%c2_53, %c0_54, %c0_55] : memref<5x128x128xbf16, #tpu.memory_space<vmem>>, vector<1x128x128xbf16>
    %125 = vector.shape_cast %124 : vector<1x128x128xbf16> to vector<128x128xbf16>
    %cst_56 = arith.constant dense<0.000000e+00> : vector<128x128xf32>
    %126 = tpu.matmul %123, %125, %cst_56 {dimension_numbers = #tpu.dot_dimension_numbers<[1], [0], [0], [1], [0, 0, 1, 1], [], []>} : vector<128x128xbf16>, vector<128x128xbf16>, vector<128x128xf32> -> vector<128x128xf32>
    %127 = arith.addf %122, %126 : vector<128x128xf32>
    %c127_i32_57 = arith.constant 127 : i32
    %128 = tpu.dynamic_rotate %101 by %c127_i32_57 dim 0 : vector<128x128xf32>, i32 -> vector<128x128xf32>
    %cst_58 = arith.constant 0.000000e+00 : f32
    %129 = vector.shape_cast %44 : vector<128x1xi1> to vector<128x1xi1>
    %130 = vector.broadcast %129 : vector<128x1xi1> to vector<128x128xi1>
    %131 = vector.broadcast %cst_58 : f32 to vector<128x128xf32>
    %132 = arith.select %130, %128, %131 : vector<128x128xi1>, vector<128x128xf32>
    %133 = arith.truncf %132 : vector<128x128xf32> to vector<128x128xbf16>
    %c3_59 = arith.constant 3 : index
    %c0_60 = arith.constant 0 : index
    %c0_61 = arith.constant 0 : index
    %134 = vector.load %arg3[%c3_59, %c0_60, %c0_61] : memref<5x128x128xbf16, #tpu.memory_space<vmem>>, vector<1x128x128xbf16>
    %135 = vector.shape_cast %134 : vector<1x128x128xbf16> to vector<128x128xbf16>
    %cst_62 = arith.constant dense<0.000000e+00> : vector<128x128xf32>
    %136 = tpu.matmul %133, %135, %cst_62 {dimension_numbers = #tpu.dot_dimension_numbers<[1], [0], [0], [1], [0, 0, 1, 1], [], []>} : vector<128x128xbf16>, vector<128x128xbf16>, vector<128x128xf32> -> vector<128x128xf32>
    %137 = arith.addf %127, %136 : vector<128x128xf32>
    %c126_i32_63 = arith.constant 126 : i32
    %138 = tpu.dynamic_rotate %101 by %c126_i32_63 dim 0 : vector<128x128xf32>, i32 -> vector<128x128xf32>
    %cst_64 = arith.constant 0.000000e+00 : f32
    %139 = vector.shape_cast %53 : vector<128x1xi1> to vector<128x1xi1>
    %140 = vector.broadcast %139 : vector<128x1xi1> to vector<128x128xi1>
    %141 = vector.broadcast %cst_64 : f32 to vector<128x128xf32>
    %142 = arith.select %140, %138, %141 : vector<128x128xi1>, vector<128x128xf32>
    %143 = arith.truncf %142 : vector<128x128xf32> to vector<128x128xbf16>
    %c4_65 = arith.constant 4 : index
    %c0_66 = arith.constant 0 : index
    %c0_67 = arith.constant 0 : index
    %144 = vector.load %arg3[%c4_65, %c0_66, %c0_67] : memref<5x128x128xbf16, #tpu.memory_space<vmem>>, vector<1x128x128xbf16>
    %145 = vector.shape_cast %144 : vector<1x128x128xbf16> to vector<128x128xbf16>
    %cst_68 = arith.constant dense<0.000000e+00> : vector<128x128xf32>
    %146 = tpu.matmul %143, %145, %cst_68 {dimension_numbers = #tpu.dot_dimension_numbers<[1], [0], [0], [1], [0, 0, 1, 1], [], []>} : vector<128x128xbf16>, vector<128x128xbf16>, vector<128x128xf32> -> vector<128x128xf32>
    %147 = arith.addf %137, %146 : vector<128x128xf32>
    %148 = arith.addf %0, %147 : vector<128x128xf32>
    %c0_69 = arith.constant 0 : index
    %c0_70 = arith.constant 0 : index
    %149 = vector.load %arg4[%c0_69, %c0_70] : memref<128x128xf32, #tpu.memory_space<vmem>>, vector<128x128xf32>
    tpu.vector_store %arg4[%c0_69, %c0_70], %148 {strides = array<i32>} : memref<128x128xf32, #tpu.memory_space<vmem>>, vector<128x128xf32>,
    return
  }
  func.func @transform_0(%arg0: i32) -> (i32, i32) {
    %c0_i32 = arith.constant 0 : i32
    %c0_i32_0 = arith.constant 0 : i32
    return %arg0, %c0_i32 : i32, i32
  }
  func.func @transform_1(%arg0: i32) -> (i32, i32, i32) {
    %c0_i32 = arith.constant 0 : i32
    %c0_i32_0 = arith.constant 0 : i32
    %c0_i32_1 = arith.constant 0 : i32
    %c0_i32_2 = arith.constant 0 : i32
    return %c0_i32, %c0_i32_0, %c0_i32_1 : i32, i32, i32
  }
  func.func @transform_2(%arg0: i32) -> (i32, i32, i32) {
    %c0_i32 = arith.constant 0 : i32
    %c0_i32_0 = arith.constant 0 : i32
    %c0_i32_1 = arith.constant 0 : i32
    %c0_i32_2 = arith.constant 0 : i32
    return %c0_i32, %c0_i32_0, %c0_i32_1 : i32, i32, i32
  }
  func.func @transform_3(%arg0: i32) -> (i32, i32) {
    %c0_i32 = arith.constant 0 : i32
    %c0_i32_0 = arith.constant 0 : i32
    return %arg0, %c0_i32 : i32, i32
  }
}

</mosaic_0001>

<llo_original>
// kernel: tpu_custom_call.1
$region0: #{tpu_custom_call.1}
  #allocation0 [shape = 'u32[]', space=smem, size = 0x4, offset = 0x4, fixed_abs, tag = 'smem constant byte address 0x4 - core index']
  #allocation1 [shape = 'u32[144,128]{1,0:T(1,128)}', space=vmem, size = 0x12000, scoped, tag = 'internal scratch']
  %s0 = inlined_call_operand.hbm [shape: f32[256,128], index: 0, kind: input, shape index: {}]
  %s1 = inlined_call_operand.hbm [shape: bf16[5,128,128], index: 1, kind: input, shape index: {}]
  %s2 = inlined_call_operand.hbm [shape: bf16[5,128,128], index: 2, kind: input, shape index: {}]
  %s3 = inlined_call_operand.hbm [shape: f32[256,128], index: 3, kind: output, shape index: {}]
  %s4 = sld [smem:[#allocation0]]
  $region57: #{tpu_custom_call.1} parent=0
    _
  %s6 = ssub.s32 1, %s4
  %s7 = scalar_select 0, %s6, %s4
  $region1: #{tpu_custom_call.1} parent=0
    #allocation2 [shape = 'u8[131072]{0}', space=vmem, size = 0x20000, scoped, tag = 'input window, operand 0']
    #allocation3 [shape = 's32[2]{0}', space=sflag, size = 0x8, scoped, tag = 'scoped memory for tpu_custom_call.1']
    #allocation4 [shape = 's32[2]{0}', space=sflag, size = 0x8, scoped, tag = 'scoped memory for tpu_custom_call.1']
    #allocation5 [shape = 'u8[163840]{0}', space=vmem, size = 0x28000, scoped, tag = 'input window, operand 1, single buffered']
    #allocation6 [shape = 's32[1]{0}', space=sflag, size = 0x4, scoped, tag = 'scoped memory for tpu_custom_call.1']
    #allocation7 [shape = 'u8[163840]{0}', space=vmem, size = 0x28000, scoped, tag = 'input window, operand 2, single buffered']
    #allocation8 [shape = 'u8[131072]{0}', space=vmem, size = 0x20000, scoped, tag = 'output window, operand 0']
    %8 = vsyncpa [#allocation3], 0
    %s9 = scalar_lea.sflag [#allocation3], 1
    %10 = vsyncpa %s9, 0
    %11 = vsyncpa [#allocation6], 0
    %12 = vsyncpa [#allocation4], 0
    %s13 = scalar_lea.sflag [#allocation4], 1
    %14 = vsyncpa %s13, 0
    loop: start=0, step=1, limit=4
    $region2: #{tpu_custom_call.1} parent=1 // loop_pre_header
      _
    $region3: #{tpu_custom_call.1} parent=1 // loop_header
      %s16 = sphi 0, %s20
      %p17 = scmp.ge.s32.totalorder %s16, 4
      %s26 = sphi 0, %s28
      %s29 = sphi 0, %s26
      %s30 = sphi 0, %s29
      %s46 = sphi 0, %s30
      %s50 = sphi 0, %s50
      %s52 = sphi 0, %s50
      %s53 = sphi 0, %s52
      %s67 = sphi 0, %s53
      %s71 = sphi 0, %s71
      %s73 = sphi 0, %s71
      %s74 = sphi 0, %s73
      %s88 = sphi 0, %s74
      %s94 = sphi 0, %s96
      %s97 = sphi 0, %s94
      %s98 = sphi 0, %s97
      %s114 = sphi 0, %s98
    $region4: #{tpu_custom_call.1} parent=1 // loop_header_branch
      %19 = sbr.rel (%p17) target = $region8
    $region5: #{tpu_custom_call.1} parent=1 // loop_body
      %s21 = ssub.s32 %s16, 1
      %s22 = ssub.s32 %s16, 2
      %s23 = sadd.s32 %s16, 1
      %s24 = ssub.s32 %s16, %s23
      %p25 = scmp.eq.s32.totalorder %s24, 0
      %s27 = sadd.s32 %s26, 1
      %s28 = scalar_select %p25, %s26, %s27
      %p31 = pneg %p25
      %p32 = scmp.eq.s32.totalorder %s16, 1
      %p33 = por %p31, %p32
      %p34 = scmp.ne.s32.totalorder %s26, %s29
      %p35 = scmp.eq.s32.totalorder %s16, 0
      %p36 = por %p34, %p35
      %p37 = scmp.ne.s32.totalorder %s26, %s29
      %p38 = scmp.eq.s32.totalorder %s21, 1
      %p39 = por %p37, %p38
      %p40 = scmp.ne.s32.totalorder %s29, %s30
      %p41 = scmp.eq.s32.totalorder %s21, 0
      %p42 = por %p40, %p41
      %p43 = scmp.ne.s32.totalorder %s29, %s30
      %p44 = scmp.eq.s32.totalorder %s22, 1
      %p45 = por %p43, %p44
      %p47 = scmp.ne.s32.totalorder %s30, %s46
      %p48 = scmp.eq.s32.totalorder %s22, 0
      %p49 = por %p47, %p48
      %s51 = sadd.s32 %s50, 1
      %p54 = scmp.eq.s32.totalorder %s16, 1
      %p55 = scmp.ne.s32.totalorder %s50, %s52
      %p56 = scmp.eq.s32.totalorder %s16, 0
      %p57 = por %p55, %p56
      %p58 = scmp.ne.s32.totalorder %s50, %s52
      %p59 = scmp.eq.s32.totalorder %s21, 1
      %p60 = por %p58, %p59
      %p61 = scmp.ne.s32.totalorder %s52, %s53
      %p62 = scmp.eq.s32.totalorder %s21, 0
      %p63 = por %p61, %p62
      %p64 = scmp.ne.s32.totalorder %s52, %s53
      %p65 = scmp.eq.s32.totalorder %s22, 1
      %p66 = por %p64, %p65
      %p68 = scmp.ne.s32.totalorder %s53, %s67
      %p69 = scmp.eq.s32.totalorder %s22, 0
      %p70 = por %p68, %p69
      %s72 = sadd.s32 %s71, 1
      %p75 = scmp.eq.s32.totalorder %s16, 1
      %p76 = scmp.ne.s32.totalorder %s71, %s73
      %p77 = scmp.eq.s32.totalorder %s16, 0
      %p78 = por %p76, %p77
      %p79 = scmp.ne.s32.totalorder %s71, %s73
      %p80 = scmp.eq.s32.totalorder %s21, 1
      %p81 = por %p79, %p80
      %p82 = scmp.ne.s32.totalorder %s73, %s74
      %p83 = scmp.eq.s32.totalorder %s21, 0
      %p84 = por %p82, %p83
      %p85 = scmp.ne.s32.totalorder %s73, %s74
      %p86 = scmp.eq.s32.totalorder %s22, 1
      %p87 = por %p85, %p86
      %p89 = scmp.ne.s32.totalorder %s74, %s88
      %p90 = scmp.eq.s32.totalorder %s22, 0
      %p91 = por %p89, %p90
      %s92 = ssub.s32 %s16, %s23
      %p93 = scmp.eq.s32.totalorder %s92, 0
      %s95 = sadd.s32 %s94, 1
      %s96 = scalar_select %p93, %s94, %s95
      %p99 = pneg %p93
      %p100 = scmp.eq.s32.totalorder %s16, 1
      %p101 = por %p99, %p100
      %p102 = scmp.ne.s32.totalorder %s94, %s97
      %p103 = scmp.eq.s32.totalorder %s16, 0
      %p104 = por %p102, %p103
      %p105 = scmp.ne.s32.totalorder %s94, %s97
      %p106 = scmp.eq.s32.totalorder %s21, 1
      %p107 = por %p105, %p106
      %p108 = scmp.ne.s32.totalorder %s97, %s98
      %p109 = scmp.eq.s32.totalorder %s21, 0
      %p110 = por %p108, %p109
      %p111 = scmp.ne.s32.totalorder %s97, %s98
      %p112 = scmp.eq.s32.totalorder %s22, 1
      %p113 = por %p111, %p112
      %p115 = scmp.ne.s32.totalorder %s98, %s114
      %p116 = scmp.eq.s32.totalorder %s22, 0
      %p117 = por %p115, %p116
      %p118 = scmp.le.s32.totalorder 1, %s16
      %p119 = scmp.lt.s32.totalorder %s16, 3
      %p120 = pnand %p118, %p119
      %p121 = pneg %p120
      // Predicated region
      $region9: #{tpu_custom_call.1} parent=5 // pred_check
        _
      $region10: #{tpu_custom_call.1} parent=5 // pred_check_branch
        %123 = sbr.rel (%p120) target = $region12
      $region11: #{tpu_custom_call.1} parent=5 // pred_region
        %s124 = ssub.s32 %s16, 1
        // Predicated region
        $region13: #{tpu_custom_call.1} parent=11 // pred_check
          %p125 = pneg %p63
        $region14: #{tpu_custom_call.1} parent=11 // pred_check_branch
          %127 = sbr.rel (%p125) target = $region16
        $region15: #{tpu_custom_call.1} parent=11 // pred_region
          %s129 = ssub.s32 5120, 5120
          %130 = vsyncadd [#allocation6], %s129
          %s131 = sshll.u32 [#allocation5], 4
          %s132 = int_to_ptr.vmem [resolvable:$true] %s131
          %137 = dma.hbm_to_vmem [thread:$0]  %s1, 5120, %s132, [#allocation6], 64, 64, 4
        $region16: #{tpu_custom_call.1} parent=11 // pred_fallthru
          _
        // Predicated region
        $region17: #{tpu_custom_call.1} parent=11 // pred_check
          %p138 = pneg %p84
        $region18: #{tpu_custom_call.1} parent=11 // pred_check_branch
          %140 = sbr.rel (%p138) target = $region20
        $region19: #{tpu_custom_call.1} parent=11 // pred_region
          %s142 = ssub.s32 5120, 5120
          %143 = vsyncadd [#allocation6], %s142
          %s144 = sshll.u32 [#allocation7], 4
          %s145 = int_to_ptr.vmem [resolvable:$true] %s144
          %150 = dma.hbm_to_vmem [thread:$0]  %s2, 5120, %s145, [#allocation6], 64, 64, 4
        $region20: #{tpu_custom_call.1} parent=11 // pred_fallthru
          _
      $region12: #{tpu_custom_call.1} parent=5 // pred_fallthru
        _
      %p151 = scmp.lt.s32.totalorder %s16, 2
      // Predicated region
      $region21: #{tpu_custom_call.1} parent=5 // pred_check
        %p152 = pneg %p151
      $region22: #{tpu_custom_call.1} parent=5 // pred_check_branch
        %154 = sbr.rel (%p152) target = $region24
      $region23: #{tpu_custom_call.1} parent=5 // pred_region
        // Predicated region
        $region25: #{tpu_custom_call.1} parent=23 // pred_check
          %p155 = pneg %p36
        $region26: #{tpu_custom_call.1} parent=23 // pred_check_branch
          %157 = sbr.rel (%p155) target = $region28
        $region27: #{tpu_custom_call.1} parent=23 // pred_region
          %s158 = sand.u32 %s26, 1
          %s159 = scalar_lea.sflag [#allocation3], %s158
          %s160 = sand.u32 %s26, 1
          %s161 = smul.addr %s160, 128
          %s162 = scalar_lea.vmem [#allocation2], %s161
          %s163 = smul.u32 16, %s16
          %s165 = ssub.s32 2048, 2048
          %166 = vsyncadd %s159, %s165
          %s167 = smul.addr %s163, 128
          %s168 = scalar_lea.hbm %s0, %s167
          %s169 = sshll.u32 %s162, 4
          %s170 = int_to_ptr.vmem [resolvable:$true] %s169
          %175 = dma.hbm_to_vmem [thread:$0]  %s168, 2048, %s170, %s159, 128, 128, 8
        $region28: #{tpu_custom_call.1} parent=23 // pred_fallthru
          _
      $region24: #{tpu_custom_call.1} parent=5 // pred_fallthru
        _
      %p176 = scmp.le.s32.totalorder 1, %s16
      %p177 = scmp.lt.s32.totalorder %s16, 3
      %p178 = pnand %p176, %p177
      %p179 = pneg %p178
      // Predicated region
      $region29: #{tpu_custom_call.1} parent=5 // pred_check
        _
      $region30: #{tpu_custom_call.1} parent=5 // pred_check_branch
        %181 = sbr.rel (%p178) target = $region32
      $region31: #{tpu_custom_call.1} parent=5 // pred_region
        %s182 = ssub.s32 %s16, 1
        %s183 = sand.u32 %s29, 1
        %s184 = scalar_lea.sflag [#allocation3], %s183
        %s185 = sand.u32 %s29, 1
        %s186 = smul.addr %s185, 128
        %s187 = scalar_lea.vmem [#allocation2], %s186
        // Predicated region
        $region33: #{tpu_custom_call.1} parent=31 // pred_check
          %p188 = pneg %p42
        $region34: #{tpu_custom_call.1} parent=31 // pred_check_branch
          %190 = sbr.rel (%p188) target = $region36
        $region35: #{tpu_custom_call.1} parent=31 // pred_region
          %191 = dma.done %s184, 2048
        $region36: #{tpu_custom_call.1} parent=31 // pred_fallthru
          _
        // Predicated region
        $region37: #{tpu_custom_call.1} parent=31 // pred_check
          %p192 = pneg %p63
        $region38: #{tpu_custom_call.1} parent=31 // pred_check_branch
          %194 = sbr.rel (%p192) target = $region40
        $region39: #{tpu_custom_call.1} parent=31 // pred_region
          %195 = dma.done [#allocation6], 5120
        $region40: #{tpu_custom_call.1} parent=31 // pred_fallthru
          _
        // Predicated region
        $region41: #{tpu_custom_call.1} parent=31 // pred_check
          %p196 = pneg %p84
        $region42: #{tpu_custom_call.1} parent=31 // pred_check_branch
          %198 = sbr.rel (%p196) target = $region44
        $region43: #{tpu_custom_call.1} parent=31 // pred_region
          %199 = dma.done [#allocation6], 5120
        $region44: #{tpu_custom_call.1} parent=31 // pred_fallthru
          _
        %s200 = sand.u32 %s29, 1
        %s201 = scalar_lea.sflag [#allocation3], %s200
        %s202 = sand.u32 %s29, 1
        %s203 = smul.addr %s202, 128
        %s204 = scalar_lea.vmem [#allocation2], %s203
        %p205 = pneg %p42
        %p206 = pneg %p39
        %p207 = pneg %p63
        %p208 = pneg %p60
        %p209 = pneg %p84
        %p210 = pneg %p81
        %p211 = pneg %p110
        %p212 = pneg %p107
        %s213 = sand.u32 %s97, 1
        %s214 = scalar_lea.sflag [#allocation4], %s213
        %s215 = sand.u32 %s97, 1
        %s216 = smul.addr %s215, 128
        %s217 = scalar_lea.vmem [#allocation8], %s216
        %s218 = smul.u32 16, %s21
        %s219 = smul.u32 16, %s21
        %v221 = vld [vmem:[%s187] sm:$0xff]
        %v222 = vld [vmem:[%s187 + $0x8] sm:$0xff]
        %v223 = vld [vmem:[%s187 + $0x10] sm:$0xff]
        %v224 = vld [vmem:[%s187 + $0x18] sm:$0xff]
        %v225 = vld [vmem:[%s187 + $0x20] sm:$0xff]
        %v226 = vld [vmem:[%s187 + $0x28] sm:$0xff]
        %v227 = vld [vmem:[%s187 + $0x30] sm:$0xff]
        %v228 = vld [vmem:[%s187 + $0x38] sm:$0xff]
        %v229 = vld [vmem:[%s187 + $0x40] sm:$0xff]
        %v230 = vld [vmem:[%s187 + $0x48] sm:$0xff]
        %v231 = vld [vmem:[%s187 + $0x50] sm:$0xff]
        %v232 = vld [vmem:[%s187 + $0x58] sm:$0xff]
        %v233 = vld [vmem:[%s187 + $0x60] sm:$0xff]
        %v234 = vld [vmem:[%s187 + $0x68] sm:$0xff]
        %v235 = vld [vmem:[%s187 + $0x70] sm:$0xff]
        %v236 = vld [vmem:[%s187 + $0x78] sm:$0xff]
        %v237 = vlaneseq
        %v238 = vshrl.u32 %v237, 7
        %v239 = vadd.s32 %v238, 8
        %v240 = vadd.s32 %v238, 16
        %v241 = vadd.s32 %v238, 24
        %v242 = vadd.s32 %v238, 32
        %v243 = vadd.s32 %v238, 40
        %v244 = vadd.s32 %v238, 48
        %v245 = vadd.s32 %v238, 56
        %v246 = vadd.s32 %v238, 64
        %v247 = vadd.s32 %v238, 72
        %v248 = vadd.s32 %v238, 80
        %v249 = vadd.s32 %v238, 88
        %v250 = vadd.s32 %v238, 96
        %v251 = vadd.s32 %v238, 104
        %v252 = vadd.s32 %v238, 112
        %v253 = vadd.s32 %v238, 120
        %vm254 = vcmp.lt.s32.totalorder %v238, 0
        %v255 = vsub.s32 0, %v238
        %v256 = vsel %vm254, %v255, %v238
        %v257 = vshrl.u32 %v256, 4
        %v258 = vand.u32 %v256, 15
        %v259 = vsub.s32 0, %v258
        %v260 = vsel %vm254, %v259, %v258
        %vm261 = vcmp.lt.s32.totalorder %v239, 0
        %v262 = vsub.s32 0, %v239
        %v263 = vsel %vm261, %v262, %v239
        %v264 = vshrl.u32 %v263, 4
        %v265 = vand.u32 %v263, 15
        %v266 = vsub.s32 0, %v265
        %v267 = vsel %vm261, %v266, %v265
        %vm268 = vcmp.lt.s32.totalorder %v240, 0
        %v269 = vsub.s32 0, %v240
        %v270 = vsel %vm268, %v269, %v240
        %v271 = vshrl.u32 %v270, 4
        %v272 = vand.u32 %v270, 15
        %v273 = vsub.s32 0, %v272
        %v274 = vsel %vm268, %v273, %v272
        %vm275 = vcmp.lt.s32.totalorder %v241, 0
        %v276 = vsub.s32 0, %v241
        %v277 = vsel %vm275, %v276, %v241
        %v278 = vshrl.u32 %v277, 4
        %v279 = vand.u32 %v277, 15
        %v280 = vsub.s32 0, %v279
        %v281 = vsel %vm275, %v280, %v279
        %vm282 = vcmp.lt.s32.totalorder %v242, 0
        %v283 = vsub.s32 0, %v242
        %v284 = vsel %vm282, %v283, %v242
        %v285 = vshrl.u32 %v284, 4
        %v286 = vand.u32 %v284, 15
        %v287 = vsub.s32 0, %v286
        %v288 = vsel %vm282, %v287, %v286
        %vm289 = vcmp.lt.s32.totalorder %v243, 0
        %v290 = vsub.s32 0, %v243
        %v291 = vsel %vm289, %v290, %v243
        %v292 = vshrl.u32 %v291, 4
        %v293 = vand.u32 %v291, 15
        %v294 = vsub.s32 0, %v293
        %v295 = vsel %vm289, %v294, %v293
        %vm296 = vcmp.lt.s32.totalorder %v244, 0
        %v297 = vsub.s32 0, %v244
        %v298 = vsel %vm296, %v297, %v244
        %v299 = vshrl.u32 %v298, 4
        %v300 = vand.u32 %v298, 15
        %v301 = vsub.s32 0, %v300
        %v302 = vsel %vm296, %v301, %v300
        %vm303 = vcmp.lt.s32.totalorder %v245, 0
        %v304 = vsub.s32 0, %v245
        %v305 = vsel %vm303, %v304, %v245
        %v306 = vshrl.u32 %v305, 4
        %v307 = vand.u32 %v305, 15
        %v308 = vsub.s32 0, %v307
        %v309 = vsel %vm303, %v308, %v307
        %vm310 = vcmp.lt.s32.totalorder %v246, 0
        %v311 = vsub.s32 0, %v246
        %v312 = vsel %vm310, %v311, %v246
        %v313 = vshrl.u32 %v312, 4
        %v314 = vand.u32 %v312, 15
        %v315 = vsub.s32 0, %v314
        %v316 = vsel %vm310, %v315, %v314
        %vm317 = vcmp.lt.s32.totalorder %v247, 0
        %v318 = vsub.s32 0, %v247
        %v319 = vsel %vm317, %v318, %v247
        %v320 = vshrl.u32 %v319, 4
        %v321 = vand.u32 %v319, 15
        %v322 = vsub.s32 0, %v321
        %v323 = vsel %vm317, %v322, %v321
        %vm324 = vcmp.lt.s32.totalorder %v248, 0
        %v325 = vsub.s32 0, %v248
        %v326 = vsel %vm324, %v325, %v248
        %v327 = vshrl.u32 %v326, 4
        %v328 = vand.u32 %v326, 15
        %v329 = vsub.s32 0, %v328
        %v330 = vsel %vm324, %v329, %v328
        %vm331 = vcmp.lt.s32.totalorder %v249, 0
        %v332 = vsub.s32 0, %v249
        %v333 = vsel %vm331, %v332, %v249
        %v334 = vshrl.u32 %v333, 4
        %v335 = vand.u32 %v333, 15
        %v336 = vsub.s32 0, %v335
        %v337 = vsel %vm331, %v336, %v335
        %vm338 = vcmp.lt.s32.totalorder %v250, 0
        %v339 = vsub.s32 0, %v250
        %v340 = vsel %vm338, %v339, %v250
        %v341 = vshrl.u32 %v340, 4
        %v342 = vand.u32 %v340, 15
        %v343 = vsub.s32 0, %v342
        %v344 = vsel %vm338, %v343, %v342
        %vm345 = vcmp.lt.s32.totalorder %v251, 0
        %v346 = vsub.s32 0, %v251
        %v347 = vsel %vm345, %v346, %v251
        %v348 = vshrl.u32 %v347, 4
        %v349 = vand.u32 %v347, 15
        %v350 = vsub.s32 0, %v349
        %v351 = vsel %vm345, %v350, %v349
        %vm352 = vcmp.lt.s32.totalorder %v252, 0
        %v353 = vsub.s32 0, %v252
        %v354 = vsel %vm352, %v353, %v252
        %v355 = vshrl.u32 %v354, 4
        %v356 = vand.u32 %v354, 15
        %v357 = vsub.s32 0, %v356
        %v358 = vsel %vm352, %v357, %v356
        %vm359 = vcmp.lt.s32.totalorder %v253, 0
        %v360 = vsub.s32 0, %v253
        %v361 = vsel %vm359, %v360, %v253
        %v362 = vshrl.u32 %v361, 4
        %v363 = vand.u32 %v361, 15
        %v364 = vsub.s32 0, %v363
        %v365 = vsel %vm359, %v364, %v363
        %vm366 = vcmp.ne.s32.totalorder %v260, 0
        %vm367 = vcmp.ne.s32.totalorder %v267, 0
        %vm368 = vcmp.ne.s32.totalorder %v274, 0
        %vm369 = vcmp.ne.s32.totalorder %v281, 0
        %vm370 = vcmp.ne.s32.totalorder %v288, 0
        %vm371 = vcmp.ne.s32.totalorder %v295, 0
        %vm372 = vcmp.ne.s32.totalorder %v302, 0
        %vm373 = vcmp.ne.s32.totalorder %v309, 0
        %vm374 = vcmp.ne.s32.totalorder %v316, 0
        %vm375 = vcmp.ne.s32.totalorder %v323, 0
        %vm376 = vcmp.ne.s32.totalorder %v330, 0
        %vm377 = vcmp.ne.s32.totalorder %v337, 0
        %vm378 = vcmp.ne.s32.totalorder %v344, 0
        %vm379 = vcmp.ne.s32.totalorder %v351, 0
        %vm380 = vcmp.ne.s32.totalorder %v358, 0
        %vm381 = vcmp.ne.s32.totalorder %v365, 0
        %vm382 = vcmp.lt.s32.totalorder %v260, 0
        %vm383 = vcmp.lt.s32.totalorder %v267, 0
        %vm384 = vcmp.lt.s32.totalorder %v274, 0
        %vm385 = vcmp.lt.s32.totalorder %v281, 0
        %vm386 = vcmp.lt.s32.totalorder %v288, 0
        %vm387 = vcmp.lt.s32.totalorder %v295, 0
        %vm388 = vcmp.lt.s32.totalorder %v302, 0
        %vm389 = vcmp.lt.s32.totalorder %v309, 0
        %vm390 = vcmp.lt.s32.totalorder %v316, 0
        %vm391 = vcmp.lt.s32.totalorder %v323, 0
        %vm392 = vcmp.lt.s32.totalorder %v330, 0
        %vm393 = vcmp.lt.s32.totalorder %v337, 0
        %vm394 = vcmp.lt.s32.totalorder %v344, 0
        %vm395 = vcmp.lt.s32.totalorder %v351, 0
        %vm396 = vcmp.lt.s32.totalorder %v358, 0
        %vm397 = vcmp.lt.s32.totalorder %v365, 0
        %vm398 = vmand %vm382, %vm366
        %vm399 = vmand %vm383, %vm367
        %vm400 = vmand %vm384, %vm368
        %vm401 = vmand %vm385, %vm369
        %vm402 = vmand %vm386, %vm370
        %vm403 = vmand %vm387, %vm371
        %vm404 = vmand %vm388, %vm372
        %vm405 = vmand %vm389, %vm373
        %vm406 = vmand %vm390, %vm374
        %vm407 = vmand %vm391, %vm375
        %vm408 = vmand %vm392, %vm376
        %vm409 = vmand %vm393, %vm377
        %vm410 = vmand %vm394, %vm378
        %vm411 = vmand %vm395, %vm379
        %vm412 = vmand %vm396, %vm380
        %vm413 = vmand %vm397, %vm381
        %v414 = vadd.s32 %v260, 16
        %v415 = vadd.s32 %v267, 16
        %v416 = vadd.s32 %v274, 16
        %v417 = vadd.s32 %v281, 16
        %v418 = vadd.s32 %v288, 16
        %v419 = vadd.s32 %v295, 16
        %v420 = vadd.s32 %v302, 16
        %v421 = vadd.s32 %v309, 16
        %v422 = vadd.s32 %v316, 16
        %v423 = vadd.s32 %v323, 16
        %v424 = vadd.s32 %v330, 16
        %v425 = vadd.s32 %v337, 16
        %v426 = vadd.s32 %v344, 16
        %v427 = vadd.s32 %v351, 16
        %v428 = vadd.s32 %v358, 16
        %v429 = vadd.s32 %v365, 16
        %v430 = vsel %vm398, %v414, %v260
        %v431 = vsel %vm399, %v415, %v267
        %v432 = vsel %vm400, %v416, %v274
        %v433 = vsel %vm401, %v417, %v281
        %v434 = vsel %vm402, %v418, %v288
        %v435 = vsel %vm403, %v419, %v295
        %v436 = vsel %vm404, %v420, %v302
        %v437 = vsel %vm405, %v421, %v309
        %v438 = vsel %vm406, %v422, %v316
        %v439 = vsel %vm407, %v423, %v323
        %v440 = vsel %vm408, %v424, %v330
        %v441 = vsel %vm409, %v425, %v337
        %v442 = vsel %vm410, %v426, %v344
        %v443 = vsel %vm411, %v427, %v351
        %v444 = vsel %vm412, %v428, %v358
        %v445 = vsel %vm413, %v429, %v365
        %v446 = vadd.s32 %v430, 4294967294
        %v447 = vadd.s32 %v431, 4294967294
        %v448 = vadd.s32 %v432, 4294967294
        %v449 = vadd.s32 %v433, 4294967294
        %v450 = vadd.s32 %v434, 4294967294
        %v451 = vadd.s32 %v435, 4294967294
        %v452 = vadd.s32 %v436, 4294967294
        %v453 = vadd.s32 %v437, 4294967294
        %v454 = vadd.s32 %v438, 4294967294
        %v455 = vadd.s32 %v439, 4294967294
        %v456 = vadd.s32 %v440, 4294967294
        %v457 = vadd.s32 %v441, 4294967294
        %v458 = vadd.s32 %v442, 4294967294
        %v459 = vadd.s32 %v443, 4294967294
        %v460 = vadd.s32 %v444, 4294967294
        %v461 = vadd.s32 %v445, 4294967294
        %vm462 = vcmp.ge.s32.totalorder %v446, 0
        %vm463 = vcmp.ge.s32.totalorder %v447, 0
        %vm464 = vcmp.ge.s32.totalorder %v448, 0
        %vm465 = vcmp.ge.s32.totalorder %v449, 0
        %vm466 = vcmp.ge.s32.totalorder %v450, 0
        %vm467 = vcmp.ge.s32.totalorder %v451, 0
        %vm468 = vcmp.ge.s32.totalorder %v452, 0
        %vm469 = vcmp.ge.s32.totalorder %v453, 0
        %vm470 = vcmp.ge.s32.totalorder %v454, 0
        %vm471 = vcmp.ge.s32.totalorder %v455, 0
        %vm472 = vcmp.ge.s32.totalorder %v456, 0
        %vm473 = vcmp.ge.s32.totalorder %v457, 0
        %vm474 = vcmp.ge.s32.totalorder %v458, 0
        %vm475 = vcmp.ge.s32.totalorder %v459, 0
        %vm476 = vcmp.ge.s32.totalorder %v460, 0
        %vm477 = vcmp.ge.s32.totalorder %v461, 0
        %vm478 = vcmp.lt.s32.totalorder %v446, 16
        %vm479 = vcmp.lt.s32.totalorder %v447, 16
        %vm480 = vcmp.lt.s32.totalorder %v448, 16
        %vm481 = vcmp.lt.s32.totalorder %v449, 16
        %vm482 = vcmp.lt.s32.totalorder %v450, 16
        %vm483 = vcmp.lt.s32.totalorder %v451, 16
        %vm484 = vcmp.lt.s32.totalorder %v452, 16
        %vm485 = vcmp.lt.s32.totalorder %v453, 16
        %vm486 = vcmp.lt.s32.totalorder %v454, 16
        %vm487 = vcmp.lt.s32.totalorder %v455, 16
        %vm488 = vcmp.lt.s32.totalorder %v456, 16
        %vm489 = vcmp.lt.s32.totalorder %v457, 16
        %vm490 = vcmp.lt.s32.totalorder %v458, 16
        %vm491 = vcmp.lt.s32.totalorder %v459, 16
        %vm492 = vcmp.lt.s32.totalorder %v460, 16
        %vm493 = vcmp.lt.s32.totalorder %v461, 16
        %vm494 = vmand %vm462, %vm478
        %vm495 = vmand %vm463, %vm479
        %vm496 = vmand %vm464, %vm480
        %vm497 = vmand %vm465, %vm481
        %vm498 = vmand %vm466, %vm482
        %vm499 = vmand %vm467, %vm483
        %vm500 = vmand %vm468, %vm484
        %vm501 = vmand %vm469, %vm485
        %vm502 = vmand %vm470, %vm486
        %vm503 = vmand %vm471, %vm487
        %vm504 = vmand %vm472, %vm488
        %vm505 = vmand %vm473, %vm489
        %vm506 = vmand %vm474, %vm490
        %vm507 = vmand %vm475, %vm491
        %vm508 = vmand %vm476, %vm492
        %vm509 = vmand %vm477, %vm493
        %v510 = vadd.s32 %v430, 4294967295
        %v511 = vadd.s32 %v431, 4294967295
        %v512 = vadd.s32 %v432, 4294967295
        %v513 = vadd.s32 %v433, 4294967295
        %v514 = vadd.s32 %v434, 4294967295
        %v515 = vadd.s32 %v435, 4294967295
        %v516 = vadd.s32 %v436, 4294967295
        %v517 = vadd.s32 %v437, 4294967295
        %v518 = vadd.s32 %v438, 4294967295
        %v519 = vadd.s32 %v439, 4294967295
        %v520 = vadd.s32 %v440, 4294967295
        %v521 = vadd.s32 %v441, 4294967295
        %v522 = vadd.s32 %v442, 4294967295
        %v523 = vadd.s32 %v443, 4294967295
        %v524 = vadd.s32 %v444, 4294967295
        %v525 = vadd.s32 %v445, 4294967295
        %vm526 = vcmp.ge.s32.totalorder %v510, 0
        %vm527 = vcmp.ge.s32.totalorder %v511, 0
        %vm528 = vcmp.ge.s32.totalorder %v512, 0
        %vm529 = vcmp.ge.s32.totalorder %v513, 0
        %vm530 = vcmp.ge.s32.totalorder %v514, 0
        %vm531 = vcmp.ge.s32.totalorder %v515, 0
        %vm532 = vcmp.ge.s32.totalorder %v516, 0
        %vm533 = vcmp.ge.s32.totalorder %v517, 0
        %vm534 = vcmp.ge.s32.totalorder %v518, 0
        %vm535 = vcmp.ge.s32.totalorder %v519, 0
        %vm536 = vcmp.ge.s32.totalorder %v520, 0
        %vm537 = vcmp.ge.s32.totalorder %v521, 0
        %vm538 = vcmp.ge.s32.totalorder %v522, 0
        %vm539 = vcmp.ge.s32.totalorder %v523, 0
        %vm540 = vcmp.ge.s32.totalorder %v524, 0
        %vm541 = vcmp.ge.s32.totalorder %v525, 0
        %vm542 = vcmp.lt.s32.totalorder %v510, 16
        %vm543 = vcmp.lt.s32.totalorder %v511, 16
        %vm544 = vcmp.lt.s32.totalorder %v512, 16
        %vm545 = vcmp.lt.s32.totalorder %v513, 16
        %vm546 = vcmp.lt.s32.totalorder %v514, 16
        %vm547 = vcmp.lt.s32.totalorder %v515, 16
        %vm548 = vcmp.lt.s32.totalorder %v516, 16
        %vm549 = vcmp.lt.s32.totalorder %v517, 16
        %vm550 = vcmp.lt.s32.totalorder %v518, 16
        %vm551 = vcmp.lt.s32.totalorder %v519, 16
        %vm552 = vcmp.lt.s32.totalorder %v520, 16
        %vm553 = vcmp.lt.s32.totalorder %v521, 16
        %vm554 = vcmp.lt.s32.totalorder %v522, 16
        %vm555 = vcmp.lt.s32.totalorder %v523, 16
        %vm556 = vcmp.lt.s32.totalorder %v524, 16
        %vm557 = vcmp.lt.s32.totalorder %v525, 16
        %vm558 = vmand %vm526, %vm542
        %vm559 = vmand %vm527, %vm543
        %vm560 = vmand %vm528, %vm544
        %vm561 = vmand %vm529, %vm545
        %vm562 = vmand %vm530, %vm546
        %vm563 = vmand %vm531, %vm547
        %vm564 = vmand %vm532, %vm548
        %vm565 = vmand %vm533, %vm549
        %vm566 = vmand %vm534, %vm550
        %vm567 = vmand %vm535, %vm551
        %vm568 = vmand %vm536, %vm552
        %vm569 = vmand %vm537, %vm553
        %vm570 = vmand %vm538, %vm554
        %vm571 = vmand %vm539, %vm555
        %vm572 = vmand %vm540, %vm556
        %vm573 = vmand %vm541, %vm557
        %v574 = vadd.s32 %v430, 1
        %v575 = vadd.s32 %v431, 1
        %v576 = vadd.s32 %v432, 1
        %v577 = vadd.s32 %v433, 1
        %v578 = vadd.s32 %v434, 1
        %v579 = vadd.s32 %v435, 1
        %v580 = vadd.s32 %v436, 1
        %v581 = vadd.s32 %v437, 1
        %v582 = vadd.s32 %v438, 1
        %v583 = vadd.s32 %v439, 1
        %v584 = vadd.s32 %v440, 1
        %v585 = vadd.s32 %v441, 1
        %v586 = vadd.s32 %v442, 1
        %v587 = vadd.s32 %v443, 1
        %v588 = vadd.s32 %v444, 1
        %v589 = vadd.s32 %v445, 1
        %vm590 = vcmp.ge.s32.totalorder %v574, 0
        %vm591 = vcmp.ge.s32.totalorder %v575, 0
        %vm592 = vcmp.ge.s32.totalorder %v576, 0
        %vm593 = vcmp.ge.s32.totalorder %v577, 0
        %vm594 = vcmp.ge.s32.totalorder %v578, 0
        %vm595 = vcmp.ge.s32.totalorder %v579, 0
        %vm596 = vcmp.ge.s32.totalorder %v580, 0
        %vm597 = vcmp.ge.s32.totalorder %v581, 0
        %vm598 = vcmp.ge.s32.totalorder %v582, 0
        %vm599 = vcmp.ge.s32.totalorder %v583, 0
        %vm600 = vcmp.ge.s32.totalorder %v584, 0
        %vm601 = vcmp.ge.s32.totalorder %v585, 0
        %vm602 = vcmp.ge.s32.totalorder %v586, 0
        %vm603 = vcmp.ge.s32.totalorder %v587, 0
        %vm604 = vcmp.ge.s32.totalorder %v588, 0
        %vm605 = vcmp.ge.s32.totalorder %v589, 0
        %vm606 = vcmp.lt.s32.totalorder %v574, 16
        %vm607 = vcmp.lt.s32.totalorder %v575, 16
        %vm608 = vcmp.lt.s32.totalorder %v576, 16
        %vm609 = vcmp.lt.s32.totalorder %v577, 16
        %vm610 = vcmp.lt.s32.totalorder %v578, 16
        %vm611 = vcmp.lt.s32.totalorder %v579, 16
        %vm612 = vcmp.lt.s32.totalorder %v580, 16
        %vm613 = vcmp.lt.s32.totalorder %v581, 16
        %vm614 = vcmp.lt.s32.totalorder %v582, 16
        %vm615 = vcmp.lt.s32.totalorder %v583, 16
        %vm616 = vcmp.lt.s32.totalorder %v584, 16
        %vm617 = vcmp.lt.s32.totalorder %v585, 16
        %vm618 = vcmp.lt.s32.totalorder %v586, 16
        %vm619 = vcmp.lt.s32.totalorder %v587, 16
        %vm620 = vcmp.lt.s32.totalorder %v588, 16
        %vm621 = vcmp.lt.s32.totalorder %v589, 16
        %vm622 = vmand %vm590, %vm606
        %vm623 = vmand %vm591, %vm607
        %vm624 = vmand %vm592, %vm608
        %vm625 = vmand %vm593, %vm609
        %vm626 = vmand %vm594, %vm610
        %vm627 = vmand %vm595, %vm611
        %vm628 = vmand %vm596, %vm612
        %vm629 = vmand %vm597, %vm613
        %vm630 = vmand %vm598, %vm614
        %vm631 = vmand %vm599, %vm615
        %vm632 = vmand %vm600, %vm616
        %vm633 = vmand %vm601, %vm617
        %vm634 = vmand %vm602, %vm618
        %vm635 = vmand %vm603, %vm619
        %vm636 = vmand %vm604, %vm620
        %vm637 = vmand %vm605, %vm621
        %v638 = vadd.s32 %v430, 2
        %v639 = vadd.s32 %v431, 2
        %v640 = vadd.s32 %v432, 2
        %v641 = vadd.s32 %v433, 2
        %v642 = vadd.s32 %v434, 2
        %v643 = vadd.s32 %v435, 2
        %v644 = vadd.s32 %v436, 2
        %v645 = vadd.s32 %v437, 2
        %v646 = vadd.s32 %v438, 2
        %v647 = vadd.s32 %v439, 2
        %v648 = vadd.s32 %v440, 2
        %v649 = vadd.s32 %v441, 2
        %v650 = vadd.s32 %v442, 2
        %v651 = vadd.s32 %v443, 2
        %v652 = vadd.s32 %v444, 2
        %v653 = vadd.s32 %v445, 2
        %vm654 = vcmp.ge.s32.totalorder %v638, 0
        %vm655 = vcmp.ge.s32.totalorder %v639, 0
        %vm656 = vcmp.ge.s32.totalorder %v640, 0
        %vm657 = vcmp.ge.s32.totalorder %v641, 0
        %vm658 = vcmp.ge.s32.totalorder %v642, 0
        %vm659 = vcmp.ge.s32.totalorder %v643, 0
        %vm660 = vcmp.ge.s32.totalorder %v644, 0
        %vm661 = vcmp.ge.s32.totalorder %v645, 0
        %vm662 = vcmp.ge.s32.totalorder %v646, 0
        %vm663 = vcmp.ge.s32.totalorder %v647, 0
        %vm664 = vcmp.ge.s32.totalorder %v648, 0
        %vm665 = vcmp.ge.s32.totalorder %v649, 0
        %vm666 = vcmp.ge.s32.totalorder %v650, 0
        %vm667 = vcmp.ge.s32.totalorder %v651, 0
        %vm668 = vcmp.ge.s32.totalorder %v652, 0
        %vm669 = vcmp.ge.s32.totalorder %v653, 0
        %vm670 = vcmp.lt.s32.totalorder %v638, 16
        %vm671 = vcmp.lt.s32.totalorder %v639, 16
        %vm672 = vcmp.lt.s32.totalorder %v640, 16
        %vm673 = vcmp.lt.s32.totalorder %v641, 16
        %vm674 = vcmp.lt.s32.totalorder %v642, 16
        %vm675 = vcmp.lt.s32.totalorder %v643, 16
        %vm676 = vcmp.lt.s32.totalorder %v644, 16
        %vm677 = vcmp.lt.s32.totalorder %v645, 16
        %vm678 = vcmp.lt.s32.totalorder %v646, 16
        %vm679 = vcmp.lt.s32.totalorder %v647, 16
        %vm680 = vcmp.lt.s32.totalorder %v648, 16
        %vm681 = vcmp.lt.s32.totalorder %v649, 16
        %vm682 = vcmp.lt.s32.totalorder %v650, 16
        %vm683 = vcmp.lt.s32.totalorder %v651, 16
        %vm684 = vcmp.lt.s32.totalorder %v652, 16
        %vm685 = vcmp.lt.s32.totalorder %v653, 16
        %vm686 = vmand %vm654, %vm670
        %vm687 = vmand %vm655, %vm671
        %vm688 = vmand %vm656, %vm672
        %vm689 = vmand %vm657, %vm673
        %vm690 = vmand %vm658, %vm674
        %vm691 = vmand %vm659, %vm675
        %vm692 = vmand %vm660, %vm676
        %vm693 = vmand %vm661, %vm677
        %vm694 = vmand %vm662, %vm678
        %vm695 = vmand %vm663, %vm679
        %vm696 = vmand %vm664, %vm680
        %vm697 = vmand %vm665, %vm681
        %vm698 = vmand %vm666, %vm682
        %vm699 = vmand %vm667, %vm683
        %vm700 = vmand %vm668, %vm684
        %vm701 = vmand %vm669, %vm685
        %v702 = vrot.slane %v221, 6
        %v703 = vrot.slane %v222, 6
        %v704 = vrot.slane %v223, 6
        %v705 = vrot.slane %v224, 6
        %v706 = vrot.slane %v225, 6
        %v707 = vrot.slane %v226, 6
        %v708 = vrot.slane %v227, 6
        %v709 = vrot.slane %v228, 6
        %v710 = vrot.slane %v229, 6
        %v711 = vrot.slane %v230, 6
        %v712 = vrot.slane %v231, 6
        %v713 = vrot.slane %v232, 6
        %v714 = vrot.slane %v233, 6
        %v715 = vrot.slane %v234, 6
        %v716 = vrot.slane %v235, 6
        %v717 = vrot.slane %v236, 6
        %vm718 = vcmp.lt.s32.totalorder %v238, 2
        %v719 = vsel %vm718, %v716, %v717
        %v720 = vsel %vm718, %v715, %v716
        %v721 = vsel %vm718, %v714, %v715
        %v722 = vsel %vm718, %v713, %v714
        %v723 = vsel %vm718, %v712, %v713
        %v724 = vsel %vm718, %v711, %v712
        %v725 = vsel %vm718, %v710, %v711
        %v726 = vsel %vm718, %v709, %v710
        %v727 = vsel %vm718, %v708, %v709
        %v728 = vsel %vm718, %v707, %v708
        %v729 = vsel %vm718, %v706, %v707
        %v730 = vsel %vm718, %v705, %v706
        %v731 = vsel %vm718, %v704, %v705
        %v732 = vsel %vm718, %v703, %v704
        %v733 = vsel %vm718, %v702, %v703
        %v734 = vsel %vm718, %v717, %v702
        %v735 = vsel %vm494, 1, 0
        %v736 = vsel %vm495, 1, 0
        %v737 = vsel %vm496, 1, 0
        %v738 = vsel %vm497, 1, 0
        %v739 = vsel %vm498, 1, 0
        %v740 = vsel %vm499, 1, 0
        %v741 = vsel %vm500, 1, 0
        %v742 = vsel %vm501, 1, 0
        %v743 = vsel %vm502, 1, 0
        %v744 = vsel %vm503, 1, 0
        %v745 = vsel %vm504, 1, 0
        %v746 = vsel %vm505, 1, 0
        %v747 = vsel %vm506, 1, 0
        %v748 = vsel %vm507, 1, 0
        %v749 = vsel %vm508, 1, 0
        %v750 = vsel %vm509, 1, 0
        %vm751 = vcmp.eq.s32.totalorder %v735, 1
        %vm752 = vcmp.eq.s32.totalorder %v736, 1
        %vm753 = vcmp.eq.s32.totalorder %v737, 1
        %vm754 = vcmp.eq.s32.totalorder %v738, 1
        %vm755 = vcmp.eq.s32.totalorder %v739, 1
        %vm756 = vcmp.eq.s32.totalorder %v740, 1
        %vm757 = vcmp.eq.s32.totalorder %v741, 1
        %vm758 = vcmp.eq.s32.totalorder %v742, 1
        %vm759 = vcmp.eq.s32.totalorder %v743, 1
        %vm760 = vcmp.eq.s32.totalorder %v744, 1
        %vm761 = vcmp.eq.s32.totalorder %v745, 1
        %vm762 = vcmp.eq.s32.totalorder %v746, 1
        %vm763 = vcmp.eq.s32.totalorder %v747, 1
        %vm764 = vcmp.eq.s32.totalorder %v748, 1
        %vm765 = vcmp.eq.s32.totalorder %v749, 1
        %vm766 = vcmp.eq.s32.totalorder %v750, 1
        %v767 = vsel %vm751, %v734, 0.0
        %v768 = vsel %vm752, %v733, 0.0
        %v769 = vsel %vm753, %v732, 0.0
        %v770 = vsel %vm754, %v731, 0.0
        %v771 = vsel %vm755, %v730, 0.0
        %v772 = vsel %vm756, %v729, 0.0
        %v773 = vsel %vm757, %v728, 0.0
        %v774 = vsel %vm758, %v727, 0.0
        %v775 = vsel %vm759, %v726, 0.0
        %v776 = vsel %vm760, %v725, 0.0
        %v777 = vsel %vm761, %v724, 0.0
        %v778 = vsel %vm762, %v723, 0.0
        %v779 = vsel %vm763, %v722, 0.0
        %v780 = vsel %vm764, %v721, 0.0
        %v781 = vsel %vm765, %v720, 0.0
        %v782 = vsel %vm766, %v719, 0.0
        %v783 = vpack.c.bf16 %v768, %v767
        %v784 = vpack.c.bf16 %v770, %v769
        %v785 = vpack.c.bf16 %v772, %v771
        %v786 = vpack.c.bf16 %v774, %v773
        %v787 = vpack.c.bf16 %v776, %v775
        %v788 = vpack.c.bf16 %v778, %v777
        %v789 = vpack.c.bf16 %v780, %v779
        %v790 = vpack.c.bf16 %v782, %v781
        %v791 = vld [vmem:[#allocation5] sm:$0xf]
        %v792 = vld [vmem:[#allocation5 + $0x4] sm:$0xf]
        %v793 = vld [vmem:[#allocation5 + $0x8] sm:$0xf]
        %v794 = vld [vmem:[#allocation5 + $0xc] sm:$0xf]
        %v795 = vld [vmem:[#allocation5 + $0x10] sm:$0xf]
        %v796 = vld [vmem:[#allocation5 + $0x14] sm:$0xf]
        %v797 = vld [vmem:[#allocation5 + $0x18] sm:$0xf]
        %v798 = vld [vmem:[#allocation5 + $0x1c] sm:$0xf]
        %v799 = vld [vmem:[#allocation5 + $0x20] sm:$0xf]
        %v800 = vld [vmem:[#allocation5 + $0x24] sm:$0xf]
        %v801 = vld [vmem:[#allocation5 + $0x28] sm:$0xf]
        %v802 = vld [vmem:[#allocation5 + $0x2c] sm:$0xf]
        %v803 = vld [vmem:[#allocation5 + $0x30] sm:$0xf]
        %v804 = vld [vmem:[#allocation5 + $0x34] sm:$0xf]
        %v805 = vld [vmem:[#allocation5 + $0x38] sm:$0xf]
        %v806 = vld [vmem:[#allocation5 + $0x3c] sm:$0xf]
        %v807 = vrot.slane %v221, 7
        %v808 = vrot.slane %v222, 7
        %v809 = vrot.slane %v223, 7
        %v810 = vrot.slane %v224, 7
        %v811 = vrot.slane %v225, 7
        %v812 = vrot.slane %v226, 7
        %v813 = vrot.slane %v227, 7
        %v814 = vrot.slane %v228, 7
        %v815 = vrot.slane %v229, 7
        %v816 = vrot.slane %v230, 7
        %v817 = vrot.slane %v231, 7
        %v818 = vrot.slane %v232, 7
        %v819 = vrot.slane %v233, 7
        %v820 = vrot.slane %v234, 7
        %v821 = vrot.slane %v235, 7
        %v822 = vrot.slane %v236, 7
        %vm823 = vcmp.lt.s32.totalorder %v238, 1
        %v824 = vsel %vm823, %v821, %v822
        %v825 = vsel %vm823, %v820, %v821
        %v826 = vsel %vm823, %v819, %v820
        %v827 = vsel %vm823, %v818, %v819
        %v828 = vsel %vm823, %v817, %v818
        %v829 = vsel %vm823, %v816, %v817
        %v830 = vsel %vm823, %v815, %v816
        %v831 = vsel %vm823, %v814, %v815
        %v832 = vsel %vm823, %v813, %v814
        %v833 = vsel %vm823, %v812, %v813
        %v834 = vsel %vm823, %v811, %v812
        %v835 = vsel %vm823, %v810, %v811
        %v836 = vsel %vm823, %v809, %v810
        %v837 = vsel %vm823, %v808, %v809
        %v838 = vsel %vm823, %v807, %v808
        %v839 = vsel %vm823, %v822, %v807
        %v840 = vsel %vm558, 1, 0
        %v841 = vsel %vm559, 1, 0
        %v842 = vsel %vm560, 1, 0
        %v843 = vsel %vm561, 1, 0
        %v844 = vsel %vm562, 1, 0
        %v845 = vsel %vm563, 1, 0
        %v846 = vsel %vm564, 1, 0
        %v847 = vsel %vm565, 1, 0
        %v848 = vsel %vm566, 1, 0
        %v849 = vsel %vm567, 1, 0
        %v850 = vsel %vm568, 1, 0
        %v851 = vsel %vm569, 1, 0
        %v852 = vsel %vm570, 1, 0
        %v853 = vsel %vm571, 1, 0
        %v854 = vsel %vm572, 1, 0
        %v855 = vsel %vm573, 1, 0
        %vm856 = vcmp.eq.s32.totalorder %v840, 1
        %vm857 = vcmp.eq.s32.totalorder %v841, 1
        %vm858 = vcmp.eq.s32.totalorder %v842, 1
        %vm859 = vcmp.eq.s32.totalorder %v843, 1
        %vm860 = vcmp.eq.s32.totalorder %v844, 1
        %vm861 = vcmp.eq.s32.totalorder %v845, 1
        %vm862 = vcmp.eq.s32.totalorder %v846, 1
        %vm863 = vcmp.eq.s32.totalorder %v847, 1
        %vm864 = vcmp.eq.s32.totalorder %v848, 1
        %vm865 = vcmp.eq.s32.totalorder %v849, 1
        %vm866 = vcmp.eq.s32.totalorder %v850, 1
        %vm867 = vcmp.eq.s32.totalorder %v851, 1
        %vm868 = vcmp.eq.s32.totalorder %v852, 1
        %vm869 = vcmp.eq.s32.totalorder %v853, 1
        %vm870 = vcmp.eq.s32.totalorder %v854, 1
        %vm871 = vcmp.eq.s32.totalorder %v855, 1
        %v872 = vsel %vm856, %v839, 0.0
        %v873 = vsel %vm857, %v838, 0.0
        %v874 = vsel %vm858, %v837, 0.0
        %v875 = vsel %vm859, %v836, 0.0
        %v876 = vsel %vm860, %v835, 0.0
        %v877 = vsel %vm861, %v834, 0.0
        %v878 = vsel %vm862, %v833, 0.0
        %v879 = vsel %vm863, %v832, 0.0
        %v880 = vsel %vm864, %v831, 0.0
        %v881 = vsel %vm865, %v830, 0.0
        %v882 = vsel %vm866, %v829, 0.0
        %v883 = vsel %vm867, %v828, 0.0
        %v884 = vsel %vm868, %v827, 0.0
        %v885 = vsel %vm869, %v826, 0.0
        %v886 = vsel %vm870, %v825, 0.0
        %v887 = vsel %vm871, %v824, 0.0
        %v888 = vpack.c.bf16 %v873, %v872
        %v889 = vpack.c.bf16 %v875, %v874
        %v890 = vpack.c.bf16 %v877, %v876
        %v891 = vpack.c.bf16 %v879, %v878
        %v892 = vpack.c.bf16 %v881, %v880
        %v893 = vpack.c.bf16 %v883, %v882
        %v894 = vpack.c.bf16 %v885, %v884
        %v895 = vpack.c.bf16 %v887, %v886
        %s896 = scalar_lea.vmem [#allocation5], 64
        %v897 = vld [vmem:[%s896] sm:$0xf]
        %v898 = vld [vmem:[%s896 + $0x4] sm:$0xf]
        %v899 = vld [vmem:[%s896 + $0x8] sm:$0xf]
        %v900 = vld [vmem:[%s896 + $0xc] sm:$0xf]
        %v901 = vld [vmem:[%s896 + $0x10] sm:$0xf]
        %v902 = vld [vmem:[%s896 + $0x14] sm:$0xf]
        %v903 = vld [vmem:[%s896 + $0x18] sm:$0xf]
        %v904 = vld [vmem:[%s896 + $0x1c] sm:$0xf]
        %v905 = vld [vmem:[%s896 + $0x20] sm:$0xf]
        %v906 = vld [vmem:[%s896 + $0x24] sm:$0xf]
        %v907 = vld [vmem:[%s896 + $0x28] sm:$0xf]
        %v908 = vld [vmem:[%s896 + $0x2c] sm:$0xf]
        %v909 = vld [vmem:[%s896 + $0x30] sm:$0xf]
        %v910 = vld [vmem:[%s896 + $0x34] sm:$0xf]
        %v911 = vld [vmem:[%s896 + $0x38] sm:$0xf]
        %v912 = vld [vmem:[%s896 + $0x3c] sm:$0xf]
        %v929 = vunpack.c.l.b16 %v897
        %v930 = vunpack.c.l.b16 %v898
        %v931 = vunpack.c.l.b16 %v899
        %v932 = vunpack.c.l.b16 %v900
        %v933 = vunpack.c.l.b16 %v901
        %v934 = vunpack.c.l.b16 %v902
        %v935 = vunpack.c.l.b16 %v903
        %v936 = vunpack.c.l.b16 %v904
        %v937 = vunpack.c.l.b16 %v905
        %v938 = vunpack.c.l.b16 %v906
        %v939 = vunpack.c.l.b16 %v907
        %v940 = vunpack.c.l.b16 %v908
        %v941 = vunpack.c.l.b16 %v909
        %v942 = vunpack.c.l.b16 %v910
        %v943 = vunpack.c.l.b16 %v911
        %v944 = vunpack.c.l.b16 %v912
        %v945 = vpack.c.b16 %v930, %v929
        %v946 = vpack.c.b16 %v932, %v931
        %v947 = vpack.c.b16 %v934, %v933
        %v948 = vpack.c.b16 %v936, %v935
        %v949 = vpack.c.b16 %v938, %v937
        %v950 = vpack.c.b16 %v940, %v939
        %v951 = vpack.c.b16 %v942, %v941
        %v952 = vpack.c.b16 %v944, %v943
        %961 = vmatprep.subr.bf16.mxu0 0
        %962 = vmatpush1.bf16.msra.mxu0 %v945
        %963 = vmatprep.subr.bf16.mxu0 0
        %964 = vmatpush1.bf16.msra.mxu0 %v946
        %965 = vmatprep.subr.bf16.mxu0 0
        %966 = vmatpush1.bf16.msra.mxu0 %v947
        %967 = vmatprep.subr.bf16.mxu0 0
        %968 = vmatpush1.bf16.msra.mxu0 %v948
        %969 = vmatprep.subr.bf16.mxu0 0
        %970 = vmatpush1.bf16.msra.mxu0 %v949
        %971 = vmatprep.subr.bf16.mxu0 0
        %972 = vmatpush1.bf16.msra.mxu0 %v950
        %973 = vmatprep.subr.bf16.mxu0 0
        %974 = vmatpush1.bf16.msra.mxu0 %v951
        %975 = vmatprep.subr.bf16.mxu0 0
        %976 = vmatpush1.bf16.msra.mxu0 %v952
        %977 = vmatprep.subr.bf16.mxu0 0
        %978 = vmatpush1.bf16.msra.mxu0 0
        %979 = vmatprep.subr.bf16.mxu0 0
        %980 = vmatpush1.bf16.msra.mxu0 0
        %981 = vmatprep.subr.bf16.mxu0 0
        %982 = vmatpush1.bf16.msra.mxu0 0
        %983 = vmatprep.subr.bf16.mxu0 0
        %984 = vmatpush1.bf16.msra.mxu0 0
        %985 = vmatprep.subr.bf16.mxu0 0
        %986 = vmatpush1.bf16.msra.mxu0 0
        %987 = vmatprep.subr.bf16.mxu0 0
        %988 = vmatpush1.bf16.msra.mxu0 0
        %989 = vmatprep.subr.bf16.mxu0 0
        %990 = vmatpush1.bf16.msra.mxu0 0
        %991 = vmatprep.subr.bf16.mxu0 0
        %992 = vmatpush1.bf16.msra.mxu0 0
        %993 = vmatprep.mubr.bf16.mxu0 0
        %994 = vmatmul.mubr.bf16.gmra.mrb[0].mxu0 %v888
        %v995 = vpop.f32.mrb[0].mxu0
        %v996 = vadd.f32 0.0, %v995
        %v997 = vpop.f32.mrb[0].mxu0
        %v998 = vpop.f32.mrb[0].mxu0
        %v999 = vadd.f32 0.0, %v998
        %v1000 = vpop.f32.mrb[0].mxu0
        %1001 = vmatprep.mubr.bf16.mxu0 0
        %1002 = vmatmul.mubr.bf16.gmra.mrb[0].mxu0 %v889
        %v1003 = vpop.f32.mrb[0].mxu0
        %v1004 = vadd.f32 0.0, %v1003
        %v1005 = vpop.f32.mrb[0].mxu0
        %v1006 = vpop.f32.mrb[0].mxu0
        %v1007 = vadd.f32 0.0, %v1006
        %v1008 = vpop.f32.mrb[0].mxu0
        %1009 = vmatprep.mubr.bf16.mxu0 0
        %1010 = vmatmul.mubr.bf16.gmra.mrb[0].mxu0 %v890
        %v1011 = vpop.f32.mrb[0].mxu0
        %v1012 = vadd.f32 0.0, %v1011
        %v1013 = vpop.f32.mrb[0].mxu0
        %v1014 = vpop.f32.mrb[0].mxu0
        %v1015 = vadd.f32 0.0, %v1014
        %v1016 = vpop.f32.mrb[0].mxu0
        %1017 = vmatprep.mubr.bf16.mxu0 0
        %1018 = vmatmul.mubr.bf16.gmra.mrb[0].mxu0 %v891
        %v1019 = vpop.f32.mrb[0].mxu0
        %v1020 = vadd.f32 0.0, %v1019
        %v1021 = vpop.f32.mrb[0].mxu0
        %v1022 = vpop.f32.mrb[0].mxu0
        %v1023 = vadd.f32 0.0, %v1022
        %v1024 = vpop.f32.mrb[0].mxu0
        %1025 = vmatprep.mubr.bf16.mxu0 0
        %1026 = vmatmul.mubr.bf16.gmra.mrb[0].mxu0 %v892
        %v1027 = vpop.f32.mrb[0].mxu0
        %v1028 = vadd.f32 0.0, %v1027
        %v1029 = vpop.f32.mrb[0].mxu0
        %v1030 = vpop.f32.mrb[0].mxu0
        %v1031 = vadd.f32 0.0, %v1030
        %v1032 = vpop.f32.mrb[0].mxu0
        %1033 = vmatprep.mubr.bf16.mxu0 0
        %1034 = vmatmul.mubr.bf16.gmra.mrb[0].mxu0 %v893
        %v1035 = vpop.f32.mrb[0].mxu0
        %v1036 = vadd.f32 0.0, %v1035
        %v1037 = vpop.f32.mrb[0].mxu0
        %v1038 = vpop.f32.mrb[0].mxu0
        %v1039 = vadd.f32 0.0, %v1038
        %v1040 = vpop.f32.mrb[0].mxu0
        %1041 = vmatprep.mubr.bf16.mxu0 0
        %1042 = vmatmul.mubr.bf16.gmra.mrb[0].mxu0 %v894
        %v1043 = vpop.f32.mrb[0].mxu0
        %v1044 = vadd.f32 0.0, %v1043
        %v1045 = vpop.f32.mrb[0].mxu0
        %v1046 = vpop.f32.mrb[0].mxu0
        %v1047 = vadd.f32 0.0, %v1046
        %v1048 = vpop.f32.mrb[0].mxu0
        %1049 = vmatprep.mubr.bf16.mxu0 0
        %1050 = vmatmul.mubr.bf16.gmra.mrb[0].mxu0 %v895
        %v1051 = vpop.f32.mrb[0].mxu0
        %v1052 = vadd.f32 0.0, %v1051
        %v1053 = vpop.f32.mrb[0].mxu0
        %v1054 = vpop.f32.mrb[0].mxu0
        %v1055 = vadd.f32 0.0, %v1054
        %v1056 = vpop.f32.mrb[0].mxu0
        %1057 = vdwg.mxu0
        %v1074 = vunpack.c.l.b16 %v791
        %v1075 = vunpack.c.l.b16 %v792
        %v1076 = vunpack.c.l.b16 %v793
        %v1077 = vunpack.c.l.b16 %v794
        %v1078 = vunpack.c.l.b16 %v795
        %v1079 = vunpack.c.l.b16 %v796
        %v1080 = vunpack.c.l.b16 %v797
        %v1081 = vunpack.c.l.b16 %v798
        %v1082 = vunpack.c.l.b16 %v799
        %v1083 = vunpack.c.l.b16 %v800
        %v1084 = vunpack.c.l.b16 %v801
        %v1085 = vunpack.c.l.b16 %v802
        %v1086 = vunpack.c.l.b16 %v803
        %v1087 = vunpack.c.l.b16 %v804
        %v1088 = vunpack.c.l.b16 %v805
        %v1089 = vunpack.c.l.b16 %v806
        %v1090 = vpack.c.b16 %v1075, %v1074
        %v1091 = vpack.c.b16 %v1077, %v1076
        %v1092 = vpack.c.b16 %v1079, %v1078
        %v1093 = vpack.c.b16 %v1081, %v1080
        %v1094 = vpack.c.b16 %v1083, %v1082
        %v1095 = vpack.c.b16 %v1085, %v1084
        %v1096 = vpack.c.b16 %v1087, %v1086
        %v1097 = vpack.c.b16 %v1089, %v1088
        %1106 = vmatprep.subr.bf16.mxu0 0
        %1107 = vmatpush1.bf16.msra.mxu0 %v1090
        %1108 = vmatprep.subr.bf16.mxu0 0
        %1109 = vmatpush1.bf16.msra.mxu0 %v1091
        %1110 = vmatprep.subr.bf16.mxu0 0
        %1111 = vmatpush1.bf16.msra.mxu0 %v1092
        %1112 = vmatprep.subr.bf16.mxu0 0
        %1113 = vmatpush1.bf16.msra.mxu0 %v1093
        %1114 = vmatprep.subr.bf16.mxu0 0
        %1115 = vmatpush1.bf16.msra.mxu0 %v1094
        %1116 = vmatprep.subr.bf16.mxu0 0
        %1117 = vmatpush1.bf16.msra.mxu0 %v1095
        %1118 = vmatprep.subr.bf16.mxu0 0
        %1119 = vmatpush1.bf16.msra.mxu0 %v1096
        %1120 = vmatprep.subr.bf16.mxu0 0
        %1121 = vmatpush1.bf16.msra.mxu0 %v1097
        %1122 = vmatprep.subr.bf16.mxu0 0
        %1123 = vmatpush1.bf16.msra.mxu0 0
        %1124 = vmatprep.subr.bf16.mxu0 0
        %1125 = vmatpush1.bf16.msra.mxu0 0
        %1126 = vmatprep.subr.bf16.mxu0 0
        %1127 = vmatpush1.bf16.msra.mxu0 0
        %1128 = vmatprep.subr.bf16.mxu0 0
        %1129 = vmatpush1.bf16.msra.mxu0 0
        %1130 = vmatprep.subr.bf16.mxu0 0
        %1131 = vmatpush1.bf16.msra.mxu0 0
        %1132 = vmatprep.subr.bf16.mxu0 0
        %1133 = vmatpush1.bf16.msra.mxu0 0
        %1134 = vmatprep.subr.bf16.mxu0 0
        %1135 = vmatpush1.bf16.msra.mxu0 0
        %1136 = vmatprep.subr.bf16.mxu0 0
        %1137 = vmatpush1.bf16.msra.mxu0 0
        %1138 = vmatprep.mubr.bf16.mxu0 0
        %1139 = vmatmul.mubr.bf16.gmra.mrb[0].mxu0 %v783
        %v1140 = vpop.f32.mrb[0].mxu0
        %v1141 = vadd.f32 %v996, %v1140
        %v1142 = vpop.f32.mrb[0].mxu0
        %v1143 = vpop.f32.mrb[0].mxu0
        %v1144 = vadd.f32 %v999, %v1143
        %v1145 = vpop.f32.mrb[0].mxu0
        %1146 = vmatprep.mubr.bf16.mxu0 0
        %1147 = vmatmul.mubr.bf16.gmra.mrb[0].mxu0 %v784
        %v1148 = vpop.f32.mrb[0].mxu0
        %v1149 = vadd.f32 %v1004, %v1148
        %v1150 = vpop.f32.mrb[0].mxu0
        %v1151 = vpop.f32.mrb[0].mxu0
        %v1152 = vadd.f32 %v1007, %v1151
        %v1153 = vpop.f32.mrb[0].mxu0
        %1154 = vmatprep.mubr.bf16.mxu0 0
        %1155 = vmatmul.mubr.bf16.gmra.mrb[0].mxu0 %v785
        %v1156 = vpop.f32.mrb[0].mxu0
        %v1157 = vadd.f32 %v1012, %v1156
        %v1158 = vpop.f32.mrb[0].mxu0
        %v1159 = vpop.f32.mrb[0].mxu0
        %v1160 = vadd.f32 %v1015, %v1159
        %v1161 = vpop.f32.mrb[0].mxu0
        %1162 = vmatprep.mubr.bf16.mxu0 0
        %1163 = vmatmul.mubr.bf16.gmra.mrb[0].mxu0 %v786
        %v1164 = vpop.f32.mrb[0].mxu0
        %v1165 = vadd.f32 %v1020, %v1164
        %v1166 = vpop.f32.mrb[0].mxu0
        %v1167 = vpop.f32.mrb[0].mxu0
        %v1168 = vadd.f32 %v1023, %v1167
        %v1169 = vpop.f32.mrb[0].mxu0
        %1170 = vmatprep.mubr.bf16.mxu0 0
        %1171 = vmatmul.mubr.bf16.gmra.mrb[0].mxu0 %v787
        %v1172 = vpop.f32.mrb[0].mxu0
        %v1173 = vadd.f32 %v1028, %v1172
        %v1174 = vpop.f32.mrb[0].mxu0
        %v1175 = vpop.f32.mrb[0].mxu0
        %v1176 = vadd.f32 %v1031, %v1175
        %v1177 = vpop.f32.mrb[0].mxu0
        %1178 = vmatprep.mubr.bf16.mxu0 0
        %1179 = vmatmul.mubr.bf16.gmra.mrb[0].mxu0 %v788
        %v1180 = vpop.f32.mrb[0].mxu0
        %v1181 = vadd.f32 %v1036, %v1180
        %v1182 = vpop.f32.mrb[0].mxu0
        %v1183 = vpop.f32.mrb[0].mxu0
        %v1184 = vadd.f32 %v1039, %v1183
        %v1185 = vpop.f32.mrb[0].mxu0
        %1186 = vmatprep.mubr.bf16.mxu0 0
        %1187 = vmatmul.mubr.bf16.gmra.mrb[0].mxu0 %v789
        %v1188 = vpop.f32.mrb[0].mxu0
        %v1189 = vadd.f32 %v1044, %v1188
        %v1190 = vpop.f32.mrb[0].mxu0
        %v1191 = vpop.f32.mrb[0].mxu0
        %v1192 = vadd.f32 %v1047, %v1191
        %v1193 = vpop.f32.mrb[0].mxu0
        %1194 = vmatprep.mubr.bf16.mxu0 0
        %1195 = vmatmul.mubr.bf16.gmra.mrb[0].mxu0 %v790
        %v1196 = vpop.f32.mrb[0].mxu0
        %v1197 = vadd.f32 %v1052, %v1196
        %v1198 = vpop.f32.mrb[0].mxu0
        %v1199 = vpop.f32.mrb[0].mxu0
        %v1200 = vadd.f32 %v1055, %v1199
        %v1201 = vpop.f32.mrb[0].mxu0
        %1202 = vdwg.mxu0
        %v1203 = vpack.c.bf16 %v222, %v221
        %v1204 = vpack.c.bf16 %v224, %v223
        %v1205 = vpack.c.bf16 %v226, %v225
        %v1206 = vpack.c.bf16 %v228, %v227
        %v1207 = vpack.c.bf16 %v230, %v229
        %v1208 = vpack.c.bf16 %v232, %v231
        %v1209 = vpack.c.bf16 %v234, %v233
        %v1210 = vpack.c.bf16 %v236, %v235
        %s1211 = scalar_lea.vmem [#allocation5], 128
        %v1212 = vld [vmem:[%s1211] sm:$0xf]
        %v1213 = vld [vmem:[%s1211 + $0x4] sm:$0xf]
        %v1214 = vld [vmem:[%s1211 + $0x8] sm:$0xf]
        %v1215 = vld [vmem:[%s1211 + $0xc] sm:$0xf]
        %v1216 = vld [vmem:[%s1211 + $0x10] sm:$0xf]
        %v1217 = vld [vmem:[%s1211 + $0x14] sm:$0xf]
        %v1218 = vld [vmem:[%s1211 + $0x18] sm:$0xf]
        %v1219 = vld [vmem:[%s1211 + $0x1c] sm:$0xf]
        %v1220 = vld [vmem:[%s1211 + $0x20] sm:$0xf]
        %v1221 = vld [vmem:[%s1211 + $0x24] sm:$0xf]
        %v1222 = vld [vmem:[%s1211 + $0x28] sm:$0xf]
        %v1223 = vld [vmem:[%s1211 + $0x2c] sm:$0xf]
        %v1224 = vld [vmem:[%s1211 + $0x30] sm:$0xf]
        %v1225 = vld [vmem:[%s1211 + $0x34] sm:$0xf]
        %v1226 = vld [vmem:[%s1211 + $0x38] sm:$0xf]
        %v1227 = vld [vmem:[%s1211 + $0x3c] sm:$0xf]
        %v1244 = vunpack.c.l.b16 %v1212
        %v1245 = vunpack.c.l.b16 %v1213
        %v1246 = vunpack.c.l.b16 %v1214
        %v1247 = vunpack.c.l.b16 %v1215
        %v1248 = vunpack.c.l.b16 %v1216
        %v1249 = vunpack.c.l.b16 %v1217
        %v1250 = vunpack.c.l.b16 %v1218
        %v1251 = vunpack.c.l.b16 %v1219
        %v1252 = vunpack.c.l.b16 %v1220
        %v1253 = vunpack.c.l.b16 %v1221
        %v1254 = vunpack.c.l.b16 %v1222
        %v1255 = vunpack.c.l.b16 %v1223
        %v1256 = vunpack.c.l.b16 %v1224
        %v1257 = vunpack.c.l.b16 %v1225
        %v1258 = vunpack.c.l.b16 %v1226
        %v1259 = vunpack.c.l.b16 %v1227
        %v1260 = vpack.c.b16 %v1245, %v1244
        %v1261 = vpack.c.b16 %v1247, %v1246
        %v1262 = vpack.c.b16 %v1249, %v1248
        %v1263 = vpack.c.b16 %v1251, %v1250
        %v1264 = vpack.c.b16 %v1253, %v1252
        %v1265 = vpack.c.b16 %v1255, %v1254
        %v1266 = vpack.c.b16 %v1257, %v1256
        %v1267 = vpack.c.b16 %v1259, %v1258
        %1276 = vmatprep.subr.bf16.mxu0 0
        %1277 = vmatpush1.bf16.msra.mxu0 %v1260
        %1278 = vmatprep.subr.bf16.mxu0 0
        %1279 = vmatpush1.bf16.msra.mxu0 %v1261
        %1280 = vmatprep.subr.bf16.mxu0 0
        %1281 = vmatpush1.bf16.msra.mxu0 %v1262
        %1282 = vmatprep.subr.bf16.mxu0 0
        %1283 = vmatpush1.bf16.msra.mxu0 %v1263
        %1284 = vmatprep.subr.bf16.mxu0 0
        %1285 = vmatpush1.bf16.msra.mxu0 %v1264
        %1286 = vmatprep.subr.bf16.mxu0 0
        %1287 = vmatpush1.bf16.msra.mxu0 %v1265
        %1288 = vmatprep.subr.bf16.mxu0 0
        %1289 = vmatpush1.bf16.msra.mxu0 %v1266
        %1290 = vmatprep.subr.bf16.mxu0 0
        %1291 = vmatpush1.bf16.msra.mxu0 %v1267
        %1292 = vmatprep.subr.bf16.mxu0 0
        %1293 = vmatpush1.bf16.msra.mxu0 0
        %1294 = vmatprep.subr.bf16.mxu0 0
        %1295 = vmatpush1.bf16.msra.mxu0 0
        %1296 = vmatprep.subr.bf16.mxu0 0
        %1297 = vmatpush1.bf16.msra.mxu0 0
        %1298 = vmatprep.subr.bf16.mxu0 0
        %1299 = vmatpush1.bf16.msra.mxu0 0
        %1300 = vmatprep.subr.bf16.mxu0 0
        %1301 = vmatpush1.bf16.msra.mxu0 0
        %1302 = vmatprep.subr.bf16.mxu0 0
        %1303 = vmatpush1.bf16.msra.mxu0 0
        %1304 = vmatprep.subr.bf16.mxu0 0
        %1305 = vmatpush1.bf16.msra.mxu0 0
        %1306 = vmatprep.subr.bf16.mxu0 0
        %1307 = vmatpush1.bf16.msra.mxu0 0
        %1308 = vmatprep.mubr.bf16.mxu0 0
        %1309 = vmatmul.mubr.bf16.gmra.mrb[0].mxu0 %v1203
        %v1310 = vpop.f32.mrb[0].mxu0
        %v1311 = vadd.f32 0.0, %v1310
        %v1312 = vpop.f32.mrb[0].mxu0
        %v1313 = vpop.f32.mrb[0].mxu0
        %v1314 = vadd.f32 0.0, %v1313
        %v1315 = vpop.f32.mrb[0].mxu0
        %1316 = vmatprep.mubr.bf16.mxu0 0
        %1317 = vmatmul.mubr.bf16.gmra.mrb[0].mxu0 %v1204
        %v1318 = vpop.f32.mrb[0].mxu0
        %v1319 = vadd.f32 0.0, %v1318
        %v1320 = vpop.f32.mrb[0].mxu0
        %v1321 = vpop.f32.mrb[0].mxu0
        %v1322 = vadd.f32 0.0, %v1321
        %v1323 = vpop.f32.mrb[0].mxu0
        %1324 = vmatprep.mubr.bf16.mxu0 0
        %1325 = vmatmul.mubr.bf16.gmra.mrb[0].mxu0 %v1205
        %v1326 = vpop.f32.mrb[0].mxu0
        %v1327 = vadd.f32 0.0, %v1326
        %v1328 = vpop.f32.mrb[0].mxu0
        %v1329 = vpop.f32.mrb[0].mxu0
        %v1330 = vadd.f32 0.0, %v1329
        %v1331 = vpop.f32.mrb[0].mxu0
        %1332 = vmatprep.mubr.bf16.mxu0 0
        %1333 = vmatmul.mubr.bf16.gmra.mrb[0].mxu0 %v1206
        %v1334 = vpop.f32.mrb[0].mxu0
        %v1335 = vadd.f32 0.0, %v1334
        %v1336 = vpop.f32.mrb[0].mxu0
        %v1337 = vpop.f32.mrb[0].mxu0
        %v1338 = vadd.f32 0.0, %v1337
        %v1339 = vpop.f32.mrb[0].mxu0
        %1340 = vmatprep.mubr.bf16.mxu0 0
        %1341 = vmatmul.mubr.bf16.gmra.mrb[0].mxu0 %v1207
        %v1342 = vpop.f32.mrb[0].mxu0
        %v1343 = vadd.f32 0.0, %v1342
        %v1344 = vpop.f32.mrb[0].mxu0
        %v1345 = vpop.f32.mrb[0].mxu0
        %v1346 = vadd.f32 0.0, %v1345
        %v1347 = vpop.f32.mrb[0].mxu0
        %1348 = vmatprep.mubr.bf16.mxu0 0
        %1349 = vmatmul.mubr.bf16.gmra.mrb[0].mxu0 %v1208
        %v1350 = vpop.f32.mrb[0].mxu0
        %v1351 = vadd.f32 0.0, %v1350
        %v1352 = vpop.f32.mrb[0].mxu0
        %v1353 = vpop.f32.mrb[0].mxu0
        %v1354 = vadd.f32 0.0, %v1353
        %v1355 = vpop.f32.mrb[0].mxu0
        %1356 = vmatprep.mubr.bf16.mxu0 0
        %1357 = vmatmul.mubr.bf16.gmra.mrb[0].mxu0 %v1209
        %v1358 = vpop.f32.mrb[0].mxu0
        %v1359 = vadd.f32 0.0, %v1358
        %v1360 = vpop.f32.mrb[0].mxu0
        %v1361 = vpop.f32.mrb[0].mxu0
        %v1362 = vadd.f32 0.0, %v1361
        %v1363 = vpop.f32.mrb[0].mxu0
        %1364 = vmatprep.mubr.bf16.mxu0 0
        %1365 = vmatmul.mubr.bf16.gmra.mrb[0].mxu0 %v1210
        %v1366 = vpop.f32.mrb[0].mxu0
        %v1367 = vadd.f32 0.0, %v1366
        %v1368 = vpop.f32.mrb[0].mxu0
        %v1369 = vpop.f32.mrb[0].mxu0
        %v1370 = vadd.f32 0.0, %v1369
        %v1371 = vpop.f32.mrb[0].mxu0
        %1372 = vdwg.mxu0
        %v1373 = vadd.f32 %v1141, %v1311
        %v1374 = vadd.f32 %v1144, %v1314
        %v1375 = vadd.f32 %v1149, %v1319
        %v1376 = vadd.f32 %v1152, %v1322
        %v1377 = vadd.f32 %v1157, %v1327
        %v1378 = vadd.f32 %v1160, %v1330
        %v1379 = vadd.f32 %v1165, %v1335
        %v1380 = vadd.f32 %v1168, %v1338
        %v1381 = vadd.f32 %v1173, %v1343
        %v1382 = vadd.f32 %v1176, %v1346
        %v1383 = vadd.f32 %v1181, %v1351
        %v1384 = vadd.f32 %v1184, %v1354
        %v1385 = vadd.f32 %v1189, %v1359
        %v1386 = vadd.f32 %v1192, %v1362
        %v1387 = vadd.f32 %v1197, %v1367
        %v1388 = vadd.f32 %v1200, %v1370
        %v1389 = vrot.slane %v221, 1
        %v1390 = vrot.slane %v222, 1
        %v1391 = vrot.slane %v223, 1
        %v1392 = vrot.slane %v224, 1
        %v1393 = vrot.slane %v225, 1
        %v1394 = vrot.slane %v226, 1
        %v1395 = vrot.slane %v227, 1
        %v1396 = vrot.slane %v228, 1
        %v1397 = vrot.slane %v229, 1
        %v1398 = vrot.slane %v230, 1
        %v1399 = vrot.slane %v231, 1
        %v1400 = vrot.slane %v232, 1
        %v1401 = vrot.slane %v233, 1
        %v1402 = vrot.slane %v234, 1
        %v1403 = vrot.slane %v235, 1
        %v1404 = vrot.slane %v236, 1
        %vm1405 = vcmp.lt.s32.totalorder %v238, 7
        %v1406 = vsel %vm1405, %v1403, %v1404
        %v1407 = vsel %vm1405, %v1402, %v1403
        %v1408 = vsel %vm1405, %v1401, %v1402
        %v1409 = vsel %vm1405, %v1400, %v1401
        %v1410 = vsel %vm1405, %v1399, %v1400
        %v1411 = vsel %vm1405, %v1398, %v1399
        %v1412 = vsel %vm1405, %v1397, %v1398
        %v1413 = vsel %vm1405, %v1396, %v1397
        %v1414 = vsel %vm1405, %v1395, %v1396
        %v1415 = vsel %vm1405, %v1394, %v1395
        %v1416 = vsel %vm1405, %v1393, %v1394
        %v1417 = vsel %vm1405, %v1392, %v1393
        %v1418 = vsel %vm1405, %v1391, %v1392
        %v1419 = vsel %vm1405, %v1390, %v1391
        %v1420 = vsel %vm1405, %v1389, %v1390
        %v1421 = vsel %vm1405, %v1404, %v1389
        %v1422 = vsel %vm622, 1, 0
        %v1423 = vsel %vm623, 1, 0
        %v1424 = vsel %vm624, 1, 0
        %v1425 = vsel %vm625, 1, 0
        %v1426 = vsel %vm626, 1, 0
        %v1427 = vsel %vm627, 1, 0
        %v1428 = vsel %vm628, 1, 0
        %v1429 = vsel %vm629, 1, 0
        %v1430 = vsel %vm630, 1, 0
        %v1431 = vsel %vm631, 1, 0
        %v1432 = vsel %vm632, 1, 0
        %v1433 = vsel %vm633, 1, 0
        %v1434 = vsel %vm634, 1, 0
        %v1435 = vsel %vm635, 1, 0
        %v1436 = vsel %vm636, 1, 0
        %v1437 = vsel %vm637, 1, 0
        %vm1438 = vcmp.eq.s32.totalorder %v1422, 1
        %vm1439 = vcmp.eq.s32.totalorder %v1423, 1
        %vm1440 = vcmp.eq.s32.totalorder %v1424, 1
        %vm1441 = vcmp.eq.s32.totalorder %v1425, 1
        %vm1442 = vcmp.eq.s32.totalorder %v1426, 1
        %vm1443 = vcmp.eq.s32.totalorder %v1427, 1
        %vm1444 = vcmp.eq.s32.totalorder %v1428, 1
        %vm1445 = vcmp.eq.s32.totalorder %v1429, 1
        %vm1446 = vcmp.eq.s32.totalorder %v1430, 1
        %vm1447 = vcmp.eq.s32.totalorder %v1431, 1
        %vm1448 = vcmp.eq.s32.totalorder %v1432, 1
        %vm1449 = vcmp.eq.s32.totalorder %v1433, 1
        %vm1450 = vcmp.eq.s32.totalorder %v1434, 1
        %vm1451 = vcmp.eq.s32.totalorder %v1435, 1
        %vm1452 = vcmp.eq.s32.totalorder %v1436, 1
        %vm1453 = vcmp.eq.s32.totalorder %v1437, 1
        %v1454 = vsel %vm1438, %v1420, 0.0
        %v1455 = vsel %vm1439, %v1419, 0.0
        %v1456 = vsel %vm1440, %v1418, 0.0
        %v1457 = vsel %vm1441, %v1417, 0.0
        %v1458 = vsel %vm1442, %v1416, 0.0
        %v1459 = vsel %vm1443, %v1415, 0.0
        %v1460 = vsel %vm1444, %v1414, 0.0
        %v1461 = vsel %vm1445, %v1413, 0.0
        %v1462 = vsel %vm1446, %v1412, 0.0
        %v1463 = vsel %vm1447, %v1411, 0.0
        %v1464 = vsel %vm1448, %v1410, 0.0
        %v1465 = vsel %vm1449, %v1409, 0.0
        %v1466 = vsel %vm1450, %v1408, 0.0
        %v1467 = vsel %vm1451, %v1407, 0.0
        %v1468 = vsel %vm1452, %v1406, 0.0
        %v1469 = vsel %vm1453, %v1421, 0.0
        %v1470 = vpack.c.bf16 %v1455, %v1454
        %v1471 = vpack.c.bf16 %v1457, %v1456
        %v1472 = vpack.c.bf16 %v1459, %v1458
        %v1473 = vpack.c.bf16 %v1461, %v1460
        %v1474 = vpack.c.bf16 %v1463, %v1462
        %v1475 = vpack.c.bf16 %v1465, %v1464
        %v1476 = vpack.c.bf16 %v1467, %v1466
        %v1477 = vpack.c.bf16 %v1469, %v1468
        %s1478 = scalar_lea.vmem [#allocation5], 192
        %v1479 = vld [vmem:[%s1478] sm:$0xf]
        %v1480 = vld [vmem:[%s1478 + $0x4] sm:$0xf]
        %v1481 = vld [vmem:[%s1478 + $0x8] sm:$0xf]
        %v1482 = vld [vmem:[%s1478 + $0xc] sm:$0xf]
        %v1483 = vld [vmem:[%s1478 + $0x10] sm:$0xf]
        %v1484 = vld [vmem:[%s1478 + $0x14] sm:$0xf]
        %v1485 = vld [vmem:[%s1478 + $0x18] sm:$0xf]
        %v1486 = vld [vmem:[%s1478 + $0x1c] sm:$0xf]
        %v1487 = vld [vmem:[%s1478 + $0x20] sm:$0xf]
        %v1488 = vld [vmem:[%s1478 + $0x24] sm:$0xf]
        %v1489 = vld [vmem:[%s1478 + $0x28] sm:$0xf]
        %v1490 = vld [vmem:[%s1478 + $0x2c] sm:$0xf]
        %v1491 = vld [vmem:[%s1478 + $0x30] sm:$0xf]
        %v1492 = vld [vmem:[%s1478 + $0x34] sm:$0xf]
        %v1493 = vld [vmem:[%s1478 + $0x38] sm:$0xf]
        %v1494 = vld [vmem:[%s1478 + $0x3c] sm:$0xf]
        %v1511 = vunpack.c.l.b16 %v1479
        %v1512 = vunpack.c.l.b16 %v1480
        %v1513 = vunpack.c.l.b16 %v1481
        %v1514 = vunpack.c.l.b16 %v1482
        %v1515 = vunpack.c.l.b16 %v1483
        %v1516 = vunpack.c.l.b16 %v1484
        %v1517 = vunpack.c.l.b16 %v1485
        %v1518 = vunpack.c.l.b16 %v1486
        %v1519 = vunpack.c.l.b16 %v1487
        %v1520 = vunpack.c.l.b16 %v1488
        %v1521 = vunpack.c.l.b16 %v1489
        %v1522 = vunpack.c.l.b16 %v1490
        %v1523 = vunpack.c.l.b16 %v1491
        %v1524 = vunpack.c.l.b16 %v1492
        %v1525 = vunpack.c.l.b16 %v1493
        %v1526 = vunpack.c.l.b16 %v1494
        %v1527 = vpack.c.b16 %v1512, %v1511
        %v1528 = vpack.c.b16 %v1514, %v1513
        %v1529 = vpack.c.b16 %v1516, %v1515
        %v1530 = vpack.c.b16 %v1518, %v1517
        %v1531 = vpack.c.b16 %v1520, %v1519
        %v1532 = vpack.c.b16 %v1522, %v1521
        %v1533 = vpack.c.b16 %v1524, %v1523
        %v1534 = vpack.c.b16 %v1526, %v1525
        %1543 = vmatprep.subr.bf16.mxu0 0
        %1544 = vmatpush1.bf16.msra.mxu0 %v1527
        %1545 = vmatprep.subr.bf16.mxu0 0
        %1546 = vmatpush1.bf16.msra.mxu0 %v1528
        %1547 = vmatprep.subr.bf16.mxu0 0
        %1548 = vmatpush1.bf16.msra.mxu0 %v1529
        %1549 = vmatprep.subr.bf16.mxu0 0
        %1550 = vmatpush1.bf16.msra.mxu0 %v1530
        %1551 = vmatprep.subr.bf16.mxu0 0
        %1552 = vmatpush1.bf16.msra.mxu0 %v1531
        %1553 = vmatprep.subr.bf16.mxu0 0
        %1554 = vmatpush1.bf16.msra.mxu0 %v1532
        %1555 = vmatprep.subr.bf16.mxu0 0
        %1556 = vmatpush1.bf16.msra.mxu0 %v1533
        %1557 = vmatprep.subr.bf16.mxu0 0
        %1558 = vmatpush1.bf16.msra.mxu0 %v1534
        %1559 = vmatprep.subr.bf16.mxu0 0
        %1560 = vmatpush1.bf16.msra.mxu0 0
        %1561 = vmatprep.subr.bf16.mxu0 0
        %1562 = vmatpush1.bf16.msra.mxu0 0
        %1563 = vmatprep.subr.bf16.mxu0 0
        %1564 = vmatpush1.bf16.msra.mxu0 0
        %1565 = vmatprep.subr.bf16.mxu0 0
        %1566 = vmatpush1.bf16.msra.mxu0 0
        %1567 = vmatprep.subr.bf16.mxu0 0
        %1568 = vmatpush1.bf16.msra.mxu0 0
        %1569 = vmatprep.subr.bf16.mxu0 0
        %1570 = vmatpush1.bf16.msra.mxu0 0
        %1571 = vmatprep.subr.bf16.mxu0 0
        %1572 = vmatpush1.bf16.msra.mxu0 0
        %1573 = vmatprep.subr.bf16.mxu0 0
        %1574 = vmatpush1.bf16.msra.mxu0 0
        %1575 = vmatprep.mubr.bf16.mxu0 0
        %1576 = vmatmul.mubr.bf16.gmra.mrb[0].mxu0 %v1470
        %v1577 = vpop.f32.mrb[0].mxu0
        %v1578 = vadd.f32 0.0, %v1577
        %v1579 = vpop.f32.mrb[0].mxu0
        %v1580 = vpop.f32.mrb[0].mxu0
        %v1581 = vadd.f32 0.0, %v1580
        %v1582 = vpop.f32.mrb[0].mxu0
        %1583 = vmatprep.mubr.bf16.mxu0 0
        %1584 = vmatmul.mubr.bf16.gmra.mrb[0].mxu0 %v1471
        %v1585 = vpop.f32.mrb[0].mxu0
        %v1586 = vadd.f32 0.0, %v1585
        %v1587 = vpop.f32.mrb[0].mxu0
        %v1588 = vpop.f32.mrb[0].mxu0
        %v1589 = vadd.f32 0.0, %v1588
        %v1590 = vpop.f32.mrb[0].mxu0
        %1591 = vmatprep.mubr.bf16.mxu0 0
        %1592 = vmatmul.mubr.bf16.gmra.mrb[0].mxu0 %v1472
        %v1593 = vpop.f32.mrb[0].mxu0
        %v1594 = vadd.f32 0.0, %v1593
        %v1595 = vpop.f32.mrb[0].mxu0
        %v1596 = vpop.f32.mrb[0].mxu0
        %v1597 = vadd.f32 0.0, %v1596
        %v1598 = vpop.f32.mrb[0].mxu0
        %1599 = vmatprep.mubr.bf16.mxu0 0
        %1600 = vmatmul.mubr.bf16.gmra.mrb[0].mxu0 %v1473
        %v1601 = vpop.f32.mrb[0].mxu0
        %v1602 = vadd.f32 0.0, %v1601
        %v1603 = vpop.f32.mrb[0].mxu0
        %v1604 = vpop.f32.mrb[0].mxu0
        %v1605 = vadd.f32 0.0, %v1604
        %v1606 = vpop.f32.mrb[0].mxu0
        %1607 = vmatprep.mubr.bf16.mxu0 0
        %1608 = vmatmul.mubr.bf16.gmra.mrb[0].mxu0 %v1474
        %v1609 = vpop.f32.mrb[0].mxu0
        %v1610 = vadd.f32 0.0, %v1609
        %v1611 = vpop.f32.mrb[0].mxu0
        %v1612 = vpop.f32.mrb[0].mxu0
        %v1613 = vadd.f32 0.0, %v1612
        %v1614 = vpop.f32.mrb[0].mxu0
        %1615 = vmatprep.mubr.bf16.mxu0 0
        %1616 = vmatmul.mubr.bf16.gmra.mrb[0].mxu0 %v1475
        %v1617 = vpop.f32.mrb[0].mxu0
        %v1618 = vadd.f32 0.0, %v1617
        %v1619 = vpop.f32.mrb[0].mxu0
        %v1620 = vpop.f32.mrb[0].mxu0
        %v1621 = vadd.f32 0.0, %v1620
        %v1622 = vpop.f32.mrb[0].mxu0
        %1623 = vmatprep.mubr.bf16.mxu0 0
        %1624 = vmatmul.mubr.bf16.gmra.mrb[0].mxu0 %v1476
        %v1625 = vpop.f32.mrb[0].mxu0
        %v1626 = vadd.f32 0.0, %v1625
        %v1627 = vpop.f32.mrb[0].mxu0
        %v1628 = vpop.f32.mrb[0].mxu0
        %v1629 = vadd.f32 0.0, %v1628
        %v1630 = vpop.f32.mrb[0].mxu0
        %1631 = vmatprep.mubr.bf16.mxu0 0
        %1632 = vmatmul.mubr.bf16.gmra.mrb[0].mxu0 %v1477
        %v1633 = vpop.f32.mrb[0].mxu0
        %v1634 = vadd.f32 0.0, %v1633
        %v1635 = vpop.f32.mrb[0].mxu0
        %v1636 = vpop.f32.mrb[0].mxu0
        %v1637 = vadd.f32 0.0, %v1636
        %v1638 = vpop.f32.mrb[0].mxu0
        %1639 = vdwg.mxu0
        %v1640 = vadd.f32 %v1373, %v1578
        %v1641 = vadd.f32 %v1374, %v1581
        %v1642 = vadd.f32 %v1375, %v1586
        %v1643 = vadd.f32 %v1376, %v1589
        %v1644 = vadd.f32 %v1377, %v1594
        %v1645 = vadd.f32 %v1378, %v1597
        %v1646 = vadd.f32 %v1379, %v1602
        %v1647 = vadd.f32 %v1380, %v1605
        %v1648 = vadd.f32 %v1381, %v1610
        %v1649 = vadd.f32 %v1382, %v1613
        %v1650 = vadd.f32 %v1383, %v1618
        %v1651 = vadd.f32 %v1384, %v1621
        %v1652 = vadd.f32 %v1385, %v1626
        %v1653 = vadd.f32 %v1386, %v1629
        %v1654 = vadd.f32 %v1387, %v1634
        %v1655 = vadd.f32 %v1388, %v1637
        %v1656 = vrot.slane %v221, 2
        %v1657 = vrot.slane %v222, 2
        %v1658 = vrot.slane %v223, 2
        %v1659 = vrot.slane %v224, 2
        %v1660 = vrot.slane %v225, 2
        %v1661 = vrot.slane %v226, 2
        %v1662 = vrot.slane %v227, 2
        %v1663 = vrot.slane %v228, 2
        %v1664 = vrot.slane %v229, 2
        %v1665 = vrot.slane %v230, 2
        %v1666 = vrot.slane %v231, 2
        %v1667 = vrot.slane %v232, 2
        %v1668 = vrot.slane %v233, 2
        %v1669 = vrot.slane %v234, 2
        %v1670 = vrot.slane %v235, 2
        %v1671 = vrot.slane %v236, 2
        %vm1672 = vcmp.lt.s32.totalorder %v238, 6
        %v1673 = vsel %vm1672, %v1670, %v1671
        %v1674 = vsel %vm1672, %v1669, %v1670
        %v1675 = vsel %vm1672, %v1668, %v1669
        %v1676 = vsel %vm1672, %v1667, %v1668
        %v1677 = vsel %vm1672, %v1666, %v1667
        %v1678 = vsel %vm1672, %v1665, %v1666
        %v1679 = vsel %vm1672, %v1664, %v1665
        %v1680 = vsel %vm1672, %v1663, %v1664
        %v1681 = vsel %vm1672, %v1662, %v1663
        %v1682 = vsel %vm1672, %v1661, %v1662
        %v1683 = vsel %vm1672, %v1660, %v1661
        %v1684 = vsel %vm1672, %v1659, %v1660
        %v1685 = vsel %vm1672, %v1658, %v1659
        %v1686 = vsel %vm1672, %v1657, %v1658
        %v1687 = vsel %vm1672, %v1656, %v1657
        %v1688 = vsel %vm1672, %v1671, %v1656
        %v1689 = vsel %vm686, 1, 0
        %v1690 = vsel %vm687, 1, 0
        %v1691 = vsel %vm688, 1, 0
        %v1692 = vsel %vm689, 1, 0
        %v1693 = vsel %vm690, 1, 0
        %v1694 = vsel %vm691, 1, 0
        %v1695 = vsel %vm692, 1, 0
        %v1696 = vsel %vm693, 1, 0
        %v1697 = vsel %vm694, 1, 0
        %v1698 = vsel %vm695, 1, 0
        %v1699 = vsel %vm696, 1, 0
        %v1700 = vsel %vm697, 1, 0
        %v1701 = vsel %vm698, 1, 0
        %v1702 = vsel %vm699, 1, 0
        %v1703 = vsel %vm700, 1, 0
        %v1704 = vsel %vm701, 1, 0
        %vm1705 = vcmp.eq.s32.totalorder %v1689, 1
        %vm1706 = vcmp.eq.s32.totalorder %v1690, 1
        %vm1707 = vcmp.eq.s32.totalorder %v1691, 1
        %vm1708 = vcmp.eq.s32.totalorder %v1692, 1
        %vm1709 = vcmp.eq.s32.totalorder %v1693, 1
        %vm1710 = vcmp.eq.s32.totalorder %v1694, 1
        %vm1711 = vcmp.eq.s32.totalorder %v1695, 1
        %vm1712 = vcmp.eq.s32.totalorder %v1696, 1
        %vm1713 = vcmp.eq.s32.totalorder %v1697, 1
        %vm1714 = vcmp.eq.s32.totalorder %v1698, 1
        %vm1715 = vcmp.eq.s32.totalorder %v1699, 1
        %vm1716 = vcmp.eq.s32.totalorder %v1700, 1
        %vm1717 = vcmp.eq.s32.totalorder %v1701, 1
        %vm1718 = vcmp.eq.s32.totalorder %v1702, 1
        %vm1719 = vcmp.eq.s32.totalorder %v1703, 1
        %vm1720 = vcmp.eq.s32.totalorder %v1704, 1
        %v1721 = vsel %vm1705, %v1687, 0.0
        %v1722 = vsel %vm1706, %v1686, 0.0
        %v1723 = vsel %vm1707, %v1685, 0.0
        %v1724 = vsel %vm1708, %v1684, 0.0
        %v1725 = vsel %vm1709, %v1683, 0.0
        %v1726 = vsel %vm1710, %v1682, 0.0
        %v1727 = vsel %vm1711, %v1681, 0.0
        %v1728 = vsel %vm1712, %v1680, 0.0
        %v1729 = vsel %vm1713, %v1679, 0.0
        %v1730 = vsel %vm1714, %v1678, 0.0
        %v1731 = vsel %vm1715, %v1677, 0.0
        %v1732 = vsel %vm1716, %v1676, 0.0
        %v1733 = vsel %vm1717, %v1675, 0.0
        %v1734 = vsel %vm1718, %v1674, 0.0
        %v1735 = vsel %vm1719, %v1673, 0.0
        %v1736 = vsel %vm1720, %v1688, 0.0
        %v1737 = vpack.c.bf16 %v1722, %v1721
        %v1738 = vpack.c.bf16 %v1724, %v1723
        %v1739 = vpack.c.bf16 %v1726, %v1725
        %v1740 = vpack.c.bf16 %v1728, %v1727
        %v1741 = vpack.c.bf16 %v1730, %v1729
        %v1742 = vpack.c.bf16 %v1732, %v1731
        %v1743 = vpack.c.bf16 %v1734, %v1733
        %v1744 = vpack.c.bf16 %v1736, %v1735
        %s1745 = scalar_lea.vmem [#allocation5], 256
        %v1746 = vld [vmem:[%s1745] sm:$0xf]
        %v1747 = vld [vmem:[%s1745 + $0x4] sm:$0xf]
        %v1748 = vld [vmem:[%s1745 + $0x8] sm:$0xf]
        %v1749 = vld [vmem:[%s1745 + $0xc] sm:$0xf]
        %v1750 = vld [vmem:[%s1745 + $0x10] sm:$0xf]
        %v1751 = vld [vmem:[%s1745 + $0x14] sm:$0xf]
        %v1752 = vld [vmem:[%s1745 + $0x18] sm:$0xf]
        %v1753 = vld [vmem:[%s1745 + $0x1c] sm:$0xf]
        %v1754 = vld [vmem:[%s1745 + $0x20] sm:$0xf]
        %v1755 = vld [vmem:[%s1745 + $0x24] sm:$0xf]
        %v1756 = vld [vmem:[%s1745 + $0x28] sm:$0xf]
        %v1757 = vld [vmem:[%s1745 + $0x2c] sm:$0xf]
        %v1758 = vld [vmem:[%s1745 + $0x30] sm:$0xf]
        %v1759 = vld [vmem:[%s1745 + $0x34] sm:$0xf]
        %v1760 = vld [vmem:[%s1745 + $0x38] sm:$0xf]
        %v1761 = vld [vmem:[%s1745 + $0x3c] sm:$0xf]
        %v1778 = vunpack.c.l.b16 %v1746
        %v1779 = vunpack.c.l.b16 %v1747
        %v1780 = vunpack.c.l.b16 %v1748
        %v1781 = vunpack.c.l.b16 %v1749
        %v1782 = vunpack.c.l.b16 %v1750
        %v1783 = vunpack.c.l.b16 %v1751
        %v1784 = vunpack.c.l.b16 %v1752
        %v1785 = vunpack.c.l.b16 %v1753
        %v1786 = vunpack.c.l.b16 %v1754
        %v1787 = vunpack.c.l.b16 %v1755
        %v1788 = vunpack.c.l.b16 %v1756
        %v1789 = vunpack.c.l.b16 %v1757
        %v1790 = vunpack.c.l.b16 %v1758
        %v1791 = vunpack.c.l.b16 %v1759
        %v1792 = vunpack.c.l.b16 %v1760
        %v1793 = vunpack.c.l.b16 %v1761
        %v1794 = vpack.c.b16 %v1779, %v1778
        %v1795 = vpack.c.b16 %v1781, %v1780
        %v1796 = vpack.c.b16 %v1783, %v1782
        %v1797 = vpack.c.b16 %v1785, %v1784
        %v1798 = vpack.c.b16 %v1787, %v1786
        %v1799 = vpack.c.b16 %v1789, %v1788
        %v1800 = vpack.c.b16 %v1791, %v1790
        %v1801 = vpack.c.b16 %v1793, %v1792
        %1810 = vmatprep.subr.bf16.mxu0 0
        %1811 = vmatpush1.bf16.msra.mxu0 %v1794
        %1812 = vmatprep.subr.bf16.mxu0 0
        %1813 = vmatpush1.bf16.msra.mxu0 %v1795
        %1814 = vmatprep.subr.bf16.mxu0 0
        %1815 = vmatpush1.bf16.msra.mxu0 %v1796
        %1816 = vmatprep.subr.bf16.mxu0 0
        %1817 = vmatpush1.bf16.msra.mxu0 %v1797
        %1818 = vmatprep.subr.bf16.mxu0 0
        %1819 = vmatpush1.bf16.msra.mxu0 %v1798
        %1820 = vmatprep.subr.bf16.mxu0 0
        %1821 = vmatpush1.bf16.msra.mxu0 %v1799
        %1822 = vmatprep.subr.bf16.mxu0 0
        %1823 = vmatpush1.bf16.msra.mxu0 %v1800
        %1824 = vmatprep.subr.bf16.mxu0 0
        %1825 = vmatpush1.bf16.msra.mxu0 %v1801
        %1826 = vmatprep.subr.bf16.mxu0 0
        %1827 = vmatpush1.bf16.msra.mxu0 0
        %1828 = vmatprep.subr.bf16.mxu0 0
        %1829 = vmatpush1.bf16.msra.mxu0 0
        %1830 = vmatprep.subr.bf16.mxu0 0
        %1831 = vmatpush1.bf16.msra.mxu0 0
        %1832 = vmatprep.subr.bf16.mxu0 0
        %1833 = vmatpush1.bf16.msra.mxu0 0
        %1834 = vmatprep.subr.bf16.mxu0 0
        %1835 = vmatpush1.bf16.msra.mxu0 0
        %1836 = vmatprep.subr.bf16.mxu0 0
        %1837 = vmatpush1.bf16.msra.mxu0 0
        %1838 = vmatprep.subr.bf16.mxu0 0
        %1839 = vmatpush1.bf16.msra.mxu0 0
        %1840 = vmatprep.subr.bf16.mxu0 0
        %1841 = vmatpush1.bf16.msra.mxu0 0
        %1842 = vmatprep.mubr.bf16.mxu0 0
        %1843 = vmatmul.mubr.bf16.gmra.mrb[0].mxu0 %v1737
        %v1844 = vpop.f32.mrb[0].mxu0
        %v1845 = vadd.f32 0.0, %v1844
        %v1846 = vpop.f32.mrb[0].mxu0
        %v1847 = vpop.f32.mrb[0].mxu0
        %v1848 = vadd.f32 0.0, %v1847
        %v1849 = vpop.f32.mrb[0].mxu0
        %1850 = vmatprep.mubr.bf16.mxu0 0
        %1851 = vmatmul.mubr.bf16.gmra.mrb[0].mxu0 %v1738
        %v1852 = vpop.f32.mrb[0].mxu0
        %v1853 = vadd.f32 0.0, %v1852
        %v1854 = vpop.f32.mrb[0].mxu0
        %v1855 = vpop.f32.mrb[0].mxu0
        %v1856 = vadd.f32 0.0, %v1855
        %v1857 = vpop.f32.mrb[0].mxu0
        %1858 = vmatprep.mubr.bf16.mxu0 0
        %1859 = vmatmul.mubr.bf16.gmra.mrb[0].mxu0 %v1739
        %v1860 = vpop.f32.mrb[0].mxu0
        %v1861 = vadd.f32 0.0, %v1860
        %v1862 = vpop.f32.mrb[0].mxu0
        %v1863 = vpop.f32.mrb[0].mxu0
        %v1864 = vadd.f32 0.0, %v1863
        %v1865 = vpop.f32.mrb[0].mxu0
        %1866 = vmatprep.mubr.bf16.mxu0 0
        %1867 = vmatmul.mubr.bf16.gmra.mrb[0].mxu0 %v1740
        %v1868 = vpop.f32.mrb[0].mxu0
        %v1869 = vadd.f32 0.0, %v1868
        %v1870 = vpop.f32.mrb[0].mxu0
        %v1871 = vpop.f32.mrb[0].mxu0
        %v1872 = vadd.f32 0.0, %v1871
        %v1873 = vpop.f32.mrb[0].mxu0
        %1874 = vmatprep.mubr.bf16.mxu0 0
        %1875 = vmatmul.mubr.bf16.gmra.mrb[0].mxu0 %v1741
        %v1876 = vpop.f32.mrb[0].mxu0
        %v1877 = vadd.f32 0.0, %v1876
        %v1878 = vpop.f32.mrb[0].mxu0
        %v1879 = vpop.f32.mrb[0].mxu0
        %v1880 = vadd.f32 0.0, %v1879
        %v1881 = vpop.f32.mrb[0].mxu0
        %1882 = vmatprep.mubr.bf16.mxu0 0
        %1883 = vmatmul.mubr.bf16.gmra.mrb[0].mxu0 %v1742
        %v1884 = vpop.f32.mrb[0].mxu0
        %v1885 = vadd.f32 0.0, %v1884
        %v1886 = vpop.f32.mrb[0].mxu0
        %v1887 = vpop.f32.mrb[0].mxu0
        %v1888 = vadd.f32 0.0, %v1887
        %v1889 = vpop.f32.mrb[0].mxu0
        %1890 = vmatprep.mubr.bf16.mxu0 0
        %1891 = vmatmul.mubr.bf16.gmra.mrb[0].mxu0 %v1743
        %v1892 = vpop.f32.mrb[0].mxu0
        %v1893 = vadd.f32 0.0, %v1892
        %v1894 = vpop.f32.mrb[0].mxu0
        %v1895 = vpop.f32.mrb[0].mxu0
        %v1896 = vadd.f32 0.0, %v1895
        %v1897 = vpop.f32.mrb[0].mxu0
        %1898 = vmatprep.mubr.bf16.mxu0 0
        %1899 = vmatmul.mubr.bf16.gmra.mrb[0].mxu0 %v1744
        %v1900 = vpop.f32.mrb[0].mxu0
        %v1901 = vadd.f32 0.0, %v1900
        %v1902 = vpop.f32.mrb[0].mxu0
        %v1903 = vpop.f32.mrb[0].mxu0
        %v1904 = vadd.f32 0.0, %v1903
        %v1905 = vpop.f32.mrb[0].mxu0
        %1906 = vdwg.mxu0
        %v1907 = vadd.f32 %v1640, %v1845
        %v1908 = vadd.f32 %v1641, %v1848
        %v1909 = vadd.f32 %v1642, %v1853
        %v1910 = vadd.f32 %v1643, %v1856
        %v1911 = vadd.f32 %v1644, %v1861
        %v1912 = vadd.f32 %v1645, %v1864
        %v1913 = vadd.f32 %v1646, %v1869
        %v1914 = vadd.f32 %v1647, %v1872
        %v1915 = vadd.f32 %v1648, %v1877
        %v1916 = vadd.f32 %v1649, %v1880
        %v1917 = vadd.f32 %v1650, %v1885
        %v1918 = vadd.f32 %v1651, %v1888
        %v1919 = vadd.f32 %v1652, %v1893
        %v1920 = vadd.f32 %v1653, %v1896
        %v1921 = vadd.f32 %v1654, %v1901
        %v1922 = vadd.f32 %v1655, %v1904
        %v1923 = vmax.f32 %v1907, 0.0
        %v1924 = vmax.f32 %v1908, 0.0
        %v1925 = vmax.f32 %v1909, 0.0
        %v1926 = vmax.f32 %v1910, 0.0
        %v1927 = vmax.f32 %v1911, 0.0
        %v1928 = vmax.f32 %v1912, 0.0
        %v1929 = vmax.f32 %v1913, 0.0
        %v1930 = vmax.f32 %v1914, 0.0
        %v1931 = vmax.f32 %v1915, 0.0
        %v1932 = vmax.f32 %v1916, 0.0
        %v1933 = vmax.f32 %v1917, 0.0
        %v1934 = vmax.f32 %v1918, 0.0
        %v1935 = vmax.f32 %v1919, 0.0
        %v1936 = vmax.f32 %v1920, 0.0
        %v1937 = vmax.f32 %v1921, 0.0
        %v1938 = vmax.f32 %v1922, 0.0
        %v1939 = vrot.slane %v1923, 6
        %v1940 = vrot.slane %v1924, 6
        %v1941 = vrot.slane %v1925, 6
        %v1942 = vrot.slane %v1926, 6
        %v1943 = vrot.slane %v1927, 6
        %v1944 = vrot.slane %v1928, 6
        %v1945 = vrot.slane %v1929, 6
        %v1946 = vrot.slane %v1930, 6
        %v1947 = vrot.slane %v1931, 6
        %v1948 = vrot.slane %v1932, 6
        %v1949 = vrot.slane %v1933, 6
        %v1950 = vrot.slane %v1934, 6
        %v1951 = vrot.slane %v1935, 6
        %v1952 = vrot.slane %v1936, 6
        %v1953 = vrot.slane %v1937, 6
        %v1954 = vrot.slane %v1938, 6
        %v1955 = vsel %vm718, %v1953, %v1954
        %v1956 = vsel %vm718, %v1952, %v1953
        %v1957 = vsel %vm718, %v1951, %v1952
        %v1958 = vsel %vm718, %v1950, %v1951
        %v1959 = vsel %vm718, %v1949, %v1950
        %v1960 = vsel %vm718, %v1948, %v1949
        %v1961 = vsel %vm718, %v1947, %v1948
        %v1962 = vsel %vm718, %v1946, %v1947
        %v1963 = vsel %vm718, %v1945, %v1946
        %v1964 = vsel %vm718, %v1944, %v1945
        %v1965 = vsel %vm718, %v1943, %v1944
        %v1966 = vsel %vm718, %v1942, %v1943
        %v1967 = vsel %vm718, %v1941, %v1942
        %v1968 = vsel %vm718, %v1940, %v1941
        %v1969 = vsel %vm718, %v1939, %v1940
        %v1970 = vsel %vm718, %v1954, %v1939
        %v1971 = vsel %vm751, %v1970, 0.0
        %v1972 = vsel %vm752, %v1969, 0.0
        %v1973 = vsel %vm753, %v1968, 0.0
        %v1974 = vsel %vm754, %v1967, 0.0
        %v1975 = vsel %vm755, %v1966, 0.0
        %v1976 = vsel %vm756, %v1965, 0.0
        %v1977 = vsel %vm757, %v1964, 0.0
        %v1978 = vsel %vm758, %v1963, 0.0
        %v1979 = vsel %vm759, %v1962, 0.0
        %v1980 = vsel %vm760, %v1961, 0.0
        %v1981 = vsel %vm761, %v1960, 0.0
        %v1982 = vsel %vm762, %v1959, 0.0
        %v1983 = vsel %vm763, %v1958, 0.0
        %v1984 = vsel %vm764, %v1957, 0.0
        %v1985 = vsel %vm765, %v1956, 0.0
        %v1986 = vsel %vm766, %v1955, 0.0
        %v1987 = vpack.c.bf16 %v1972, %v1971
        %v1988 = vpack.c.bf16 %v1974, %v1973
        %v1989 = vpack.c.bf16 %v1976, %v1975
        %v1990 = vpack.c.bf16 %v1978, %v1977
        %v1991 = vpack.c.bf16 %v1980, %v1979
        %v1992 = vpack.c.bf16 %v1982, %v1981
        %v1993 = vpack.c.bf16 %v1984, %v1983
        %v1994 = vpack.c.bf16 %v1986, %v1985
        %v1995 = vld [vmem:[#allocation7] sm:$0xf]
        %v1996 = vld [vmem:[#allocation7 + $0x4] sm:$0xf]
        %v1997 = vld [vmem:[#allocation7 + $0x8] sm:$0xf]
        %v1998 = vld [vmem:[#allocation7 + $0xc] sm:$0xf]
        %v1999 = vld [vmem:[#allocation7 + $0x10] sm:$0xf]
        %v2000 = vld [vmem:[#allocation7 + $0x14] sm:$0xf]
        %v2001 = vld [vmem:[#allocation7 + $0x18] sm:$0xf]
        %v2002 = vld [vmem:[#allocation7 + $0x1c] sm:$0xf]
        %v2003 = vld [vmem:[#allocation7 + $0x20] sm:$0xf]
        %v2004 = vld [vmem:[#allocation7 + $0x24] sm:$0xf]
        %v2005 = vld [vmem:[#allocation7 + $0x28] sm:$0xf]
        %v2006 = vld [vmem:[#allocation7 + $0x2c] sm:$0xf]
        %v2007 = vld [vmem:[#allocation7 + $0x30] sm:$0xf]
        %v2008 = vld [vmem:[#allocation7 + $0x34] sm:$0xf]
        %v2009 = vld [vmem:[#allocation7 + $0x38] sm:$0xf]
        %v2010 = vld [vmem:[#allocation7 + $0x3c] sm:$0xf]
        %v2011 = vrot.slane %v1923, 7
        %v2012 = vrot.slane %v1924, 7
        %v2013 = vrot.slane %v1925, 7
        %v2014 = vrot.slane %v1926, 7
        %v2015 = vrot.slane %v1927, 7
        %v2016 = vrot.slane %v1928, 7
        %v2017 = vrot.slane %v1929, 7
        %v2018 = vrot.slane %v1930, 7
        %v2019 = vrot.slane %v1931, 7
        %v2020 = vrot.slane %v1932, 7
        %v2021 = vrot.slane %v1933, 7
        %v2022 = vrot.slane %v1934, 7
        %v2023 = vrot.slane %v1935, 7
        %v2024 = vrot.slane %v1936, 7
        %v2025 = vrot.slane %v1937, 7
        %v2026 = vrot.slane %v1938, 7
        %v2027 = vsel %vm823, %v2025, %v2026
        %v2028 = vsel %vm823, %v2024, %v2025
        %v2029 = vsel %vm823, %v2023, %v2024
        %v2030 = vsel %vm823, %v2022, %v2023
        %v2031 = vsel %vm823, %v2021, %v2022
        %v2032 = vsel %vm823, %v2020, %v2021
        %v2033 = vsel %vm823, %v2019, %v2020
        %v2034 = vsel %vm823, %v2018, %v2019
        %v2035 = vsel %vm823, %v2017, %v2018
        %v2036 = vsel %vm823, %v2016, %v2017
        %v2037 = vsel %vm823, %v2015, %v2016
        %v2038 = vsel %vm823, %v2014, %v2015
        %v2039 = vsel %vm823, %v2013, %v2014
        %v2040 = vsel %vm823, %v2012, %v2013
        %v2041 = vsel %vm823, %v2011, %v2012
        %v2042 = vsel %vm823, %v2026, %v2011
        %v2043 = vsel %vm856, %v2042, 0.0
        %v2044 = vsel %vm857, %v2041, 0.0
        %v2045 = vsel %vm858, %v2040, 0.0
        %v2046 = vsel %vm859, %v2039, 0.0
        %v2047 = vsel %vm860, %v2038, 0.0
        %v2048 = vsel %vm861, %v2037, 0.0
        %v2049 = vsel %vm862, %v2036, 0.0
        %v2050 = vsel %vm863, %v2035, 0.0
        %v2051 = vsel %vm864, %v2034, 0.0
        %v2052 = vsel %vm865, %v2033, 0.0
        %v2053 = vsel %vm866, %v2032, 0.0
        %v2054 = vsel %vm867, %v2031, 0.0
        %v2055 = vsel %vm868, %v2030, 0.0
        %v2056 = vsel %vm869, %v2029, 0.0
        %v2057 = vsel %vm870, %v2028, 0.0
        %v2058 = vsel %vm871, %v2027, 0.0
        %v2059 = vpack.c.bf16 %v2044, %v2043
        %v2060 = vpack.c.bf16 %v2046, %v2045
        %v2061 = vpack.c.bf16 %v2048, %v2047
        %v2062 = vpack.c.bf16 %v2050, %v2049
        %v2063 = vpack.c.bf16 %v2052, %v2051
        %v2064 = vpack.c.bf16 %v2054, %v2053
        %v2065 = vpack.c.bf16 %v2056, %v2055
        %v2066 = vpack.c.bf16 %v2058, %v2057
        %s2067 = scalar_lea.vmem [#allocation7], 64
        %v2068 = vld [vmem:[%s2067] sm:$0xf]
        %v2069 = vld [vmem:[%s2067 + $0x4] sm:$0xf]
        %v2070 = vld [vmem:[%s2067 + $0x8] sm:$0xf]
        %v2071 = vld [vmem:[%s2067 + $0xc] sm:$0xf]
        %v2072 = vld [vmem:[%s2067 + $0x10] sm:$0xf]
        %v2073 = vld [vmem:[%s2067 + $0x14] sm:$0xf]
        %v2074 = vld [vmem:[%s2067 + $0x18] sm:$0xf]
        %v2075 = vld [vmem:[%s2067 + $0x1c] sm:$0xf]
        %v2076 = vld [vmem:[%s2067 + $0x20] sm:$0xf]
        %v2077 = vld [vmem:[%s2067 + $0x24] sm:$0xf]
        %v2078 = vld [vmem:[%s2067 + $0x28] sm:$0xf]
        %v2079 = vld [vmem:[%s2067 + $0x2c] sm:$0xf]
        %v2080 = vld [vmem:[%s2067 + $0x30] sm:$0xf]
        %v2081 = vld [vmem:[%s2067 + $0x34] sm:$0xf]
        %v2082 = vld [vmem:[%s2067 + $0x38] sm:$0xf]
        %v2083 = vld [vmem:[%s2067 + $0x3c] sm:$0xf]
        %v2100 = vunpack.c.l.b16 %v2068
        %v2101 = vunpack.c.l.b16 %v2069
        %v2102 = vunpack.c.l.b16 %v2070
        %v2103 = vunpack.c.l.b16 %v2071
        %v2104 = vunpack.c.l.b16 %v2072
        %v2105 = vunpack.c.l.b16 %v2073
        %v2106 = vunpack.c.l.b16 %v2074
        %v2107 = vunpack.c.l.b16 %v2075
        %v2108 = vunpack.c.l.b16 %v2076
        %v2109 = vunpack.c.l.b16 %v2077
        %v2110 = vunpack.c.l.b16 %v2078
        %v2111 = vunpack.c.l.b16 %v2079
        %v2112 = vunpack.c.l.b16 %v2080
        %v2113 = vunpack.c.l.b16 %v2081
        %v2114 = vunpack.c.l.b16 %v2082
        %v2115 = vunpack.c.l.b16 %v2083
        %v2116 = vpack.c.b16 %v2101, %v2100
        %v2117 = vpack.c.b16 %v2103, %v2102
        %v2118 = vpack.c.b16 %v2105, %v2104
        %v2119 = vpack.c.b16 %v2107, %v2106
        %v2120 = vpack.c.b16 %v2109, %v2108
        %v2121 = vpack.c.b16 %v2111, %v2110
        %v2122 = vpack.c.b16 %v2113, %v2112
        %v2123 = vpack.c.b16 %v2115, %v2114
        %2132 = vmatprep.subr.bf16.mxu0 0
        %2133 = vmatpush1.bf16.msra.mxu0 %v2116
        %2134 = vmatprep.subr.bf16.mxu0 0
        %2135 = vmatpush1.bf16.msra.mxu0 %v2117
        %2136 = vmatprep.subr.bf16.mxu0 0
        %2137 = vmatpush1.bf16.msra.mxu0 %v2118
        %2138 = vmatprep.subr.bf16.mxu0 0
        %2139 = vmatpush1.bf16.msra.mxu0 %v2119
        %2140 = vmatprep.subr.bf16.mxu0 0
        %2141 = vmatpush1.bf16.msra.mxu0 %v2120
        %2142 = vmatprep.subr.bf16.mxu0 0
        %2143 = vmatpush1.bf16.msra.mxu0 %v2121
        %2144 = vmatprep.subr.bf16.mxu0 0
        %2145 = vmatpush1.bf16.msra.mxu0 %v2122
        %2146 = vmatprep.subr.bf16.mxu0 0
        %2147 = vmatpush1.bf16.msra.mxu0 %v2123
        %2148 = vmatprep.subr.bf16.mxu0 0
        %2149 = vmatpush1.bf16.msra.mxu0 0
        %2150 = vmatprep.subr.bf16.mxu0 0
        %2151 = vmatpush1.bf16.msra.mxu0 0
        %2152 = vmatprep.subr.bf16.mxu0 0
        %2153 = vmatpush1.bf16.msra.mxu0 0
        %2154 = vmatprep.subr.bf16.mxu0 0
        %2155 = vmatpush1.bf16.msra.mxu0 0
        %2156 = vmatprep.subr.bf16.mxu0 0
        %2157 = vmatpush1.bf16.msra.mxu0 0
        %2158 = vmatprep.subr.bf16.mxu0 0
        %2159 = vmatpush1.bf16.msra.mxu0 0
        %2160 = vmatprep.subr.bf16.mxu0 0
        %2161 = vmatpush1.bf16.msra.mxu0 0
        %2162 = vmatprep.subr.bf16.mxu0 0
        %2163 = vmatpush1.bf16.msra.mxu0 0
        %2164 = vmatprep.mubr.bf16.mxu0 0
        %2165 = vmatmul.mubr.bf16.gmra.mrb[0].mxu0 %v2059
        %v2166 = vpop.f32.mrb[0].mxu0
        %v2167 = vadd.f32 0.0, %v2166
        %v2168 = vpop.f32.mrb[0].mxu0
        %v2169 = vpop.f32.mrb[0].mxu0
        %v2170 = vadd.f32 0.0, %v2169
        %v2171 = vpop.f32.mrb[0].mxu0
        %2172 = vmatprep.mubr.bf16.mxu0 0
        %2173 = vmatmul.mubr.bf16.gmra.mrb[0].mxu0 %v2060
        %v2174 = vpop.f32.mrb[0].mxu0
        %v2175 = vadd.f32 0.0, %v2174
        %v2176 = vpop.f32.mrb[0].mxu0
        %v2177 = vpop.f32.mrb[0].mxu0
        %v2178 = vadd.f32 0.0, %v2177
        %v2179 = vpop.f32.mrb[0].mxu0
        %2180 = vmatprep.mubr.bf16.mxu0 0
        %2181 = vmatmul.mubr.bf16.gmra.mrb[0].mxu0 %v2061
        %v2182 = vpop.f32.mrb[0].mxu0
        %v2183 = vadd.f32 0.0, %v2182
        %v2184 = vpop.f32.mrb[0].mxu0
        %v2185 = vpop.f32.mrb[0].mxu0
        %v2186 = vadd.f32 0.0, %v2185
        %v2187 = vpop.f32.mrb[0].mxu0
        %2188 = vmatprep.mubr.bf16.mxu0 0
        %2189 = vmatmul.mubr.bf16.gmra.mrb[0].mxu0 %v2062
        %v2190 = vpop.f32.mrb[0].mxu0
        %v2191 = vadd.f32 0.0, %v2190
        %v2192 = vpop.f32.mrb[0].mxu0
        %v2193 = vpop.f32.mrb[0].mxu0
        %v2194 = vadd.f32 0.0, %v2193
        %v2195 = vpop.f32.mrb[0].mxu0
        %2196 = vmatprep.mubr.bf16.mxu0 0
        %2197 = vmatmul.mubr.bf16.gmra.mrb[0].mxu0 %v2063
        %v2198 = vpop.f32.mrb[0].mxu0
        %v2199 = vadd.f32 0.0, %v2198
        %v2200 = vpop.f32.mrb[0].mxu0
        %v2201 = vpop.f32.mrb[0].mxu0
        %v2202 = vadd.f32 0.0, %v2201
        %v2203 = vpop.f32.mrb[0].mxu0
        %2204 = vmatprep.mubr.bf16.mxu0 0
        %2205 = vmatmul.mubr.bf16.gmra.mrb[0].mxu0 %v2064
        %v2206 = vpop.f32.mrb[0].mxu0
        %v2207 = vadd.f32 0.0, %v2206
        %v2208 = vpop.f32.mrb[0].mxu0
        %v2209 = vpop.f32.mrb[0].mxu0
        %v2210 = vadd.f32 0.0, %v2209
        %v2211 = vpop.f32.mrb[0].mxu0
        %2212 = vmatprep.mubr.bf16.mxu0 0
        %2213 = vmatmul.mubr.bf16.gmra.mrb[0].mxu0 %v2065
        %v2214 = vpop.f32.mrb[0].mxu0
        %v2215 = vadd.f32 0.0, %v2214
        %v2216 = vpop.f32.mrb[0].mxu0
        %v2217 = vpop.f32.mrb[0].mxu0
        %v2218 = vadd.f32 0.0, %v2217
        %v2219 = vpop.f32.mrb[0].mxu0
        %2220 = vmatprep.mubr.bf16.mxu0 0
        %2221 = vmatmul.mubr.bf16.gmra.mrb[0].mxu0 %v2066
        %v2222 = vpop.f32.mrb[0].mxu0
        %v2223 = vadd.f32 0.0, %v2222
        %v2224 = vpop.f32.mrb[0].mxu0
        %v2225 = vpop.f32.mrb[0].mxu0
        %v2226 = vadd.f32 0.0, %v2225
        %v2227 = vpop.f32.mrb[0].mxu0
        %2228 = vdwg.mxu0
        %v2245 = vunpack.c.l.b16 %v1995
        %v2246 = vunpack.c.l.b16 %v1996
        %v2247 = vunpack.c.l.b16 %v1997
        %v2248 = vunpack.c.l.b16 %v1998
        %v2249 = vunpack.c.l.b16 %v1999
        %v2250 = vunpack.c.l.b16 %v2000
        %v2251 = vunpack.c.l.b16 %v2001
        %v2252 = vunpack.c.l.b16 %v2002
        %v2253 = vunpack.c.l.b16 %v2003
        %v2254 = vunpack.c.l.b16 %v2004
        %v2255 = vunpack.c.l.b16 %v2005
        %v2256 = vunpack.c.l.b16 %v2006
        %v2257 = vunpack.c.l.b16 %v2007
        %v2258 = vunpack.c.l.b16 %v2008
        %v2259 = vunpack.c.l.b16 %v2009
        %v2260 = vunpack.c.l.b16 %v2010
        %v2261 = vpack.c.b16 %v2246, %v2245
        %v2262 = vpack.c.b16 %v2248, %v2247
        %v2263 = vpack.c.b16 %v2250, %v2249
        %v2264 = vpack.c.b16 %v2252, %v2251
        %v2265 = vpack.c.b16 %v2254, %v2253
        %v2266 = vpack.c.b16 %v2256, %v2255
        %v2267 = vpack.c.b16 %v2258, %v2257
        %v2268 = vpack.c.b16 %v2260, %v2259
        %2277 = vmatprep.subr.bf16.mxu0 0
        %2278 = vmatpush1.bf16.msra.mxu0 %v2261
        %2279 = vmatprep.subr.bf16.mxu0 0
        %2280 = vmatpush1.bf16.msra.mxu0 %v2262
        %2281 = vmatprep.subr.bf16.mxu0 0
        %2282 = vmatpush1.bf16.msra.mxu0 %v2263
        %2283 = vmatprep.subr.bf16.mxu0 0
        %2284 = vmatpush1.bf16.msra.mxu0 %v2264
        %2285 = vmatprep.subr.bf16.mxu0 0
        %2286 = vmatpush1.bf16.msra.mxu0 %v2265
        %2287 = vmatprep.subr.bf16.mxu0 0
        %2288 = vmatpush1.bf16.msra.mxu0 %v2266
        %2289 = vmatprep.subr.bf16.mxu0 0
        %2290 = vmatpush1.bf16.msra.mxu0 %v2267
        %2291 = vmatprep.subr.bf16.mxu0 0
        %2292 = vmatpush1.bf16.msra.mxu0 %v2268
        %2293 = vmatprep.subr.bf16.mxu0 0
        %2294 = vmatpush1.bf16.msra.mxu0 0
        %2295 = vmatprep.subr.bf16.mxu0 0
        %2296 = vmatpush1.bf16.msra.mxu0 0
        %2297 = vmatprep.subr.bf16.mxu0 0
        %2298 = vmatpush1.bf16.msra.mxu0 0
        %2299 = vmatprep.subr.bf16.mxu0 0
        %2300 = vmatpush1.bf16.msra.mxu0 0
        %2301 = vmatprep.subr.bf16.mxu0 0
        %2302 = vmatpush1.bf16.msra.mxu0 0
        %2303 = vmatprep.subr.bf16.mxu0 0
        %2304 = vmatpush1.bf16.msra.mxu0 0
        %2305 = vmatprep.subr.bf16.mxu0 0
        %2306 = vmatpush1.bf16.msra.mxu0 0
        %2307 = vmatprep.subr.bf16.mxu0 0
        %2308 = vmatpush1.bf16.msra.mxu0 0
        %2309 = vmatprep.mubr.bf16.mxu0 0
        %2310 = vmatmul.mubr.bf16.gmra.mrb[0].mxu0 %v1987
        %v2311 = vpop.f32.mrb[0].mxu0
        %v2312 = vadd.f32 %v2167, %v2311
        %v2313 = vpop.f32.mrb[0].mxu0
        %v2314 = vpop.f32.mrb[0].mxu0
        %v2315 = vadd.f32 %v2170, %v2314
        %v2316 = vpop.f32.mrb[0].mxu0
        %2317 = vmatprep.mubr.bf16.mxu0 0
        %2318 = vmatmul.mubr.bf16.gmra.mrb[0].mxu0 %v1988
        %v2319 = vpop.f32.mrb[0].mxu0
        %v2320 = vadd.f32 %v2175, %v2319
        %v2321 = vpop.f32.mrb[0].mxu0
        %v2322 = vpop.f32.mrb[0].mxu0
        %v2323 = vadd.f32 %v2178, %v2322
        %v2324 = vpop.f32.mrb[0].mxu0
        %2325 = vmatprep.mubr.bf16.mxu0 0
        %2326 = vmatmul.mubr.bf16.gmra.mrb[0].mxu0 %v1989
        %v2327 = vpop.f32.mrb[0].mxu0
        %v2328 = vadd.f32 %v2183, %v2327
        %v2329 = vpop.f32.mrb[0].mxu0
        %v2330 = vpop.f32.mrb[0].mxu0
        %v2331 = vadd.f32 %v2186, %v2330
        %v2332 = vpop.f32.mrb[0].mxu0
        %2333 = vmatprep.mubr.bf16.mxu0 0
        %2334 = vmatmul.mubr.bf16.gmra.mrb[0].mxu0 %v1990
        %v2335 = vpop.f32.mrb[0].mxu0
        %v2336 = vadd.f32 %v2191, %v2335
        %v2337 = vpop.f32.mrb[0].mxu0
        %v2338 = vpop.f32.mrb[0].mxu0
        %v2339 = vadd.f32 %v2194, %v2338
        %v2340 = vpop.f32.mrb[0].mxu0
        %2341 = vmatprep.mubr.bf16.mxu0 0
        %2342 = vmatmul.mubr.bf16.gmra.mrb[0].mxu0 %v1991
        %v2343 = vpop.f32.mrb[0].mxu0
        %v2344 = vadd.f32 %v2199, %v2343
        %v2345 = vpop.f32.mrb[0].mxu0
        %v2346 = vpop.f32.mrb[0].mxu0
        %v2347 = vadd.f32 %v2202, %v2346
        %v2348 = vpop.f32.mrb[0].mxu0
        %2349 = vmatprep.mubr.bf16.mxu0 0
        %2350 = vmatmul.mubr.bf16.gmra.mrb[0].mxu0 %v1992
        %v2351 = vpop.f32.mrb[0].mxu0
        %v2352 = vadd.f32 %v2207, %v2351
        %v2353 = vpop.f32.mrb[0].mxu0
        %v2354 = vpop.f32.mrb[0].mxu0
        %v2355 = vadd.f32 %v2210, %v2354
        %v2356 = vpop.f32.mrb[0].mxu0
        %2357 = vmatprep.mubr.bf16.mxu0 0
        %2358 = vmatmul.mubr.bf16.gmra.mrb[0].mxu0 %v1993
        %v2359 = vpop.f32.mrb[0].mxu0
        %v2360 = vadd.f32 %v2215, %v2359
        %v2361 = vpop.f32.mrb[0].mxu0
        %v2362 = vpop.f32.mrb[0].mxu0
        %v2363 = vadd.f32 %v2218, %v2362
        %v2364 = vpop.f32.mrb[0].mxu0
        %2365 = vmatprep.mubr.bf16.mxu0 0
        %2366 = vmatmul.mubr.bf16.gmra.mrb[0].mxu0 %v1994
        %v2367 = vpop.f32.mrb[0].mxu0
        %v2368 = vadd.f32 %v2223, %v2367
        %v2369 = vpop.f32.mrb[0].mxu0
        %v2370 = vpop.f32.mrb[0].mxu0
        %v2371 = vadd.f32 %v2226, %v2370
        %v2372 = vpop.f32.mrb[0].mxu0
        %2373 = vdwg.mxu0
        %v2374 = vpack.c.bf16 %v1924, %v1923
        %v2375 = vpack.c.bf16 %v1926, %v1925
        %v2376 = vpack.c.bf16 %v1928, %v1927
        %v2377 = vpack.c.bf16 %v1930, %v1929
        %v2378 = vpack.c.bf16 %v1932, %v1931
        %v2379 = vpack.c.bf16 %v1934, %v1933
        %v2380 = vpack.c.bf16 %v1936, %v1935
        %v2381 = vpack.c.bf16 %v1938, %v1937
        %s2382 = scalar_lea.vmem [#allocation7], 128
        %v2383 = vld [vmem:[%s2382] sm:$0xf]
        %v2384 = vld [vmem:[%s2382 + $0x4] sm:$0xf]
        %v2385 = vld [vmem:[%s2382 + $0x8] sm:$0xf]
        %v2386 = vld [vmem:[%s2382 + $0xc] sm:$0xf]
        %v2387 = vld [vmem:[%s2382 + $0x10] sm:$0xf]
        %v2388 = vld [vmem:[%s2382 + $0x14] sm:$0xf]
        %v2389 = vld [vmem:[%s2382 + $0x18] sm:$0xf]
        %v2390 = vld [vmem:[%s2382 + $0x1c] sm:$0xf]
        %v2391 = vld [vmem:[%s2382 + $0x20] sm:$0xf]
        %v2392 = vld [vmem:[%s2382 + $0x24] sm:$0xf]
        %v2393 = vld [vmem:[%s2382 + $0x28] sm:$0xf]
        %v2394 = vld [vmem:[%s2382 + $0x2c] sm:$0xf]
        %v2395 = vld [vmem:[%s2382 + $0x30] sm:$0xf]
        %v2396 = vld [vmem:[%s2382 + $0x34] sm:$0xf]
        %v2397 = vld [vmem:[%s2382 + $0x38] sm:$0xf]
        %v2398 = vld [vmem:[%s2382 + $0x3c] sm:$0xf]
        %v2415 = vunpack.c.l.b16 %v2383
        %v2416 = vunpack.c.l.b16 %v2384
        %v2417 = vunpack.c.l.b16 %v2385
        %v2418 = vunpack.c.l.b16 %v2386
        %v2419 = vunpack.c.l.b16 %v2387
        %v2420 = vunpack.c.l.b16 %v2388
        %v2421 = vunpack.c.l.b16 %v2389
        %v2422 = vunpack.c.l.b16 %v2390
        %v2423 = vunpack.c.l.b16 %v2391
        %v2424 = vunpack.c.l.b16 %v2392
        %v2425 = vunpack.c.l.b16 %v2393
        %v2426 = vunpack.c.l.b16 %v2394
        %v2427 = vunpack.c.l.b16 %v2395
        %v2428 = vunpack.c.l.b16 %v2396
        %v2429 = vunpack.c.l.b16 %v2397
        %v2430 = vunpack.c.l.b16 %v2398
        %v2431 = vpack.c.b16 %v2416, %v2415
        %v2432 = vpack.c.b16 %v2418, %v2417
        %v2433 = vpack.c.b16 %v2420, %v2419
        %v2434 = vpack.c.b16 %v2422, %v2421
        %v2435 = vpack.c.b16 %v2424, %v2423
        %v2436 = vpack.c.b16 %v2426, %v2425
        %v2437 = vpack.c.b16 %v2428, %v2427
        %v2438 = vpack.c.b16 %v2430, %v2429
        %2447 = vmatprep.subr.bf16.mxu0 0
        %2448 = vmatpush1.bf16.msra.mxu0 %v2431
        %2449 = vmatprep.subr.bf16.mxu0 0
        %2450 = vmatpush1.bf16.msra.mxu0 %v2432
        %2451 = vmatprep.subr.bf16.mxu0 0
        %2452 = vmatpush1.bf16.msra.mxu0 %v2433
        %2453 = vmatprep.subr.bf16.mxu0 0
        %2454 = vmatpush1.bf16.msra.mxu0 %v2434
        %2455 = vmatprep.subr.bf16.mxu0 0
        %2456 = vmatpush1.bf16.msra.mxu0 %v2435
        %2457 = vmatprep.subr.bf16.mxu0 0
        %2458 = vmatpush1.bf16.msra.mxu0 %v2436
        %2459 = vmatprep.subr.bf16.mxu0 0
        %2460 = vmatpush1.bf16.msra.mxu0 %v2437
        %2461 = vmatprep.subr.bf16.mxu0 0
        %2462 = vmatpush1.bf16.msra.mxu0 %v2438
        %2463 = vmatprep.subr.bf16.mxu0 0
        %2464 = vmatpush1.bf16.msra.mxu0 0
        %2465 = vmatprep.subr.bf16.mxu0 0
        %2466 = vmatpush1.bf16.msra.mxu0 0
        %2467 = vmatprep.subr.bf16.mxu0 0
        %2468 = vmatpush1.bf16.msra.mxu0 0
        %2469 = vmatprep.subr.bf16.mxu0 0
        %2470 = vmatpush1.bf16.msra.mxu0 0
        %2471 = vmatprep.subr.bf16.mxu0 0
        %2472 = vmatpush1.bf16.msra.mxu0 0
        %2473 = vmatprep.subr.bf16.mxu0 0
        %2474 = vmatpush1.bf16.msra.mxu0 0
        %2475 = vmatprep.subr.bf16.mxu0 0
        %2476 = vmatpush1.bf16.msra.mxu0 0
        %2477 = vmatprep.subr.bf16.mxu0 0
        %2478 = vmatpush1.bf16.msra.mxu0 0
        %2479 = vmatprep.mubr.bf16.mxu0 0
        %2480 = vmatmul.mubr.bf16.gmra.mrb[0].mxu0 %v2374
        %v2481 = vpop.f32.mrb[0].mxu0
        %v2482 = vadd.f32 0.0, %v2481
        %v2483 = vpop.f32.mrb[0].mxu0
        %v2484 = vpop.f32.mrb[0].mxu0
        %v2485 = vadd.f32 0.0, %v2484
        %v2486 = vpop.f32.mrb[0].mxu0
        %2487 = vmatprep.mubr.bf16.mxu0 0
        %2488 = vmatmul.mubr.bf16.gmra.mrb[0].mxu0 %v2375
        %v2489 = vpop.f32.mrb[0].mxu0
        %v2490 = vadd.f32 0.0, %v2489
        %v2491 = vpop.f32.mrb[0].mxu0
        %v2492 = vpop.f32.mrb[0].mxu0
        %v2493 = vadd.f32 0.0, %v2492
        %v2494 = vpop.f32.mrb[0].mxu0
        %2495 = vmatprep.mubr.bf16.mxu0 0
        %2496 = vmatmul.mubr.bf16.gmra.mrb[0].mxu0 %v2376
        %v2497 = vpop.f32.mrb[0].mxu0
        %v2498 = vadd.f32 0.0, %v2497
        %v2499 = vpop.f32.mrb[0].mxu0
        %v2500 = vpop.f32.mrb[0].mxu0
        %v2501 = vadd.f32 0.0, %v2500
        %v2502 = vpop.f32.mrb[0].mxu0
        %2503 = vmatprep.mubr.bf16.mxu0 0
        %2504 = vmatmul.mubr.bf16.gmra.mrb[0].mxu0 %v2377
        %v2505 = vpop.f32.mrb[0].mxu0
        %v2506 = vadd.f32 0.0, %v2505
        %v2507 = vpop.f32.mrb[0].mxu0
        %v2508 = vpop.f32.mrb[0].mxu0
        %v2509 = vadd.f32 0.0, %v2508
        %v2510 = vpop.f32.mrb[0].mxu0
        %2511 = vmatprep.mubr.bf16.mxu0 0
        %2512 = vmatmul.mubr.bf16.gmra.mrb[0].mxu0 %v2378
        %v2513 = vpop.f32.mrb[0].mxu0
        %v2514 = vadd.f32 0.0, %v2513
        %v2515 = vpop.f32.mrb[0].mxu0
        %v2516 = vpop.f32.mrb[0].mxu0
        %v2517 = vadd.f32 0.0, %v2516
        %v2518 = vpop.f32.mrb[0].mxu0
        %2519 = vmatprep.mubr.bf16.mxu0 0
        %2520 = vmatmul.mubr.bf16.gmra.mrb[0].mxu0 %v2379
        %v2521 = vpop.f32.mrb[0].mxu0
        %v2522 = vadd.f32 0.0, %v2521
        %v2523 = vpop.f32.mrb[0].mxu0
        %v2524 = vpop.f32.mrb[0].mxu0
        %v2525 = vadd.f32 0.0, %v2524
        %v2526 = vpop.f32.mrb[0].mxu0
        %2527 = vmatprep.mubr.bf16.mxu0 0
        %2528 = vmatmul.mubr.bf16.gmra.mrb[0].mxu0 %v2380
        %v2529 = vpop.f32.mrb[0].mxu0
        %v2530 = vadd.f32 0.0, %v2529
        %v2531 = vpop.f32.mrb[0].mxu0
        %v2532 = vpop.f32.mrb[0].mxu0
        %v2533 = vadd.f32 0.0, %v2532
        %v2534 = vpop.f32.mrb[0].mxu0
        %2535 = vmatprep.mubr.bf16.mxu0 0
        %2536 = vmatmul.mubr.bf16.gmra.mrb[0].mxu0 %v2381
        %v2537 = vpop.f32.mrb[0].mxu0
        %v2538 = vadd.f32 0.0, %v2537
        %v2539 = vpop.f32.mrb[0].mxu0
        %v2540 = vpop.f32.mrb[0].mxu0
        %v2541 = vadd.f32 0.0, %v2540
        %v2542 = vpop.f32.mrb[0].mxu0
        %2543 = vdwg.mxu0
        %v2544 = vadd.f32 %v2312, %v2482
        %v2545 = vadd.f32 %v2315, %v2485
        %v2546 = vadd.f32 %v2320, %v2490
        %v2547 = vadd.f32 %v2323, %v2493
        %v2548 = vadd.f32 %v2328, %v2498
        %v2549 = vadd.f32 %v2331, %v2501
        %v2550 = vadd.f32 %v2336, %v2506
        %v2551 = vadd.f32 %v2339, %v2509
        %v2552 = vadd.f32 %v2344, %v2514
        %v2553 = vadd.f32 %v2347, %v2517
        %v2554 = vadd.f32 %v2352, %v2522
        %v2555 = vadd.f32 %v2355, %v2525
        %v2556 = vadd.f32 %v2360, %v2530
        %v2557 = vadd.f32 %v2363, %v2533
        %v2558 = vadd.f32 %v2368, %v2538
        %v2559 = vadd.f32 %v2371, %v2541
        %v2560 = vrot.slane %v1923, 1
        %v2561 = vrot.slane %v1924, 1
        %v2562 = vrot.slane %v1925, 1
        %v2563 = vrot.slane %v1926, 1
        %v2564 = vrot.slane %v1927, 1
        %v2565 = vrot.slane %v1928, 1
        %v2566 = vrot.slane %v1929, 1
        %v2567 = vrot.slane %v1930, 1
        %v2568 = vrot.slane %v1931, 1
        %v2569 = vrot.slane %v1932, 1
        %v2570 = vrot.slane %v1933, 1
        %v2571 = vrot.slane %v1934, 1
        %v2572 = vrot.slane %v1935, 1
        %v2573 = vrot.slane %v1936, 1
        %v2574 = vrot.slane %v1937, 1
        %v2575 = vrot.slane %v1938, 1
        %v2576 = vsel %vm1405, %v2574, %v2575
        %v2577 = vsel %vm1405, %v2573, %v2574
        %v2578 = vsel %vm1405, %v2572, %v2573
        %v2579 = vsel %vm1405, %v2571, %v2572
        %v2580 = vsel %vm1405, %v2570, %v2571
        %v2581 = vsel %vm1405, %v2569, %v2570
        %v2582 = vsel %vm1405, %v2568, %v2569
        %v2583 = vsel %vm1405, %v2567, %v2568
        %v2584 = vsel %vm1405, %v2566, %v2567
        %v2585 = vsel %vm1405, %v2565, %v2566
        %v2586 = vsel %vm1405, %v2564, %v2565
        %v2587 = vsel %vm1405, %v2563, %v2564
        %v2588 = vsel %vm1405, %v2562, %v2563
        %v2589 = vsel %vm1405, %v2561, %v2562
        %v2590 = vsel %vm1405, %v2560, %v2561
        %v2591 = vsel %vm1405, %v2575, %v2560
        %v2592 = vsel %vm1438, %v2590, 0.0
        %v2593 = vsel %vm1439, %v2589, 0.0
        %v2594 = vsel %vm1440, %v2588, 0.0
        %v2595 = vsel %vm1441, %v2587, 0.0
        %v2596 = vsel %vm1442, %v2586, 0.0
        %v2597 = vsel %vm1443, %v2585, 0.0
        %v2598 = vsel %vm1444, %v2584, 0.0
        %v2599 = vsel %vm1445, %v2583, 0.0
        %v2600 = vsel %vm1446, %v2582, 0.0
        %v2601 = vsel %vm1447, %v2581, 0.0
        %v2602 = vsel %vm1448, %v2580, 0.0
        %v2603 = vsel %vm1449, %v2579, 0.0
        %v2604 = vsel %vm1450, %v2578, 0.0
        %v2605 = vsel %vm1451, %v2577, 0.0
        %v2606 = vsel %vm1452, %v2576, 0.0
        %v2607 = vsel %vm1453, %v2591, 0.0
        %v2608 = vpack.c.bf16 %v2593, %v2592
        %v2609 = vpack.c.bf16 %v2595, %v2594
        %v2610 = vpack.c.bf16 %v2597, %v2596
        %v2611 = vpack.c.bf16 %v2599, %v2598
        %v2612 = vpack.c.bf16 %v2601, %v2600
        %v2613 = vpack.c.bf16 %v2603, %v2602
        %v2614 = vpack.c.bf16 %v2605, %v2604
        %v2615 = vpack.c.bf16 %v2607, %v2606
        %s2616 = scalar_lea.vmem [#allocation7], 192
        %v2617 = vld [vmem:[%s2616] sm:$0xf]
        %v2618 = vld [vmem:[%s2616 + $0x4] sm:$0xf]
        %v2619 = vld [vmem:[%s2616 + $0x8] sm:$0xf]
        %v2620 = vld [vmem:[%s2616 + $0xc] sm:$0xf]
        %v2621 = vld [vmem:[%s2616 + $0x10] sm:$0xf]
        %v2622 = vld [vmem:[%s2616 + $0x14] sm:$0xf]
        %v2623 = vld [vmem:[%s2616 + $0x18] sm:$0xf]
        %v2624 = vld [vmem:[%s2616 + $0x1c] sm:$0xf]
        %v2625 = vld [vmem:[%s2616 + $0x20] sm:$0xf]
        %v2626 = vld [vmem:[%s2616 + $0x24] sm:$0xf]
        %v2627 = vld [vmem:[%s2616 + $0x28] sm:$0xf]
        %v2628 = vld [vmem:[%s2616 + $0x2c] sm:$0xf]
        %v2629 = vld [vmem:[%s2616 + $0x30] sm:$0xf]
        %v2630 = vld [vmem:[%s2616 + $0x34] sm:$0xf]
        %v2631 = vld [vmem:[%s2616 + $0x38] sm:$0xf]
        %v2632 = vld [vmem:[%s2616 + $0x3c] sm:$0xf]
        %v2649 = vunpack.c.l.b16 %v2617
        %v2650 = vunpack.c.l.b16 %v2618
        %v2651 = vunpack.c.l.b16 %v2619
        %v2652 = vunpack.c.l.b16 %v2620
        %v2653 = vunpack.c.l.b16 %v2621
        %v2654 = vunpack.c.l.b16 %v2622
        %v2655 = vunpack.c.l.b16 %v2623
        %v2656 = vunpack.c.l.b16 %v2624
        %v2657 = vunpack.c.l.b16 %v2625
        %v2658 = vunpack.c.l.b16 %v2626
        %v2659 = vunpack.c.l.b16 %v2627
        %v2660 = vunpack.c.l.b16 %v2628
        %v2661 = vunpack.c.l.b16 %v2629
        %v2662 = vunpack.c.l.b16 %v2630
        %v2663 = vunpack.c.l.b16 %v2631
        %v2664 = vunpack.c.l.b16 %v2632
        %v2665 = vpack.c.b16 %v2650, %v2649
        %v2666 = vpack.c.b16 %v2652, %v2651
        %v2667 = vpack.c.b16 %v2654, %v2653
        %v2668 = vpack.c.b16 %v2656, %v2655
        %v2669 = vpack.c.b16 %v2658, %v2657
        %v2670 = vpack.c.b16 %v2660, %v2659
        %v2671 = vpack.c.b16 %v2662, %v2661
        %v2672 = vpack.c.b16 %v2664, %v2663
        %2681 = vmatprep.subr.bf16.mxu0 0
        %2682 = vmatpush1.bf16.msra.mxu0 %v2665
        %2683 = vmatprep.subr.bf16.mxu0 0
        %2684 = vmatpush1.bf16.msra.mxu0 %v2666
        %2685 = vmatprep.subr.bf16.mxu0 0
        %2686 = vmatpush1.bf16.msra.mxu0 %v2667
        %2687 = vmatprep.subr.bf16.mxu0 0
        %2688 = vmatpush1.bf16.msra.mxu0 %v2668
        %2689 = vmatprep.subr.bf16.mxu0 0
        %2690 = vmatpush1.bf16.msra.mxu0 %v2669
        %2691 = vmatprep.subr.bf16.mxu0 0
        %2692 = vmatpush1.bf16.msra.mxu0 %v2670
        %2693 = vmatprep.subr.bf16.mxu0 0
        %2694 = vmatpush1.bf16.msra.mxu0 %v2671
        %2695 = vmatprep.subr.bf16.mxu0 0
        %2696 = vmatpush1.bf16.msra.mxu0 %v2672
        %2697 = vmatprep.subr.bf16.mxu0 0
        %2698 = vmatpush1.bf16.msra.mxu0 0
        %2699 = vmatprep.subr.bf16.mxu0 0
        %2700 = vmatpush1.bf16.msra.mxu0 0
        %2701 = vmatprep.subr.bf16.mxu0 0
        %2702 = vmatpush1.bf16.msra.mxu0 0
        %2703 = vmatprep.subr.bf16.mxu0 0
        %2704 = vmatpush1.bf16.msra.mxu0 0
        %2705 = vmatprep.subr.bf16.mxu0 0
        %2706 = vmatpush1.bf16.msra.mxu0 0
        %2707 = vmatprep.subr.bf16.mxu0 0
        %2708 = vmatpush1.bf16.msra.mxu0 0
        %2709 = vmatprep.subr.bf16.mxu0 0
        %2710 = vmatpush1.bf16.msra.mxu0 0
        %2711 = vmatprep.subr.bf16.mxu0 0
        %2712 = vmatpush1.bf16.msra.mxu0 0
        %2713 = vmatprep.mubr.bf16.mxu0 0
        %2714 = vmatmul.mubr.bf16.gmra.mrb[0].mxu0 %v2608
        %v2715 = vpop.f32.mrb[0].mxu0
        %v2716 = vadd.f32 0.0, %v2715
        %v2717 = vpop.f32.mrb[0].mxu0
        %v2718 = vpop.f32.mrb[0].mxu0
        %v2719 = vadd.f32 0.0, %v2718
        %v2720 = vpop.f32.mrb[0].mxu0
        %2721 = vmatprep.mubr.bf16.mxu0 0
        %2722 = vmatmul.mubr.bf16.gmra.mrb[0].mxu0 %v2609
        %v2723 = vpop.f32.mrb[0].mxu0
        %v2724 = vadd.f32 0.0, %v2723
        %v2725 = vpop.f32.mrb[0].mxu0
        %v2726 = vpop.f32.mrb[0].mxu0
        %v2727 = vadd.f32 0.0, %v2726
        %v2728 = vpop.f32.mrb[0].mxu0
        %2729 = vmatprep.mubr.bf16.mxu0 0
        %2730 = vmatmul.mubr.bf16.gmra.mrb[0].mxu0 %v2610
        %v2731 = vpop.f32.mrb[0].mxu0
        %v2732 = vadd.f32 0.0, %v2731
        %v2733 = vpop.f32.mrb[0].mxu0
        %v2734 = vpop.f32.mrb[0].mxu0
        %v2735 = vadd.f32 0.0, %v2734
        %v2736 = vpop.f32.mrb[0].mxu0
        %2737 = vmatprep.mubr.bf16.mxu0 0
        %2738 = vmatmul.mubr.bf16.gmra.mrb[0].mxu0 %v2611
        %v2739 = vpop.f32.mrb[0].mxu0
        %v2740 = vadd.f32 0.0, %v2739
        %v2741 = vpop.f32.mrb[0].mxu0
        %v2742 = vpop.f32.mrb[0].mxu0
        %v2743 = vadd.f32 0.0, %v2742
        %v2744 = vpop.f32.mrb[0].mxu0
        %2745 = vmatprep.mubr.bf16.mxu0 0
        %2746 = vmatmul.mubr.bf16.gmra.mrb[0].mxu0 %v2612
        %v2747 = vpop.f32.mrb[0].mxu0
        %v2748 = vadd.f32 0.0, %v2747
        %v2749 = vpop.f32.mrb[0].mxu0
        %v2750 = vpop.f32.mrb[0].mxu0
        %v2751 = vadd.f32 0.0, %v2750
        %v2752 = vpop.f32.mrb[0].mxu0
        %2753 = vmatprep.mubr.bf16.mxu0 0
        %2754 = vmatmul.mubr.bf16.gmra.mrb[0].mxu0 %v2613
        %v2755 = vpop.f32.mrb[0].mxu0
        %v2756 = vadd.f32 0.0, %v2755
        %v2757 = vpop.f32.mrb[0].mxu0
        %v2758 = vpop.f32.mrb[0].mxu0
        %v2759 = vadd.f32 0.0, %v2758
        %v2760 = vpop.f32.mrb[0].mxu0
        %2761 = vmatprep.mubr.bf16.mxu0 0
        %2762 = vmatmul.mubr.bf16.gmra.mrb[0].mxu0 %v2614
        %v2763 = vpop.f32.mrb[0].mxu0
        %v2764 = vadd.f32 0.0, %v2763
        %v2765 = vpop.f32.mrb[0].mxu0
        %v2766 = vpop.f32.mrb[0].mxu0
        %v2767 = vadd.f32 0.0, %v2766
        %v2768 = vpop.f32.mrb[0].mxu0
        %2769 = vmatprep.mubr.bf16.mxu0 0
        %2770 = vmatmul.mubr.bf16.gmra.mrb[0].mxu0 %v2615
        %v2771 = vpop.f32.mrb[0].mxu0
        %v2772 = vadd.f32 0.0, %v2771
        %v2773 = vpop.f32.mrb[0].mxu0
        %v2774 = vpop.f32.mrb[0].mxu0
        %v2775 = vadd.f32 0.0, %v2774
        %v2776 = vpop.f32.mrb[0].mxu0
        %2777 = vdwg.mxu0
        %v2778 = vadd.f32 %v2544, %v2716
        %v2779 = vadd.f32 %v2545, %v2719
        %v2780 = vadd.f32 %v2546, %v2724
        %v2781 = vadd.f32 %v2547, %v2727
        %v2782 = vadd.f32 %v2548, %v2732
        %v2783 = vadd.f32 %v2549, %v2735
        %v2784 = vadd.f32 %v2550, %v2740
        %v2785 = vadd.f32 %v2551, %v2743
        %v2786 = vadd.f32 %v2552, %v2748
        %v2787 = vadd.f32 %v2553, %v2751
        %v2788 = vadd.f32 %v2554, %v2756
        %v2789 = vadd.f32 %v2555, %v2759
        %v2790 = vadd.f32 %v2556, %v2764
        %v2791 = vadd.f32 %v2557, %v2767
        %v2792 = vadd.f32 %v2558, %v2772
        %v2793 = vadd.f32 %v2559, %v2775
        %v2794 = vrot.slane %v1923, 2
        %v2795 = vrot.slane %v1924, 2
        %v2796 = vrot.slane %v1925, 2
        %v2797 = vrot.slane %v1926, 2
        %v2798 = vrot.slane %v1927, 2
        %v2799 = vrot.slane %v1928, 2
        %v2800 = vrot.slane %v1929, 2
        %v2801 = vrot.slane %v1930, 2
        %v2802 = vrot.slane %v1931, 2
        %v2803 = vrot.slane %v1932, 2
        %v2804 = vrot.slane %v1933, 2
        %v2805 = vrot.slane %v1934, 2
        %v2806 = vrot.slane %v1935, 2
        %v2807 = vrot.slane %v1936, 2
        %v2808 = vrot.slane %v1937, 2
        %v2809 = vrot.slane %v1938, 2
        %v2810 = vsel %vm1672, %v2808, %v2809
        %v2811 = vsel %vm1672, %v2807, %v2808
        %v2812 = vsel %vm1672, %v2806, %v2807
        %v2813 = vsel %vm1672, %v2805, %v2806
        %v2814 = vsel %vm1672, %v2804, %v2805
        %v2815 = vsel %vm1672, %v2803, %v2804
        %v2816 = vsel %vm1672, %v2802, %v2803
        %v2817 = vsel %vm1672, %v2801, %v2802
        %v2818 = vsel %vm1672, %v2800, %v2801
        %v2819 = vsel %vm1672, %v2799, %v2800
        %v2820 = vsel %vm1672, %v2798, %v2799
        %v2821 = vsel %vm1672, %v2797, %v2798
        %v2822 = vsel %vm1672, %v2796, %v2797
        %v2823 = vsel %vm1672, %v2795, %v2796
        %v2824 = vsel %vm1672, %v2794, %v2795
        %v2825 = vsel %vm1672, %v2809, %v2794
        %v2826 = vsel %vm1705, %v2824, 0.0
        %v2827 = vsel %vm1706, %v2823, 0.0
        %v2828 = vsel %vm1707, %v2822, 0.0
        %v2829 = vsel %vm1708, %v2821, 0.0
        %v2830 = vsel %vm1709, %v2820, 0.0
        %v2831 = vsel %vm1710, %v2819, 0.0
        %v2832 = vsel %vm1711, %v2818, 0.0
        %v2833 = vsel %vm1712, %v2817, 0.0
        %v2834 = vsel %vm1713, %v2816, 0.0
        %v2835 = vsel %vm1714, %v2815, 0.0
        %v2836 = vsel %vm1715, %v2814, 0.0
        %v2837 = vsel %vm1716, %v2813, 0.0
        %v2838 = vsel %vm1717, %v2812, 0.0
        %v2839 = vsel %vm1718, %v2811, 0.0
        %v2840 = vsel %vm1719, %v2810, 0.0
        %v2841 = vsel %vm1720, %v2825, 0.0
        %v2842 = vpack.c.bf16 %v2827, %v2826
        %v2843 = vpack.c.bf16 %v2829, %v2828
        %v2844 = vpack.c.bf16 %v2831, %v2830
        %v2845 = vpack.c.bf16 %v2833, %v2832
        %v2846 = vpack.c.bf16 %v2835, %v2834
        %v2847 = vpack.c.bf16 %v2837, %v2836
        %v2848 = vpack.c.bf16 %v2839, %v2838
        %v2849 = vpack.c.bf16 %v2841, %v2840
        %s2850 = scalar_lea.vmem [#allocation7], 256
        %v2851 = vld [vmem:[%s2850] sm:$0xf]
        %v2852 = vld [vmem:[%s2850 + $0x4] sm:$0xf]
        %v2853 = vld [vmem:[%s2850 + $0x8] sm:$0xf]
        %v2854 = vld [vmem:[%s2850 + $0xc] sm:$0xf]
        %v2855 = vld [vmem:[%s2850 + $0x10] sm:$0xf]
        %v2856 = vld [vmem:[%s2850 + $0x14] sm:$0xf]
        %v2857 = vld [vmem:[%s2850 + $0x18] sm:$0xf]
        %v2858 = vld [vmem:[%s2850 + $0x1c] sm:$0xf]
        %v2859 = vld [vmem:[%s2850 + $0x20] sm:$0xf]
        %v2860 = vld [vmem:[%s2850 + $0x24] sm:$0xf]
        %v2861 = vld [vmem:[%s2850 + $0x28] sm:$0xf]
        %v2862 = vld [vmem:[%s2850 + $0x2c] sm:$0xf]
        %v2863 = vld [vmem:[%s2850 + $0x30] sm:$0xf]
        %v2864 = vld [vmem:[%s2850 + $0x34] sm:$0xf]
        %v2865 = vld [vmem:[%s2850 + $0x38] sm:$0xf]
        %v2866 = vld [vmem:[%s2850 + $0x3c] sm:$0xf]
        %v2883 = vunpack.c.l.b16 %v2851
        %v2884 = vunpack.c.l.b16 %v2852
        %v2885 = vunpack.c.l.b16 %v2853
        %v2886 = vunpack.c.l.b16 %v2854
        %v2887 = vunpack.c.l.b16 %v2855
        %v2888 = vunpack.c.l.b16 %v2856
        %v2889 = vunpack.c.l.b16 %v2857
        %v2890 = vunpack.c.l.b16 %v2858
        %v2891 = vunpack.c.l.b16 %v2859
        %v2892 = vunpack.c.l.b16 %v2860
        %v2893 = vunpack.c.l.b16 %v2861
        %v2894 = vunpack.c.l.b16 %v2862
        %v2895 = vunpack.c.l.b16 %v2863
        %v2896 = vunpack.c.l.b16 %v2864
        %v2897 = vunpack.c.l.b16 %v2865
        %v2898 = vunpack.c.l.b16 %v2866
        %v2899 = vpack.c.b16 %v2884, %v2883
        %v2900 = vpack.c.b16 %v2886, %v2885
        %v2901 = vpack.c.b16 %v2888, %v2887
        %v2902 = vpack.c.b16 %v2890, %v2889
        %v2903 = vpack.c.b16 %v2892, %v2891
        %v2904 = vpack.c.b16 %v2894, %v2893
        %v2905 = vpack.c.b16 %v2896, %v2895
        %v2906 = vpack.c.b16 %v2898, %v2897
        %2915 = vmatprep.subr.bf16.mxu0 0
        %2916 = vmatpush1.bf16.msra.mxu0 %v2899
        %2917 = vmatprep.subr.bf16.mxu0 0
        %2918 = vmatpush1.bf16.msra.mxu0 %v2900
        %2919 = vmatprep.subr.bf16.mxu0 0
        %2920 = vmatpush1.bf16.msra.mxu0 %v2901
        %2921 = vmatprep.subr.bf16.mxu0 0
        %2922 = vmatpush1.bf16.msra.mxu0 %v2902
        %2923 = vmatprep.subr.bf16.mxu0 0
        %2924 = vmatpush1.bf16.msra.mxu0 %v2903
        %2925 = vmatprep.subr.bf16.mxu0 0
        %2926 = vmatpush1.bf16.msra.mxu0 %v2904
        %2927 = vmatprep.subr.bf16.mxu0 0
        %2928 = vmatpush1.bf16.msra.mxu0 %v2905
        %2929 = vmatprep.subr.bf16.mxu0 0
        %2930 = vmatpush1.bf16.msra.mxu0 %v2906
        %2931 = vmatprep.subr.bf16.mxu0 0
        %2932 = vmatpush1.bf16.msra.mxu0 0
        %2933 = vmatprep.subr.bf16.mxu0 0
        %2934 = vmatpush1.bf16.msra.mxu0 0
        %2935 = vmatprep.subr.bf16.mxu0 0
        %2936 = vmatpush1.bf16.msra.mxu0 0
        %2937 = vmatprep.subr.bf16.mxu0 0
        %2938 = vmatpush1.bf16.msra.mxu0 0
        %2939 = vmatprep.subr.bf16.mxu0 0
        %2940 = vmatpush1.bf16.msra.mxu0 0
        %2941 = vmatprep.subr.bf16.mxu0 0
        %2942 = vmatpush1.bf16.msra.mxu0 0
        %2943 = vmatprep.subr.bf16.mxu0 0
        %2944 = vmatpush1.bf16.msra.mxu0 0
        %2945 = vmatprep.subr.bf16.mxu0 0
        %2946 = vmatpush1.bf16.msra.mxu0 0
        %2947 = vmatprep.mubr.bf16.mxu0 0
        %2948 = vmatmul.mubr.bf16.gmra.mrb[0].mxu0 %v2842
        %v2949 = vpop.f32.mrb[0].mxu0
        %v2950 = vadd.f32 0.0, %v2949
        %v2951 = vpop.f32.mrb[0].mxu0
        %v2952 = vpop.f32.mrb[0].mxu0
        %v2953 = vadd.f32 0.0, %v2952
        %v2954 = vpop.f32.mrb[0].mxu0
        %2955 = vmatprep.mubr.bf16.mxu0 0
        %2956 = vmatmul.mubr.bf16.gmra.mrb[0].mxu0 %v2843
        %v2957 = vpop.f32.mrb[0].mxu0
        %v2958 = vadd.f32 0.0, %v2957
        %v2959 = vpop.f32.mrb[0].mxu0
        %v2960 = vpop.f32.mrb[0].mxu0
        %v2961 = vadd.f32 0.0, %v2960
        %v2962 = vpop.f32.mrb[0].mxu0
        %2963 = vmatprep.mubr.bf16.mxu0 0
        %2964 = vmatmul.mubr.bf16.gmra.mrb[0].mxu0 %v2844
        %v2965 = vpop.f32.mrb[0].mxu0
        %v2966 = vadd.f32 0.0, %v2965
        %v2967 = vpop.f32.mrb[0].mxu0
        %v2968 = vpop.f32.mrb[0].mxu0
        %v2969 = vadd.f32 0.0, %v2968
        %v2970 = vpop.f32.mrb[0].mxu0
        %2971 = vmatprep.mubr.bf16.mxu0 0
        %2972 = vmatmul.mubr.bf16.gmra.mrb[0].mxu0 %v2845
        %v2973 = vpop.f32.mrb[0].mxu0
        %v2974 = vadd.f32 0.0, %v2973
        %v2975 = vpop.f32.mrb[0].mxu0
        %v2976 = vpop.f32.mrb[0].mxu0
        %v2977 = vadd.f32 0.0, %v2976
        %v2978 = vpop.f32.mrb[0].mxu0
        %2979 = vmatprep.mubr.bf16.mxu0 0
        %2980 = vmatmul.mubr.bf16.gmra.mrb[0].mxu0 %v2846
        %v2981 = vpop.f32.mrb[0].mxu0
        %v2982 = vadd.f32 0.0, %v2981
        %v2983 = vpop.f32.mrb[0].mxu0
        %v2984 = vpop.f32.mrb[0].mxu0
        %v2985 = vadd.f32 0.0, %v2984
        %v2986 = vpop.f32.mrb[0].mxu0
        %2987 = vmatprep.mubr.bf16.mxu0 0
        %2988 = vmatmul.mubr.bf16.gmra.mrb[0].mxu0 %v2847
        %v2989 = vpop.f32.mrb[0].mxu0
        %v2990 = vadd.f32 0.0, %v2989
        %v2991 = vpop.f32.mrb[0].mxu0
        %v2992 = vpop.f32.mrb[0].mxu0
        %v2993 = vadd.f32 0.0, %v2992
        %v2994 = vpop.f32.mrb[0].mxu0
        %2995 = vmatprep.mubr.bf16.mxu0 0
        %2996 = vmatmul.mubr.bf16.gmra.mrb[0].mxu0 %v2848
        %v2997 = vpop.f32.mrb[0].mxu0
        %v2998 = vadd.f32 0.0, %v2997
        %v2999 = vpop.f32.mrb[0].mxu0
        %v3000 = vpop.f32.mrb[0].mxu0
        %v3001 = vadd.f32 0.0, %v3000
        %v3002 = vpop.f32.mrb[0].mxu0
        %3003 = vmatprep.mubr.bf16.mxu0 0
        %3004 = vmatmul.mubr.bf16.gmra.mrb[0].mxu0 %v2849
        %v3005 = vpop.f32.mrb[0].mxu0
        %v3006 = vadd.f32 0.0, %v3005
        %v3007 = vpop.f32.mrb[0].mxu0
        %v3008 = vpop.f32.mrb[0].mxu0
        %v3009 = vadd.f32 0.0, %v3008
        %v3010 = vpop.f32.mrb[0].mxu0
        %3011 = vdwg.mxu0
        %v3012 = vadd.f32 %v2778, %v2950
        %v3013 = vadd.f32 %v2779, %v2953
        %v3014 = vadd.f32 %v2780, %v2958
        %v3015 = vadd.f32 %v2781, %v2961
        %v3016 = vadd.f32 %v2782, %v2966
        %v3017 = vadd.f32 %v2783, %v2969
        %v3018 = vadd.f32 %v2784, %v2974
        %v3019 = vadd.f32 %v2785, %v2977
        %v3020 = vadd.f32 %v2786, %v2982
        %v3021 = vadd.f32 %v2787, %v2985
        %v3022 = vadd.f32 %v2788, %v2990
        %v3023 = vadd.f32 %v2789, %v2993
        %v3024 = vadd.f32 %v2790, %v2998
        %v3025 = vadd.f32 %v2791, %v3001
        %v3026 = vadd.f32 %v2792, %v3006
        %v3027 = vadd.f32 %v2793, %v3009
        %v3028 = vadd.f32 %v221, %v3012
        %v3029 = vadd.f32 %v222, %v3013
        %v3030 = vadd.f32 %v223, %v3014
        %v3031 = vadd.f32 %v224, %v3015
        %v3032 = vadd.f32 %v225, %v3016
        %v3033 = vadd.f32 %v226, %v3017
        %v3034 = vadd.f32 %v227, %v3018
        %v3035 = vadd.f32 %v228, %v3019
        %v3036 = vadd.f32 %v229, %v3020
        %v3037 = vadd.f32 %v230, %v3021
        %v3038 = vadd.f32 %v231, %v3022
        %v3039 = vadd.f32 %v232, %v3023
        %v3040 = vadd.f32 %v233, %v3024
        %v3041 = vadd.f32 %v234, %v3025
        %v3042 = vadd.f32 %v235, %v3026
        %v3043 = vadd.f32 %v236, %v3027
        %3044 = vst [vmem:[%s217] sm:$0xff] %v3028
        %3045 = vst [vmem:[%s217 + $0x8] sm:$0xff] %v3029
        %3046 = vst [vmem:[%s217 + $0x10] sm:$0xff] %v3030
        %3047 = vst [vmem:[%s217 + $0x18] sm:$0xff] %v3031
        %3048 = vst [vmem:[%s217 + $0x20] sm:$0xff] %v3032
        %3049 = vst [vmem:[%s217 + $0x28] sm:$0xff] %v3033
        %3050 = vst [vmem:[%s217 + $0x30] sm:$0xff] %v3034
        %3051 = vst [vmem:[%s217 + $0x38] sm:$0xff] %v3035
        %3052 = vst [vmem:[%s217 + $0x40] sm:$0xff] %v3036
        %3053 = vst [vmem:[%s217 + $0x48] sm:$0xff] %v3037
        %3054 = vst [vmem:[%s217 + $0x50] sm:$0xff] %v3038
        %3055 = vst [vmem:[%s217 + $0x58] sm:$0xff] %v3039
        %3056 = vst [vmem:[%s217 + $0x60] sm:$0xff] %v3040
        %3057 = vst [vmem:[%s217 + $0x68] sm:$0xff] %v3041
        %3058 = vst [vmem:[%s217 + $0x70] sm:$0xff] %v3042
        %3059 = vst [vmem:[%s217 + $0x78] sm:$0xff] %v3043
        %s3060 = sand.u32 %s97, 1
        %s3061 = scalar_lea.sflag [#allocation4], %s3060
        %s3062 = sand.u32 %s97, 1
        %s3063 = smul.addr %s3062, 128
        %s3064 = scalar_lea.vmem [#allocation8], %s3063
        // Predicated region
        $region45: #{tpu_custom_call.1} parent=31 // pred_check
          %p3065 = pneg %p107
        $region46: #{tpu_custom_call.1} parent=31 // pred_check_branch
          %3067 = sbr.rel (%p3065) target = $region48
        $region47: #{tpu_custom_call.1} parent=31 // pred_region
          %s3068 = smul.u32 16, %s21
          %s3070 = ssub.s32 2048, 2048
          %3071 = vsyncadd %s3061, %s3070
          %s3072 = smul.addr %s3068, 128
          %s3073 = scalar_lea.hbm %s3, %s3072
          %s3074 = sshll.u32 %s3064, 4
          %s3075 = int_to_ptr.vmem [resolvable:$true] %s3074
          %3080 = dma.vmem_to_hbm [thread:$0]  %s3075, 2048, %s3073, %s3061, 128, 128, 8
        $region48: #{tpu_custom_call.1} parent=31 // pred_fallthru
          _
      $region32: #{tpu_custom_call.1} parent=5 // pred_fallthru
        _
      %p3081 = scmp.le.s32.totalorder 2, %s16
      // Predicated region
      $region49: #{tpu_custom_call.1} parent=5 // pred_check
        %p3082 = pneg %p3081
      $region50: #{tpu_custom_call.1} parent=5 // pred_check_branch
        %3084 = sbr.rel (%p3082) target = $region52
      $region51: #{tpu_custom_call.1} parent=5 // pred_region
        %s3085 = ssub.s32 %s16, 2
        // Predicated region
        $region53: #{tpu_custom_call.1} parent=51 // pred_check
          %p3086 = pneg %p113
        $region54: #{tpu_custom_call.1} parent=51 // pred_check_branch
          %3088 = sbr.rel (%p3086) target = $region56
        $region55: #{tpu_custom_call.1} parent=51 // pred_region
          %s3089 = sand.u32 %s98, 1
          %s3090 = scalar_lea.sflag [#allocation4], %s3089
          %s3091 = sand.u32 %s98, 1
          %s3092 = smul.addr %s3091, 128
          %s3093 = scalar_lea.vmem [#allocation8], %s3092
          %3094 = dma.done %s3090, 2048
        $region56: #{tpu_custom_call.1} parent=51 // pred_fallthru
          _
      $region52: #{tpu_custom_call.1} parent=5 // pred_fallthru
        _
    $region6: #{tpu_custom_call.1} parent=1 // loop_footer
      %s20 = sadd.s32 1, %s16
    $region7: #{tpu_custom_call.1} parent=1 // loop_footer_branch
      %15 = sbr.rel target = $region3
    $region8: #{tpu_custom_call.1} parent=1 // loop_exit
      _
    %3095 = vsyncpa [#allocation3], 1
    %s3096 = scalar_lea.sflag [#allocation3], 1
    %3097 = vsyncpa %s3096, 1
    %3098 = vsyncpa [#allocation6], 1
    %3099 = vsyncpa [#allocation4], 1
    %s3100 = scalar_lea.sflag [#allocation4], 1
    %3101 = vsyncpa %s3100, 1

</llo_original>
